<compile_context>
chip_gen: v7x
topology: tpu7x:2x2x1
jax: 0.10.0
libtpu: 0.0.40
codegen_flags: <defaults>
</compile_context>

<pallas_src>
import jax
import jax.numpy as jnp
from jax.experimental import pallas as pl
from jax.experimental.pallas import tpu as pltpu

C_IN, C_HID, C_OUT = 192, 512, 1


def _local_disc_kernel(x_ref, w0_ref, b0_ref, w1_ref, b1_ref, w2_ref, b2_ref,
                       o_ref):
    # x_ref : (C_IN, tp)  bf16 slab of contiguous pixels for one batch element
    # w0_ref: (C_HID, C_IN)  bf16   (PyTorch (out, in) conv-weight layout)
    # w1_ref: (C_HID, C_HID) bf16
    # b0/b1 : (C_HID, 1) f32, w2_ref: (C_HID, 1) f32, b2_ref: (1, 1) f32
    h = jnp.dot(w0_ref[...], x_ref[...],
                preferred_element_type=jnp.float32)           # (C_HID, tp) f32
    h = jnp.maximum(h + b0_ref[...], 0.0)
    h = jnp.dot(w1_ref[...], h.astype(jnp.bfloat16),
                preferred_element_type=jnp.float32)           # (C_HID, tp) f32
    h = jnp.maximum(h + b1_ref[...], 0.0)
    # 512 -> 1 layer: weighted reduction over the channel (sublane) axis on
    # the VPU/XLU; an N=1 MXU matmul would waste 255/256 of the array.
    out = jnp.sum(h * w2_ref[...], axis=0, keepdims=True) + b2_ref[...]
    o_ref[...] = out.astype(o_ref.dtype)                      # (1, tp)


def _round_up(x, m):
    return -(-x // m) * m


def _pick_tile(hw, tp_max=1024):
    """Pixel tile: multiple of 128 <= tp_max minimizing padded work, prefer larger."""
    best_tp, best_padded = 128, _round_up(hw, 128)
    for tp in range(128, tp_max + 1, 128):
        padded = _round_up(hw, tp)
        if padded < best_padded or (padded == best_padded and tp > best_tp):
            best_tp, best_padded = tp, padded
    return best_tp, best_padded


def local_discriminator(x_nchw, params, *, tp_max=1024):
    """x_nchw: (B, 192, H, W) float32 -> (B, 1, H, W) float32."""
    w0, b0, w1, b1, w2, b2 = params
    B, C, H, W = x_nchw.shape
    assert C == C_IN
    HW = H * W
    tp, hw_pad = _pick_tile(HW, tp_max)

    # NCHW already has pixels contiguous per channel: just merge H and W
    # (free), pad the pixel axis to a multiple of the tile if needed.
    x3 = x_nchw.reshape(B, C_IN, HW)
    if hw_pad != HW:
        x3 = jnp.pad(x3, ((0, 0), (0, 0), (0, hw_pad - HW)))

    # bf16 operands for the MXU; bias / final layer stay f32 on the VPU.
    w0b = w0.astype(jnp.bfloat16)                       # (512, 192)
    w1b = w1.astype(jnp.bfloat16)                       # (512, 512)
    b0c = b0.reshape(C_HID, 1).astype(jnp.float32)
    b1c = b1.reshape(C_HID, 1).astype(jnp.float32)
    w2c = w2.reshape(C_HID, C_OUT).astype(jnp.float32)  # (512, 1)
    b2c = b2.reshape(1, 1).astype(jnp.float32)

    grid = (B, hw_pad // tp)
    out3 = pl.pallas_call(
        _local_disc_kernel,
        out_shape=jax.ShapeDtypeStruct((B, C_OUT, hw_pad), jnp.float32),
        grid_spec=pltpu.PrefetchScalarGridSpec(
            num_scalar_prefetch=0,
            grid=grid,
            in_specs=[
                pl.BlockSpec((None, C_IN, tp), lambda b, p: (b, 0, p)),  # x slab
                pl.BlockSpec((C_HID, C_IN), lambda b, p: (0, 0)),        # w0
                pl.BlockSpec((C_HID, 1), lambda b, p: (0, 0)),           # b0
                pl.BlockSpec((C_HID, C_HID), lambda b, p: (0, 0)),       # w1
                pl.BlockSpec((C_HID, 1), lambda b, p: (0, 0)),           # b1
                pl.BlockSpec((C_HID, 1), lambda b, p: (0, 0)),           # w2 col
                pl.BlockSpec((1, 1), lambda b, p: (0, 0)),               # b2
            ],
            out_specs=pl.BlockSpec((None, C_OUT, tp), lambda b, p: (b, 0, p)),
        ),
        compiler_params=pltpu.CompilerParams(
            dimension_semantics=("parallel", "parallel"),
            vmem_limit_bytes=32 * 1024 * 1024),
    )(x3, w0b, b0c, w1b, b1c, w2c, b2c)

    out3 = out3[:, :, :HW]
    return out3.reshape(B, C_OUT, H, W)


def init_params(key):
    """Synthetic params in PyTorch Conv2d(k=1) layout: weight (out, in), bias (out,)."""
    k0, k1, k2, k3, k4, k5 = jax.random.split(key, 6)

    def uinit(k, shape, fan_in):
        bound = 1.0 / jnp.sqrt(fan_in)
        return jax.random.uniform(k, shape, jnp.float32, -bound, bound)

    w0 = uinit(k0, (C_HID, C_IN), C_IN)
    b0 = uinit(k1, (C_HID,), C_IN)
    w1 = uinit(k2, (C_HID, C_HID), C_HID)
    b1 = uinit(k3, (C_HID,), C_HID)
    w2 = uinit(k4, (C_OUT, C_HID), C_HID)
    b2 = uinit(k5, (C_OUT,), C_HID)
    return (w0, b0, w1, b1, w2, b2)


def reference(x_nchw, params):
    """Pure-JAX f32 reference of the PyTorch forward."""
    w0, b0, w1, b1, w2, b2 = params
    B, C, H, W = x_nchw.shape
    x3 = x_nchw.reshape(B, C, H * W)
    h = jnp.maximum(jnp.einsum('oc,bcp->bop', w0, x3) + b0[None, :, None], 0.0)
    h = jnp.maximum(jnp.einsum('oc,bcp->bop', w1, h) + b1[None, :, None], 0.0)
    o = jnp.einsum('oc,bcp->bop', w2, h) + b2[None, :, None]
    return o.reshape(B, C_OUT, H, W)


if __name__ == "__main__":
    key = jax.random.PRNGKey(0)
    pkey, xkey = jax.random.split(key)
    params = init_params(pkey)

    # small but module-consistent input: batch=2, channels=192 (fixed by the
    # module), spatial=8x8
    x = jax.random.normal(xkey, (2, C_IN, 8, 8), dtype=jnp.float32)

    out = local_discriminator(x, params)
    out = jax.block_until_ready(out)
    assert out.shape == (2, 1, 8, 8), out.shape

    ref = jax.block_until_ready(reference(x, params))
    # bf16 matmuls with f32 accumulation -> relaxed tolerance vs the f32 ref.
    assert jnp.allclose(out, ref, atol=2e-2, rtol=2e-2), float(
        jnp.max(jnp.abs(out - ref)))

    print("KERNEL_OK")
</pallas_src>

<mosaic_0001>
module attributes {stable_mosaic.version = 11 : i64} {
  func.func @_local_disc_kernel(%arg0: i32, %arg1: i32, %arg2: memref<1x192x128xf32, #tpu.memory_space<vmem>>, %arg3: memref<512x192xbf16, #tpu.memory_space<vmem>>, %arg4: memref<512x1xf32, #tpu.memory_space<vmem>>, %arg5: memref<512x512xbf16, #tpu.memory_space<vmem>>, %arg6: memref<512x1xf32, #tpu.memory_space<vmem>>, %arg7: memref<512x1xf32, #tpu.memory_space<vmem>>, %arg8: memref<1x1xf32, #tpu.memory_space<vmem>>, %arg9: memref<1x1x128xf32, #tpu.memory_space<vmem>>) attributes {dimension_semantics = [#tpu.dimension_semantics<parallel>, #tpu.dimension_semantics<parallel>], iteration_bounds = array<i64: 2, 1>, scalar_prefetch = 0 : i64, scratch_operands = 0 : i64, tpu.core_type = #tpu.core_type<tc>, window_params = [{transform_indices = @transform_0, window_bounds = array<i64: 1, 192, 128>}, {pipeline_mode = #tpu.pipeline_mode<synchronous>, transform_indices = @transform_1, window_bounds = array<i64: 512, 192>}, {pipeline_mode = #tpu.pipeline_mode<synchronous>, transform_indices = @transform_2, window_bounds = array<i64: 512, 1>}, {pipeline_mode = #tpu.pipeline_mode<synchronous>, transform_indices = @transform_3, window_bounds = array<i64: 512, 512>}, {pipeline_mode = #tpu.pipeline_mode<synchronous>, transform_indices = @transform_4, window_bounds = array<i64: 512, 1>}, {pipeline_mode = #tpu.pipeline_mode<synchronous>, transform_indices = @transform_5, window_bounds = array<i64: 512, 1>}, {pipeline_mode = #tpu.pipeline_mode<synchronous>, transform_indices = @transform_6, window_bounds = array<i64: 1, 1>}, {transform_indices = @transform_7, window_bounds = array<i64: 1, 1, 128>}]} {
    %c0 = arith.constant 0 : index
    %c0_0 = arith.constant 0 : index
    %0 = vector.load %arg3[%c0, %c0_0] : memref<512x192xbf16, #tpu.memory_space<vmem>>, vector<512x192xbf16>
    %c0_1 = arith.constant 0 : index
    %c0_2 = arith.constant 0 : index
    %c0_3 = arith.constant 0 : index
    %1 = vector.load %arg2[%c0_1, %c0_2, %c0_3] : memref<1x192x128xf32, #tpu.memory_space<vmem>>, vector<1x192x128xf32>
    %2 = vector.shape_cast %1 : vector<1x192x128xf32> to vector<192x128xf32>
    %cst = arith.constant dense<0.000000e+00> : vector<512x128xf32>
    %3 = tpu.matmul %0, %2, %cst {dimension_numbers = #tpu.dot_dimension_numbers<[1], [0], [0], [1], [0, 0, 1, 1], [], []>} : vector<512x192xbf16>, vector<192x128xf32>, vector<512x128xf32> -> vector<512x128xf32>
    %c0_4 = arith.constant 0 : index
    %c0_5 = arith.constant 0 : index
    %4 = vector.load %arg4[%c0_4, %c0_5] : memref<512x1xf32, #tpu.memory_space<vmem>>, vector<512x1xf32>
    %5 = vector.broadcast %4 : vector<512x1xf32> to vector<512x128xf32>
    %6 = arith.addf %3, %5 : vector<512x128xf32>
    %cst_6 = arith.constant 0.000000e+00 : f32
    %7 = vector.broadcast %cst_6 : f32 to vector<512x128xf32>
    %8 = arith.maximumf %6, %7 : vector<512x128xf32>
    %c0_7 = arith.constant 0 : index
    %c0_8 = arith.constant 0 : index
    %9 = vector.load %arg5[%c0_7, %c0_8] : memref<512x512xbf16, #tpu.memory_space<vmem>>, vector<512x512xbf16>
    %10 = arith.truncf %8 : vector<512x128xf32> to vector<512x128xbf16>
    %cst_9 = arith.constant dense<0.000000e+00> : vector<512x128xf32>
    %11 = tpu.matmul %9, %10, %cst_9 {dimension_numbers = #tpu.dot_dimension_numbers<[1], [0], [0], [1], [0, 0, 1, 1], [], []>} : vector<512x512xbf16>, vector<512x128xbf16>, vector<512x128xf32> -> vector<512x128xf32>
    %c0_10 = arith.constant 0 : index
    %c0_11 = arith.constant 0 : index
    %12 = vector.load %arg6[%c0_10, %c0_11] : memref<512x1xf32, #tpu.memory_space<vmem>>, vector<512x1xf32>
    %13 = vector.broadcast %12 : vector<512x1xf32> to vector<512x128xf32>
    %14 = arith.addf %11, %13 : vector<512x128xf32>
    %cst_12 = arith.constant 0.000000e+00 : f32
    %15 = vector.broadcast %cst_12 : f32 to vector<512x128xf32>
    %16 = arith.maximumf %14, %15 : vector<512x128xf32>
    %c0_13 = arith.constant 0 : index
    %c0_14 = arith.constant 0 : index
    %17 = vector.load %arg7[%c0_13, %c0_14] : memref<512x1xf32, #tpu.memory_space<vmem>>, vector<512x1xf32>
    %18 = vector.broadcast %17 : vector<512x1xf32> to vector<512x128xf32>
    %19 = arith.mulf %16, %18 : vector<512x128xf32>
    %cst_15 = arith.constant dense<0.000000e+00> : vector<128xf32>
    %20 = vector.multi_reduction <add>, %19, %cst_15 [0] : vector<512x128xf32> to vector<128xf32>
    %21 = vector.shape_cast %20 : vector<128xf32> to vector<1x128xf32>
    %c0_16 = arith.constant 0 : index
    %c0_17 = arith.constant 0 : index
    %22 = vector.load %arg8[%c0_16, %c0_17] : memref<1x1xf32, #tpu.memory_space<vmem>>, vector<1x1xf32>
    %23 = vector.broadcast %22 : vector<1x1xf32> to vector<1x128xf32>
    %24 = arith.addf %21, %23 : vector<1x128xf32>
    %c0_18 = arith.constant 0 : index
    %c0_19 = arith.constant 0 : index
    %c0_20 = arith.constant 0 : index
    %25 = vector.load %arg9[%c0_18, %c0_19, %c0_20] : memref<1x1x128xf32, #tpu.memory_space<vmem>>, vector<1x1x128xf32>
    %26 = vector.shape_cast %25 : vector<1x1x128xf32> to vector<1x128xf32>
    %27 = vector.shape_cast %24 : vector<1x128xf32> to vector<1x1x128xf32>
    tpu.vector_store %arg9[%c0_18, %c0_19, %c0_20], %27 {strides = array<i32>} : memref<1x1x128xf32, #tpu.memory_space<vmem>>, vector<1x1x128xf32>,
    return
  }
  func.func @transform_0(%arg0: i32, %arg1: i32) -> (i32, i32, i32) {
    %c0_i32 = arith.constant 0 : i32
    %c0_i32_0 = arith.constant 0 : i32
    return %arg0, %c0_i32, %arg1 : i32, i32, i32
  }
  func.func @transform_1(%arg0: i32, %arg1: i32) -> (i32, i32) {
    %c0_i32 = arith.constant 0 : i32
    %c0_i32_0 = arith.constant 0 : i32
    %c0_i32_1 = arith.constant 0 : i32
    return %c0_i32, %c0_i32_0 : i32, i32
  }
  func.func @transform_2(%arg0: i32, %arg1: i32) -> (i32, i32) {
    %c0_i32 = arith.constant 0 : i32
    %c0_i32_0 = arith.constant 0 : i32
    %c0_i32_1 = arith.constant 0 : i32
    return %c0_i32, %c0_i32_0 : i32, i32
  }
  func.func @transform_3(%arg0: i32, %arg1: i32) -> (i32, i32) {
    %c0_i32 = arith.constant 0 : i32
    %c0_i32_0 = arith.constant 0 : i32
    %c0_i32_1 = arith.constant 0 : i32
    return %c0_i32, %c0_i32_0 : i32, i32
  }
  func.func @transform_4(%arg0: i32, %arg1: i32) -> (i32, i32) {
    %c0_i32 = arith.constant 0 : i32
    %c0_i32_0 = arith.constant 0 : i32
    %c0_i32_1 = arith.constant 0 : i32
    return %c0_i32, %c0_i32_0 : i32, i32
  }
  func.func @transform_5(%arg0: i32, %arg1: i32) -> (i32, i32) {
    %c0_i32 = arith.constant 0 : i32
    %c0_i32_0 = arith.constant 0 : i32
    %c0_i32_1 = arith.constant 0 : i32
    return %c0_i32, %c0_i32_0 : i32, i32
  }
  func.func @transform_6(%arg0: i32, %arg1: i32) -> (i32, i32) {
    %c0_i32 = arith.constant 0 : i32
    %c0_i32_0 = arith.constant 0 : i32
    %c0_i32_1 = arith.constant 0 : i32
    return %c0_i32, %c0_i32_0 : i32, i32
  }
  func.func @transform_7(%arg0: i32, %arg1: i32) -> (i32, i32, i32) {
    %c0_i32 = arith.constant 0 : i32
    %c0_i32_0 = arith.constant 0 : i32
    return %arg0, %c0_i32, %arg1 : i32, i32, i32
  }
}

</mosaic_0001>

<llo_original>
// kernel: tpu_custom_call.1
$region0: #{tpu_custom_call.1}
  #allocation0 [shape = 'u32[]', space=smem, size = 0x4, offset = 0x4, fixed_abs, tag = 'smem constant byte address 0x4 - core index']
  #allocation1 [shape = 'u32[144,128]{1,0:T(1,128)}', space=vmem, size = 0x12000, scoped, tag = 'internal scratch']
  #allocation2 [shape = 'f32[1,1]{1,0:T(1,128)S(1)}', space=vmem, size = 0x200, scoped, tag = 'scoped memory for tpu_custom_call.1']
  %s0 = inlined_call_operand.vmem [shape: f32[2,192,128], index: 0, kind: input, shape index: {}]
  %s1 = inlined_call_operand.vmem [shape: bf16[512,192], index: 1, kind: input, shape index: {}]
  %s2 = inlined_call_operand.vmem [shape: f32[512,1], index: 2, kind: input, shape index: {}]
  %s3 = inlined_call_operand.vmem [shape: bf16[512,512], index: 3, kind: input, shape index: {}]
  %s4 = inlined_call_operand.vmem [shape: f32[512,1], index: 4, kind: input, shape index: {}]
  %s5 = inlined_call_operand.vmem [shape: f32[512,1], index: 5, kind: input, shape index: {}]
  %s6 = inlined_call_operand.<no memory space> [shape: f32[1,1], index: 6, kind: input, shape index: {}]
  %s7 = inlined_call_operand.hbm [shape: f32[2,1,128], index: 7, kind: output, shape index: {}]
  %s8 = sld [smem:[#allocation0]]
  $region61: #{tpu_custom_call.1} parent=0
    _
  %s10 = ssub.s32 1, %s8
  %s11 = scalar_select 0, %s10, %s8
  %v12 = vstv %s6
  %13 = vst [vmem:[#allocation2] sm:$0x1] %v12
  $region1: #{tpu_custom_call.1} parent=0
    #allocation3 [shape = 'u8[1024]{0}', space=vmem, size = 0x400, scoped, tag = 'output window, operand 0']
    #allocation4 [shape = 's32[2]{0}', space=sflag, size = 0x8, scoped, tag = 'scoped memory for tpu_custom_call.1']
    %14 = vsyncpa [#allocation4], 0
    %s15 = scalar_lea.sflag [#allocation4], 1
    %16 = vsyncpa %s15, 0
    loop: start=0, step=1, limit=4
    $region2: #{tpu_custom_call.1} parent=1 // loop_pre_header
      _
    $region3: #{tpu_custom_call.1} parent=1 // loop_header
      %s18 = sphi 0, %s22
      %p19 = scmp.ge.s32.totalorder %s18, 4
      %s25 = sphi 0, %s37
      %s26 = sphi 0, %s33
      %s27 = sphi 0, %s25
      %s28 = sphi 0, %s26
      %s29 = sphi 0, %s27
      %s30 = sphi 0, %s28
      %s42 = sphi 0, %s44
      %s45 = sphi 0, %s42
      %s46 = sphi 0, %s45
      %s62 = sphi 0, %s46
      %s66 = sphi 0, %s66
      %s68 = sphi 0, %s66
      %s69 = sphi 0, %s68
      %s83 = sphi 0, %s69
      %s87 = sphi 0, %s87
      %s89 = sphi 0, %s87
      %s90 = sphi 0, %s89
      %s104 = sphi 0, %s90
      %s108 = sphi 0, %s108
      %s110 = sphi 0, %s108
      %s111 = sphi 0, %s110
      %s125 = sphi 0, %s111
      %s129 = sphi 0, %s129
      %s131 = sphi 0, %s129
      %s132 = sphi 0, %s131
      %s146 = sphi 0, %s132
      %s150 = sphi 0, %s150
      %s152 = sphi 0, %s150
      %s153 = sphi 0, %s152
      %s167 = sphi 0, %s153
      %s171 = sphi 0, %s171
      %s173 = sphi 0, %s171
      %s174 = sphi 0, %s173
      %s188 = sphi 0, %s174
      %s196 = sphi 0, %s198
      %s199 = sphi 0, %s196
      %s200 = sphi 0, %s199
      %s216 = sphi 0, %s200
    $region4: #{tpu_custom_call.1} parent=1 // loop_header_branch
      %21 = sbr.rel (%p19) target = $region8
    $region5: #{tpu_custom_call.1} parent=1 // loop_body
      %s23 = ssub.s32 %s18, 1
      %s24 = ssub.s32 %s18, 2
      %s31 = sadd.s32 1, %s26
      %p32 = scmp.ge.s32.totalorder %s31, 1
      %s33 = scalar_select %p32, 0, %s31
      %s34 = sadd.s32 1, %s25
      %s35 = scalar_select %p32, %s34, %s25
      %p36 = scmp.ge.s32.totalorder %s35, 2
      %s37 = scalar_select %p36, 0, %s35
      %s38 = ssub.s32 %s25, %s37
      %s39 = ssub.s32 %s26, %s33
      %s40 = sor.u32 %s38, %s39
      %p41 = scmp.eq.s32.totalorder %s40, 0
      %s43 = sadd.s32 %s42, 1
      %s44 = scalar_select %p41, %s42, %s43
      %p47 = pneg %p41
      %p48 = scmp.eq.s32.totalorder %s18, 1
      %p49 = por %p47, %p48
      %p50 = scmp.ne.s32.totalorder %s42, %s45
      %p51 = scmp.eq.s32.totalorder %s18, 0
      %p52 = por %p50, %p51
      %p53 = scmp.ne.s32.totalorder %s42, %s45
      %p54 = scmp.eq.s32.totalorder %s23, 1
      %p55 = por %p53, %p54
      %p56 = scmp.ne.s32.totalorder %s45, %s46
      %p57 = scmp.eq.s32.totalorder %s23, 0
      %p58 = por %p56, %p57
      %p59 = scmp.ne.s32.totalorder %s45, %s46
      %p60 = scmp.eq.s32.totalorder %s24, 1
      %p61 = por %p59, %p60
      %p63 = scmp.ne.s32.totalorder %s46, %s62
      %p64 = scmp.eq.s32.totalorder %s24, 0
      %p65 = por %p63, %p64
      %s67 = sadd.s32 %s66, 1
      %p70 = scmp.eq.s32.totalorder %s18, 1
      %p71 = scmp.ne.s32.totalorder %s66, %s68
      %p72 = scmp.eq.s32.totalorder %s18, 0
      %p73 = por %p71, %p72
      %p74 = scmp.ne.s32.totalorder %s66, %s68
      %p75 = scmp.eq.s32.totalorder %s23, 1
      %p76 = por %p74, %p75
      %p77 = scmp.ne.s32.totalorder %s68, %s69
      %p78 = scmp.eq.s32.totalorder %s23, 0
      %p79 = por %p77, %p78
      %p80 = scmp.ne.s32.totalorder %s68, %s69
      %p81 = scmp.eq.s32.totalorder %s24, 1
      %p82 = por %p80, %p81
      %p84 = scmp.ne.s32.totalorder %s69, %s83
      %p85 = scmp.eq.s32.totalorder %s24, 0
      %p86 = por %p84, %p85
      %s88 = sadd.s32 %s87, 1
      %p91 = scmp.eq.s32.totalorder %s18, 1
      %p92 = scmp.ne.s32.totalorder %s87, %s89
      %p93 = scmp.eq.s32.totalorder %s18, 0
      %p94 = por %p92, %p93
      %p95 = scmp.ne.s32.totalorder %s87, %s89
      %p96 = scmp.eq.s32.totalorder %s23, 1
      %p97 = por %p95, %p96
      %p98 = scmp.ne.s32.totalorder %s89, %s90
      %p99 = scmp.eq.s32.totalorder %s23, 0
      %p100 = por %p98, %p99
      %p101 = scmp.ne.s32.totalorder %s89, %s90
      %p102 = scmp.eq.s32.totalorder %s24, 1
      %p103 = por %p101, %p102
      %p105 = scmp.ne.s32.totalorder %s90, %s104
      %p106 = scmp.eq.s32.totalorder %s24, 0
      %p107 = por %p105, %p106
      %s109 = sadd.s32 %s108, 1
      %p112 = scmp.eq.s32.totalorder %s18, 1
      %p113 = scmp.ne.s32.totalorder %s108, %s110
      %p114 = scmp.eq.s32.totalorder %s18, 0
      %p115 = por %p113, %p114
      %p116 = scmp.ne.s32.totalorder %s108, %s110
      %p117 = scmp.eq.s32.totalorder %s23, 1
      %p118 = por %p116, %p117
      %p119 = scmp.ne.s32.totalorder %s110, %s111
      %p120 = scmp.eq.s32.totalorder %s23, 0
      %p121 = por %p119, %p120
      %p122 = scmp.ne.s32.totalorder %s110, %s111
      %p123 = scmp.eq.s32.totalorder %s24, 1
      %p124 = por %p122, %p123
      %p126 = scmp.ne.s32.totalorder %s111, %s125
      %p127 = scmp.eq.s32.totalorder %s24, 0
      %p128 = por %p126, %p127
      %s130 = sadd.s32 %s129, 1
      %p133 = scmp.eq.s32.totalorder %s18, 1
      %p134 = scmp.ne.s32.totalorder %s129, %s131
      %p135 = scmp.eq.s32.totalorder %s18, 0
      %p136 = por %p134, %p135
      %p137 = scmp.ne.s32.totalorder %s129, %s131
      %p138 = scmp.eq.s32.totalorder %s23, 1
      %p139 = por %p137, %p138
      %p140 = scmp.ne.s32.totalorder %s131, %s132
      %p141 = scmp.eq.s32.totalorder %s23, 0
      %p142 = por %p140, %p141
      %p143 = scmp.ne.s32.totalorder %s131, %s132
      %p144 = scmp.eq.s32.totalorder %s24, 1
      %p145 = por %p143, %p144
      %p147 = scmp.ne.s32.totalorder %s132, %s146
      %p148 = scmp.eq.s32.totalorder %s24, 0
      %p149 = por %p147, %p148
      %s151 = sadd.s32 %s150, 1
      %p154 = scmp.eq.s32.totalorder %s18, 1
      %p155 = scmp.ne.s32.totalorder %s150, %s152
      %p156 = scmp.eq.s32.totalorder %s18, 0
      %p157 = por %p155, %p156
      %p158 = scmp.ne.s32.totalorder %s150, %s152
      %p159 = scmp.eq.s32.totalorder %s23, 1
      %p160 = por %p158, %p159
      %p161 = scmp.ne.s32.totalorder %s152, %s153
      %p162 = scmp.eq.s32.totalorder %s23, 0
      %p163 = por %p161, %p162
      %p164 = scmp.ne.s32.totalorder %s152, %s153
      %p165 = scmp.eq.s32.totalorder %s24, 1
      %p166 = por %p164, %p165
      %p168 = scmp.ne.s32.totalorder %s153, %s167
      %p169 = scmp.eq.s32.totalorder %s24, 0
      %p170 = por %p168, %p169
      %s172 = sadd.s32 %s171, 1
      %p175 = scmp.eq.s32.totalorder %s18, 1
      %p176 = scmp.ne.s32.totalorder %s171, %s173
      %p177 = scmp.eq.s32.totalorder %s18, 0
      %p178 = por %p176, %p177
      %p179 = scmp.ne.s32.totalorder %s171, %s173
      %p180 = scmp.eq.s32.totalorder %s23, 1
      %p181 = por %p179, %p180
      %p182 = scmp.ne.s32.totalorder %s173, %s174
      %p183 = scmp.eq.s32.totalorder %s23, 0
      %p184 = por %p182, %p183
      %p185 = scmp.ne.s32.totalorder %s173, %s174
      %p186 = scmp.eq.s32.totalorder %s24, 1
      %p187 = por %p185, %p186
      %p189 = scmp.ne.s32.totalorder %s174, %s188
      %p190 = scmp.eq.s32.totalorder %s24, 0
      %p191 = por %p189, %p190
      %s192 = ssub.s32 %s25, %s37
      %s193 = ssub.s32 %s26, %s33
      %s194 = sor.u32 %s192, %s193
      %p195 = scmp.eq.s32.totalorder %s194, 0
      %s197 = sadd.s32 %s196, 1
      %s198 = scalar_select %p195, %s196, %s197
      %p201 = pneg %p195
      %p202 = scmp.eq.s32.totalorder %s18, 1
      %p203 = por %p201, %p202
      %p204 = scmp.ne.s32.totalorder %s196, %s199
      %p205 = scmp.eq.s32.totalorder %s18, 0
      %p206 = por %p204, %p205
      %p207 = scmp.ne.s32.totalorder %s196, %s199
      %p208 = scmp.eq.s32.totalorder %s23, 1
      %p209 = por %p207, %p208
      %p210 = scmp.ne.s32.totalorder %s199, %s200
      %p211 = scmp.eq.s32.totalorder %s23, 0
      %p212 = por %p210, %p211
      %p213 = scmp.ne.s32.totalorder %s199, %s200
      %p214 = scmp.eq.s32.totalorder %s24, 1
      %p215 = por %p213, %p214
      %p217 = scmp.ne.s32.totalorder %s200, %s216
      %p218 = scmp.eq.s32.totalorder %s24, 0
      %p219 = por %p217, %p218
      %p220 = scmp.le.s32.totalorder 1, %s18
      %p221 = scmp.lt.s32.totalorder %s18, 3
      %p222 = pnand %p220, %p221
      %p223 = pneg %p222
      // Predicated region
      $region9: #{tpu_custom_call.1} parent=5 // pred_check
        _
      $region10: #{tpu_custom_call.1} parent=5 // pred_check_branch
        %225 = sbr.rel (%p222) target = $region12
      $region11: #{tpu_custom_call.1} parent=5 // pred_region
        %s226 = ssub.s32 %s18, 1
        // Predicated region
        $region13: #{tpu_custom_call.1} parent=11 // pred_check
          %p227 = pneg %p79
        $region14: #{tpu_custom_call.1} parent=11 // pred_check_branch
          %229 = sbr.rel (%p227) target = $region16
        $region15: #{tpu_custom_call.1} parent=11 // pred_region
          _
        $region16: #{tpu_custom_call.1} parent=11 // pred_fallthru
          _
        // Predicated region
        $region17: #{tpu_custom_call.1} parent=11 // pred_check
          %p230 = pneg %p100
        $region18: #{tpu_custom_call.1} parent=11 // pred_check_branch
          %232 = sbr.rel (%p230) target = $region20
        $region19: #{tpu_custom_call.1} parent=11 // pred_region
          _
        $region20: #{tpu_custom_call.1} parent=11 // pred_fallthru
          _
        // Predicated region
        $region21: #{tpu_custom_call.1} parent=11 // pred_check
          %p233 = pneg %p121
        $region22: #{tpu_custom_call.1} parent=11 // pred_check_branch
          %235 = sbr.rel (%p233) target = $region24
        $region23: #{tpu_custom_call.1} parent=11 // pred_region
          _
        $region24: #{tpu_custom_call.1} parent=11 // pred_fallthru
          _
        // Predicated region
        $region25: #{tpu_custom_call.1} parent=11 // pred_check
          %p236 = pneg %p142
        $region26: #{tpu_custom_call.1} parent=11 // pred_check_branch
          %238 = sbr.rel (%p236) target = $region28
        $region27: #{tpu_custom_call.1} parent=11 // pred_region
          _
        $region28: #{tpu_custom_call.1} parent=11 // pred_fallthru
          _
        // Predicated region
        $region29: #{tpu_custom_call.1} parent=11 // pred_check
          %p239 = pneg %p163
        $region30: #{tpu_custom_call.1} parent=11 // pred_check_branch
          %241 = sbr.rel (%p239) target = $region32
        $region31: #{tpu_custom_call.1} parent=11 // pred_region
          _
        $region32: #{tpu_custom_call.1} parent=11 // pred_fallthru
          _
        // Predicated region
        $region33: #{tpu_custom_call.1} parent=11 // pred_check
          %p242 = pneg %p184
        $region34: #{tpu_custom_call.1} parent=11 // pred_check_branch
          %244 = sbr.rel (%p242) target = $region36
        $region35: #{tpu_custom_call.1} parent=11 // pred_region
          _
        $region36: #{tpu_custom_call.1} parent=11 // pred_fallthru
          _
      $region12: #{tpu_custom_call.1} parent=5 // pred_fallthru
        _
      %p245 = scmp.lt.s32.totalorder %s18, 2
      // Predicated region
      $region37: #{tpu_custom_call.1} parent=5 // pred_check
        %p246 = pneg %p245
      $region38: #{tpu_custom_call.1} parent=5 // pred_check_branch
        %248 = sbr.rel (%p246) target = $region40
      $region39: #{tpu_custom_call.1} parent=5 // pred_region
        // Predicated region
        $region41: #{tpu_custom_call.1} parent=39 // pred_check
          %p249 = pneg %p52
        $region42: #{tpu_custom_call.1} parent=39 // pred_check_branch
          %251 = sbr.rel (%p249) target = $region44
        $region43: #{tpu_custom_call.1} parent=39 // pred_region
          %p252 = scmp.lt.s32.totalorder %s25, 1
          %s253 = scalar_select %p252, %s25, 1
          %p254 = scmp.lt.s32.totalorder %s26, 0
          %s255 = scalar_select %p254, %s26, 0
          %s256 = smul.addr %s253, 24
          %s257 = sadd.s32 %s255, %s256
          %s258 = smul.addr %s257, 8
          %s259 = scalar_lea.vmem %s0, %s258
        $region44: #{tpu_custom_call.1} parent=39 // pred_fallthru
          _
      $region40: #{tpu_custom_call.1} parent=5 // pred_fallthru
        _
      %p260 = scmp.le.s32.totalorder 1, %s18
      %p261 = scmp.lt.s32.totalorder %s18, 3
      %p262 = pnand %p260, %p261
      %p263 = pneg %p262
      // Predicated region
      $region45: #{tpu_custom_call.1} parent=5 // pred_check
        _
      $region46: #{tpu_custom_call.1} parent=5 // pred_check_branch
        %265 = sbr.rel (%p262) target = $region48
      $region47: #{tpu_custom_call.1} parent=5 // pred_region
        %s266 = ssub.s32 %s18, 1
        %p267 = scmp.lt.s32.totalorder %s27, 1
        %s268 = scalar_select %p267, %s27, 1
        %p269 = scmp.lt.s32.totalorder %s28, 0
        %s270 = scalar_select %p269, %s28, 0
        %s271 = smul.addr %s268, 24
        %s272 = sadd.s32 %s270, %s271
        %s273 = smul.addr %s272, 8
        %s274 = scalar_lea.vmem %s0, %s273
        %p275 = pneg %p58
        %p276 = pneg %p55
        %p277 = pneg %p79
        %p278 = pneg %p76
        %p279 = pneg %p100
        %p280 = pneg %p97
        %p281 = pneg %p121
        %p282 = pneg %p118
        %p283 = pneg %p142
        %p284 = pneg %p139
        %p285 = pneg %p163
        %p286 = pneg %p160
        %p287 = pneg %p184
        %p288 = pneg %p181
        %p289 = pneg %p212
        %p290 = pneg %p209
        %s291 = sand.u32 %s199, 1
        %s292 = scalar_lea.sflag [#allocation4], %s291
        %s293 = sand.u32 %s199, 1
        %s294 = scalar_lea.vmem [#allocation3], %s293
        %p295 = scmp.lt.s32.totalorder %s27, 1
        %s296 = scalar_select %p295, %s27, 1
        %p297 = scmp.lt.s32.totalorder %s28, 0
        %s298 = scalar_select %p297, %s28, 0
        %s299 = smul.addr %s296, 24
        %s300 = sadd.s32 %s298, %s299
        %s301 = smul.addr %s300, 8
        %s302 = scalar_lea.vmem %s0, %s301
        %v304 = vld [vmem:[%s1] sm:$0xff]
        %v305 = vld [vmem:[%s1 + $0x8] sm:$0xff]
        %v306 = vld [vmem:[%s1 + $0x10] sm:$0xff]
        %v307 = vld [vmem:[%s1 + $0x18] sm:$0xff]
        %v308 = vld [vmem:[%s1 + $0x20] sm:$0xff]
        %v309 = vld [vmem:[%s1 + $0x28] sm:$0xff]
        %v310 = vld [vmem:[%s1 + $0x30] sm:$0xff]
        %v311 = vld [vmem:[%s1 + $0x38] sm:$0xff]
        %v312 = vld [vmem:[%s1 + $0x40] sm:$0xff]
        %v313 = vld [vmem:[%s1 + $0x48] sm:$0xff]
        %v314 = vld [vmem:[%s1 + $0x50] sm:$0xff]
        %v315 = vld [vmem:[%s1 + $0x58] sm:$0xff]
        %v316 = vld [vmem:[%s1 + $0x60] sm:$0xff]
        %v317 = vld [vmem:[%s1 + $0x68] sm:$0xff]
        %v318 = vld [vmem:[%s1 + $0x70] sm:$0xff]
        %v319 = vld [vmem:[%s1 + $0x78] sm:$0xff]
        %v320 = vld [vmem:[%s1 + $0x80] sm:$0xff]
        %v321 = vld [vmem:[%s1 + $0x88] sm:$0xff]
        %v322 = vld [vmem:[%s1 + $0x90] sm:$0xff]
        %v323 = vld [vmem:[%s1 + $0x98] sm:$0xff]
        %v324 = vld [vmem:[%s1 + $0xa0] sm:$0xff]
        %v325 = vld [vmem:[%s1 + $0xa8] sm:$0xff]
        %v326 = vld [vmem:[%s1 + $0xb0] sm:$0xff]
        %v327 = vld [vmem:[%s1 + $0xb8] sm:$0xff]
        %v328 = vld [vmem:[%s1 + $0xc0] sm:$0xff]
        %v329 = vld [vmem:[%s1 + $0xc8] sm:$0xff]
        %v330 = vld [vmem:[%s1 + $0xd0] sm:$0xff]
        %v331 = vld [vmem:[%s1 + $0xd8] sm:$0xff]
        %v332 = vld [vmem:[%s1 + $0xe0] sm:$0xff]
        %v333 = vld [vmem:[%s1 + $0xe8] sm:$0xff]
        %v334 = vld [vmem:[%s1 + $0xf0] sm:$0xff]
        %v335 = vld [vmem:[%s1 + $0xf8] sm:$0xff]
        %v336 = vld [vmem:[%s1 + $0x100] sm:$0xff]
        %v337 = vld [vmem:[%s1 + $0x108] sm:$0xff]
        %v338 = vld [vmem:[%s1 + $0x110] sm:$0xff]
        %v339 = vld [vmem:[%s1 + $0x118] sm:$0xff]
        %v340 = vld [vmem:[%s1 + $0x120] sm:$0xff]
        %v341 = vld [vmem:[%s1 + $0x128] sm:$0xff]
        %v342 = vld [vmem:[%s1 + $0x130] sm:$0xff]
        %v343 = vld [vmem:[%s1 + $0x138] sm:$0xff]
        %v344 = vld [vmem:[%s1 + $0x140] sm:$0xff]
        %v345 = vld [vmem:[%s1 + $0x148] sm:$0xff]
        %v346 = vld [vmem:[%s1 + $0x150] sm:$0xff]
        %v347 = vld [vmem:[%s1 + $0x158] sm:$0xff]
        %v348 = vld [vmem:[%s1 + $0x160] sm:$0xff]
        %v349 = vld [vmem:[%s1 + $0x168] sm:$0xff]
        %v350 = vld [vmem:[%s1 + $0x170] sm:$0xff]
        %v351 = vld [vmem:[%s1 + $0x178] sm:$0xff]
        %v352 = vld [vmem:[%s1 + $0x180] sm:$0xff]
        %v353 = vld [vmem:[%s1 + $0x188] sm:$0xff]
        %v354 = vld [vmem:[%s1 + $0x190] sm:$0xff]
        %v355 = vld [vmem:[%s1 + $0x198] sm:$0xff]
        %v356 = vld [vmem:[%s1 + $0x1a0] sm:$0xff]
        %v357 = vld [vmem:[%s1 + $0x1a8] sm:$0xff]
        %v358 = vld [vmem:[%s1 + $0x1b0] sm:$0xff]
        %v359 = vld [vmem:[%s1 + $0x1b8] sm:$0xff]
        %v360 = vld [vmem:[%s1 + $0x1c0] sm:$0xff]
        %v361 = vld [vmem:[%s1 + $0x1c8] sm:$0xff]
        %v362 = vld [vmem:[%s1 + $0x1d0] sm:$0xff]
        %v363 = vld [vmem:[%s1 + $0x1d8] sm:$0xff]
        %v364 = vld [vmem:[%s1 + $0x1e0] sm:$0xff]
        %v365 = vld [vmem:[%s1 + $0x1e8] sm:$0xff]
        %v366 = vld [vmem:[%s1 + $0x1f0] sm:$0xff]
        %v367 = vld [vmem:[%s1 + $0x1f8] sm:$0xff]
        %v368 = vld [vmem:[%s302] sm:$0xff]
        %v369 = vld [vmem:[%s302 + $0x8] sm:$0xff]
        %v370 = vld [vmem:[%s302 + $0x10] sm:$0xff]
        %v371 = vld [vmem:[%s302 + $0x18] sm:$0xff]
        %v372 = vld [vmem:[%s302 + $0x20] sm:$0xff]
        %v373 = vld [vmem:[%s302 + $0x28] sm:$0xff]
        %v374 = vld [vmem:[%s302 + $0x30] sm:$0xff]
        %v375 = vld [vmem:[%s302 + $0x38] sm:$0xff]
        %v376 = vld [vmem:[%s302 + $0x40] sm:$0xff]
        %v377 = vld [vmem:[%s302 + $0x48] sm:$0xff]
        %v378 = vld [vmem:[%s302 + $0x50] sm:$0xff]
        %v379 = vld [vmem:[%s302 + $0x58] sm:$0xff]
        %v380 = vld [vmem:[%s302 + $0x60] sm:$0xff]
        %v381 = vld [vmem:[%s302 + $0x68] sm:$0xff]
        %v382 = vld [vmem:[%s302 + $0x70] sm:$0xff]
        %v383 = vld [vmem:[%s302 + $0x78] sm:$0xff]
        %v384 = vld [vmem:[%s302 + $0x80] sm:$0xff]
        %v385 = vld [vmem:[%s302 + $0x88] sm:$0xff]
        %v386 = vld [vmem:[%s302 + $0x90] sm:$0xff]
        %v387 = vld [vmem:[%s302 + $0x98] sm:$0xff]
        %v388 = vld [vmem:[%s302 + $0xa0] sm:$0xff]
        %v389 = vld [vmem:[%s302 + $0xa8] sm:$0xff]
        %v390 = vld [vmem:[%s302 + $0xb0] sm:$0xff]
        %v391 = vld [vmem:[%s302 + $0xb8] sm:$0xff]
        %v392 = vld [vmem:[%s2] sm:$0xff]
        %v393 = vld [vmem:[%s2 + $0x8] sm:$0xff]
        %v394 = vld [vmem:[%s2 + $0x10] sm:$0xff]
        %v395 = vld [vmem:[%s2 + $0x18] sm:$0xff]
        %v396 = vld [vmem:[%s2 + $0x20] sm:$0xff]
        %v397 = vld [vmem:[%s2 + $0x28] sm:$0xff]
        %v398 = vld [vmem:[%s2 + $0x30] sm:$0xff]
        %v399 = vld [vmem:[%s2 + $0x38] sm:$0xff]
        %v400 = vld [vmem:[%s2 + $0x40] sm:$0xff]
        %v401 = vld [vmem:[%s2 + $0x48] sm:$0xff]
        %v402 = vld [vmem:[%s2 + $0x50] sm:$0xff]
        %v403 = vld [vmem:[%s2 + $0x58] sm:$0xff]
        %v404 = vld [vmem:[%s2 + $0x60] sm:$0xff]
        %v405 = vld [vmem:[%s2 + $0x68] sm:$0xff]
        %v406 = vld [vmem:[%s2 + $0x70] sm:$0xff]
        %v407 = vld [vmem:[%s2 + $0x78] sm:$0xff]
        %v408 = vld [vmem:[%s2 + $0x80] sm:$0xff]
        %v409 = vld [vmem:[%s2 + $0x88] sm:$0xff]
        %v410 = vld [vmem:[%s2 + $0x90] sm:$0xff]
        %v411 = vld [vmem:[%s2 + $0x98] sm:$0xff]
        %v412 = vld [vmem:[%s2 + $0xa0] sm:$0xff]
        %v413 = vld [vmem:[%s2 + $0xa8] sm:$0xff]
        %v414 = vld [vmem:[%s2 + $0xb0] sm:$0xff]
        %v415 = vld [vmem:[%s2 + $0xb8] sm:$0xff]
        %v416 = vld [vmem:[%s2 + $0xc0] sm:$0xff]
        %v417 = vld [vmem:[%s2 + $0xc8] sm:$0xff]
        %v418 = vld [vmem:[%s2 + $0xd0] sm:$0xff]
        %v419 = vld [vmem:[%s2 + $0xd8] sm:$0xff]
        %v420 = vld [vmem:[%s2 + $0xe0] sm:$0xff]
        %v421 = vld [vmem:[%s2 + $0xe8] sm:$0xff]
        %v422 = vld [vmem:[%s2 + $0xf0] sm:$0xff]
        %v423 = vld [vmem:[%s2 + $0xf8] sm:$0xff]
        %v424 = vld [vmem:[%s2 + $0x100] sm:$0xff]
        %v425 = vld [vmem:[%s2 + $0x108] sm:$0xff]
        %v426 = vld [vmem:[%s2 + $0x110] sm:$0xff]
        %v427 = vld [vmem:[%s2 + $0x118] sm:$0xff]
        %v428 = vld [vmem:[%s2 + $0x120] sm:$0xff]
        %v429 = vld [vmem:[%s2 + $0x128] sm:$0xff]
        %v430 = vld [vmem:[%s2 + $0x130] sm:$0xff]
        %v431 = vld [vmem:[%s2 + $0x138] sm:$0xff]
        %v432 = vld [vmem:[%s2 + $0x140] sm:$0xff]
        %v433 = vld [vmem:[%s2 + $0x148] sm:$0xff]
        %v434 = vld [vmem:[%s2 + $0x150] sm:$0xff]
        %v435 = vld [vmem:[%s2 + $0x158] sm:$0xff]
        %v436 = vld [vmem:[%s2 + $0x160] sm:$0xff]
        %v437 = vld [vmem:[%s2 + $0x168] sm:$0xff]
        %v438 = vld [vmem:[%s2 + $0x170] sm:$0xff]
        %v439 = vld [vmem:[%s2 + $0x178] sm:$0xff]
        %v440 = vld [vmem:[%s2 + $0x180] sm:$0xff]
        %v441 = vld [vmem:[%s2 + $0x188] sm:$0xff]
        %v442 = vld [vmem:[%s2 + $0x190] sm:$0xff]
        %v443 = vld [vmem:[%s2 + $0x198] sm:$0xff]
        %v444 = vld [vmem:[%s2 + $0x1a0] sm:$0xff]
        %v445 = vld [vmem:[%s2 + $0x1a8] sm:$0xff]
        %v446 = vld [vmem:[%s2 + $0x1b0] sm:$0xff]
        %v447 = vld [vmem:[%s2 + $0x1b8] sm:$0xff]
        %v448 = vld [vmem:[%s2 + $0x1c0] sm:$0xff]
        %v449 = vld [vmem:[%s2 + $0x1c8] sm:$0xff]
        %v450 = vld [vmem:[%s2 + $0x1d0] sm:$0xff]
        %v451 = vld [vmem:[%s2 + $0x1d8] sm:$0xff]
        %v452 = vld [vmem:[%s2 + $0x1e0] sm:$0xff]
        %v453 = vld [vmem:[%s2 + $0x1e8] sm:$0xff]
        %v454 = vld [vmem:[%s2 + $0x1f0] sm:$0xff]
        %v455 = vld [vmem:[%s2 + $0x1f8] sm:$0xff]
        %457 = vset.pattern.permute.xlu0 0
        %458 = vperm.xlu0 %457, %v392
        %v459 = vpop.permute.xlu0 %458
        %462 = vset.pattern.permute.xlu0 0
        %463 = vperm.xlu0 %462, %v393
        %v464 = vpop.permute.xlu0 %463
        %467 = vset.pattern.permute.xlu0 0
        %468 = vperm.xlu0 %467, %v394
        %v469 = vpop.permute.xlu0 %468
        %472 = vset.pattern.permute.xlu0 0
        %473 = vperm.xlu0 %472, %v395
        %v474 = vpop.permute.xlu0 %473
        %477 = vset.pattern.permute.xlu0 0
        %478 = vperm.xlu0 %477, %v396
        %v479 = vpop.permute.xlu0 %478
        %482 = vset.pattern.permute.xlu0 0
        %483 = vperm.xlu0 %482, %v397
        %v484 = vpop.permute.xlu0 %483
        %487 = vset.pattern.permute.xlu0 0
        %488 = vperm.xlu0 %487, %v398
        %v489 = vpop.permute.xlu0 %488
        %492 = vset.pattern.permute.xlu0 0
        %493 = vperm.xlu0 %492, %v399
        %v494 = vpop.permute.xlu0 %493
        %497 = vset.pattern.permute.xlu0 0
        %498 = vperm.xlu0 %497, %v400
        %v499 = vpop.permute.xlu0 %498
        %502 = vset.pattern.permute.xlu0 0
        %503 = vperm.xlu0 %502, %v401
        %v504 = vpop.permute.xlu0 %503
        %507 = vset.pattern.permute.xlu0 0
        %508 = vperm.xlu0 %507, %v402
        %v509 = vpop.permute.xlu0 %508
        %512 = vset.pattern.permute.xlu0 0
        %513 = vperm.xlu0 %512, %v403
        %v514 = vpop.permute.xlu0 %513
        %517 = vset.pattern.permute.xlu0 0
        %518 = vperm.xlu0 %517, %v404
        %v519 = vpop.permute.xlu0 %518
        %522 = vset.pattern.permute.xlu0 0
        %523 = vperm.xlu0 %522, %v405
        %v524 = vpop.permute.xlu0 %523
        %527 = vset.pattern.permute.xlu0 0
        %528 = vperm.xlu0 %527, %v406
        %v529 = vpop.permute.xlu0 %528
        %532 = vset.pattern.permute.xlu0 0
        %533 = vperm.xlu0 %532, %v407
        %v534 = vpop.permute.xlu0 %533
        %537 = vset.pattern.permute.xlu0 0
        %538 = vperm.xlu0 %537, %v408
        %v539 = vpop.permute.xlu0 %538
        %542 = vset.pattern.permute.xlu0 0
        %543 = vperm.xlu0 %542, %v409
        %v544 = vpop.permute.xlu0 %543
        %547 = vset.pattern.permute.xlu0 0
        %548 = vperm.xlu0 %547, %v410
        %v549 = vpop.permute.xlu0 %548
        %552 = vset.pattern.permute.xlu0 0
        %553 = vperm.xlu0 %552, %v411
        %v554 = vpop.permute.xlu0 %553
        %557 = vset.pattern.permute.xlu0 0
        %558 = vperm.xlu0 %557, %v412
        %v559 = vpop.permute.xlu0 %558
        %562 = vset.pattern.permute.xlu0 0
        %563 = vperm.xlu0 %562, %v413
        %v564 = vpop.permute.xlu0 %563
        %567 = vset.pattern.permute.xlu0 0
        %568 = vperm.xlu0 %567, %v414
        %v569 = vpop.permute.xlu0 %568
        %572 = vset.pattern.permute.xlu0 0
        %573 = vperm.xlu0 %572, %v415
        %v574 = vpop.permute.xlu0 %573
        %577 = vset.pattern.permute.xlu0 0
        %578 = vperm.xlu0 %577, %v416
        %v579 = vpop.permute.xlu0 %578
        %582 = vset.pattern.permute.xlu0 0
        %583 = vperm.xlu0 %582, %v417
        %v584 = vpop.permute.xlu0 %583
        %587 = vset.pattern.permute.xlu0 0
        %588 = vperm.xlu0 %587, %v418
        %v589 = vpop.permute.xlu0 %588
        %592 = vset.pattern.permute.xlu0 0
        %593 = vperm.xlu0 %592, %v419
        %v594 = vpop.permute.xlu0 %593
        %597 = vset.pattern.permute.xlu0 0
        %598 = vperm.xlu0 %597, %v420
        %v599 = vpop.permute.xlu0 %598
        %602 = vset.pattern.permute.xlu0 0
        %603 = vperm.xlu0 %602, %v421
        %v604 = vpop.permute.xlu0 %603
        %607 = vset.pattern.permute.xlu0 0
        %608 = vperm.xlu0 %607, %v422
        %v609 = vpop.permute.xlu0 %608
        %612 = vset.pattern.permute.xlu0 0
        %613 = vperm.xlu0 %612, %v423
        %v614 = vpop.permute.xlu0 %613
        %617 = vset.pattern.permute.xlu0 0
        %618 = vperm.xlu0 %617, %v424
        %v619 = vpop.permute.xlu0 %618
        %622 = vset.pattern.permute.xlu0 0
        %623 = vperm.xlu0 %622, %v425
        %v624 = vpop.permute.xlu0 %623
        %627 = vset.pattern.permute.xlu0 0
        %628 = vperm.xlu0 %627, %v426
        %v629 = vpop.permute.xlu0 %628
        %632 = vset.pattern.permute.xlu0 0
        %633 = vperm.xlu0 %632, %v427
        %v634 = vpop.permute.xlu0 %633
        %637 = vset.pattern.permute.xlu0 0
        %638 = vperm.xlu0 %637, %v428
        %v639 = vpop.permute.xlu0 %638
        %642 = vset.pattern.permute.xlu0 0
        %643 = vperm.xlu0 %642, %v429
        %v644 = vpop.permute.xlu0 %643
        %647 = vset.pattern.permute.xlu0 0
        %648 = vperm.xlu0 %647, %v430
        %v649 = vpop.permute.xlu0 %648
        %652 = vset.pattern.permute.xlu0 0
        %653 = vperm.xlu0 %652, %v431
        %v654 = vpop.permute.xlu0 %653
        %657 = vset.pattern.permute.xlu0 0
        %658 = vperm.xlu0 %657, %v432
        %v659 = vpop.permute.xlu0 %658
        %662 = vset.pattern.permute.xlu0 0
        %663 = vperm.xlu0 %662, %v433
        %v664 = vpop.permute.xlu0 %663
        %667 = vset.pattern.permute.xlu0 0
        %668 = vperm.xlu0 %667, %v434
        %v669 = vpop.permute.xlu0 %668
        %672 = vset.pattern.permute.xlu0 0
        %673 = vperm.xlu0 %672, %v435
        %v674 = vpop.permute.xlu0 %673
        %677 = vset.pattern.permute.xlu0 0
        %678 = vperm.xlu0 %677, %v436
        %v679 = vpop.permute.xlu0 %678
        %682 = vset.pattern.permute.xlu0 0
        %683 = vperm.xlu0 %682, %v437
        %v684 = vpop.permute.xlu0 %683
        %687 = vset.pattern.permute.xlu0 0
        %688 = vperm.xlu0 %687, %v438
        %v689 = vpop.permute.xlu0 %688
        %692 = vset.pattern.permute.xlu0 0
        %693 = vperm.xlu0 %692, %v439
        %v694 = vpop.permute.xlu0 %693
        %697 = vset.pattern.permute.xlu0 0
        %698 = vperm.xlu0 %697, %v440
        %v699 = vpop.permute.xlu0 %698
        %702 = vset.pattern.permute.xlu0 0
        %703 = vperm.xlu0 %702, %v441
        %v704 = vpop.permute.xlu0 %703
        %707 = vset.pattern.permute.xlu0 0
        %708 = vperm.xlu0 %707, %v442
        %v709 = vpop.permute.xlu0 %708
        %712 = vset.pattern.permute.xlu0 0
        %713 = vperm.xlu0 %712, %v443
        %v714 = vpop.permute.xlu0 %713
        %717 = vset.pattern.permute.xlu0 0
        %718 = vperm.xlu0 %717, %v444
        %v719 = vpop.permute.xlu0 %718
        %722 = vset.pattern.permute.xlu0 0
        %723 = vperm.xlu0 %722, %v445
        %v724 = vpop.permute.xlu0 %723
        %727 = vset.pattern.permute.xlu0 0
        %728 = vperm.xlu0 %727, %v446
        %v729 = vpop.permute.xlu0 %728
        %732 = vset.pattern.permute.xlu0 0
        %733 = vperm.xlu0 %732, %v447
        %v734 = vpop.permute.xlu0 %733
        %737 = vset.pattern.permute.xlu0 0
        %738 = vperm.xlu0 %737, %v448
        %v739 = vpop.permute.xlu0 %738
        %742 = vset.pattern.permute.xlu0 0
        %743 = vperm.xlu0 %742, %v449
        %v744 = vpop.permute.xlu0 %743
        %747 = vset.pattern.permute.xlu0 0
        %748 = vperm.xlu0 %747, %v450
        %v749 = vpop.permute.xlu0 %748
        %752 = vset.pattern.permute.xlu0 0
        %753 = vperm.xlu0 %752, %v451
        %v754 = vpop.permute.xlu0 %753
        %757 = vset.pattern.permute.xlu0 0
        %758 = vperm.xlu0 %757, %v452
        %v759 = vpop.permute.xlu0 %758
        %762 = vset.pattern.permute.xlu0 0
        %763 = vperm.xlu0 %762, %v453
        %v764 = vpop.permute.xlu0 %763
        %767 = vset.pattern.permute.xlu0 0
        %768 = vperm.xlu0 %767, %v454
        %v769 = vpop.permute.xlu0 %768
        %772 = vset.pattern.permute.xlu0 0
        %773 = vperm.xlu0 %772, %v455
        %v774 = vpop.permute.xlu0 %773
        %v840 = vunpack.c.l.b16 %v304
        %v841 = vunpack.c.h.b16 %v304
        %v842 = vunpack.c.l.b16 %v305
        %v843 = vunpack.c.h.b16 %v305
        %v844 = vunpack.c.l.b16 %v306
        %v845 = vunpack.c.h.b16 %v306
        %v846 = vunpack.c.l.b16 %v307
        %v847 = vunpack.c.h.b16 %v307
        %v848 = vunpack.c.l.b16 %v308
        %v849 = vunpack.c.h.b16 %v308
        %v850 = vunpack.c.l.b16 %v309
        %v851 = vunpack.c.h.b16 %v309
        %v852 = vunpack.c.l.b16 %v310
        %v853 = vunpack.c.h.b16 %v310
        %v854 = vunpack.c.l.b16 %v311
        %v855 = vunpack.c.h.b16 %v311
        %v856 = vunpack.c.l.b16 %v312
        %v857 = vunpack.c.h.b16 %v312
        %v858 = vunpack.c.l.b16 %v313
        %v859 = vunpack.c.h.b16 %v313
        %v860 = vunpack.c.l.b16 %v314
        %v861 = vunpack.c.h.b16 %v314
        %v862 = vunpack.c.l.b16 %v315
        %v863 = vunpack.c.h.b16 %v315
        %v864 = vunpack.c.l.b16 %v316
        %v865 = vunpack.c.h.b16 %v316
        %v866 = vunpack.c.l.b16 %v317
        %v867 = vunpack.c.h.b16 %v317
        %v868 = vunpack.c.l.b16 %v318
        %v869 = vunpack.c.h.b16 %v318
        %v870 = vunpack.c.l.b16 %v319
        %v871 = vunpack.c.h.b16 %v319
        %v872 = vunpack.c.l.b16 %v320
        %v873 = vunpack.c.h.b16 %v320
        %v874 = vunpack.c.l.b16 %v321
        %v875 = vunpack.c.h.b16 %v321
        %v876 = vunpack.c.l.b16 %v322
        %v877 = vunpack.c.h.b16 %v322
        %v878 = vunpack.c.l.b16 %v323
        %v879 = vunpack.c.h.b16 %v323
        %v880 = vunpack.c.l.b16 %v324
        %v881 = vunpack.c.h.b16 %v324
        %v882 = vunpack.c.l.b16 %v325
        %v883 = vunpack.c.h.b16 %v325
        %v884 = vunpack.c.l.b16 %v326
        %v885 = vunpack.c.h.b16 %v326
        %v886 = vunpack.c.l.b16 %v327
        %v887 = vunpack.c.h.b16 %v327
        %v888 = vunpack.c.l.b16 %v328
        %v889 = vunpack.c.h.b16 %v328
        %v890 = vunpack.c.l.b16 %v329
        %v891 = vunpack.c.h.b16 %v329
        %v892 = vunpack.c.l.b16 %v330
        %v893 = vunpack.c.h.b16 %v330
        %v894 = vunpack.c.l.b16 %v331
        %v895 = vunpack.c.h.b16 %v331
        %v896 = vunpack.c.l.b16 %v332
        %v897 = vunpack.c.h.b16 %v332
        %v898 = vunpack.c.l.b16 %v333
        %v899 = vunpack.c.h.b16 %v333
        %v900 = vunpack.c.l.b16 %v334
        %v901 = vunpack.c.h.b16 %v334
        %v902 = vunpack.c.l.b16 %v335
        %v903 = vunpack.c.h.b16 %v335
        %v904 = vunpack.c.l.b16 %v336
        %v905 = vunpack.c.h.b16 %v336
        %v906 = vunpack.c.l.b16 %v337
        %v907 = vunpack.c.h.b16 %v337
        %v908 = vunpack.c.l.b16 %v338
        %v909 = vunpack.c.h.b16 %v338
        %v910 = vunpack.c.l.b16 %v339
        %v911 = vunpack.c.h.b16 %v339
        %v912 = vunpack.c.l.b16 %v340
        %v913 = vunpack.c.h.b16 %v340
        %v914 = vunpack.c.l.b16 %v341
        %v915 = vunpack.c.h.b16 %v341
        %v916 = vunpack.c.l.b16 %v342
        %v917 = vunpack.c.h.b16 %v342
        %v918 = vunpack.c.l.b16 %v343
        %v919 = vunpack.c.h.b16 %v343
        %v920 = vunpack.c.l.b16 %v344
        %v921 = vunpack.c.h.b16 %v344
        %v922 = vunpack.c.l.b16 %v345
        %v923 = vunpack.c.h.b16 %v345
        %v924 = vunpack.c.l.b16 %v346
        %v925 = vunpack.c.h.b16 %v346
        %v926 = vunpack.c.l.b16 %v347
        %v927 = vunpack.c.h.b16 %v347
        %v928 = vunpack.c.l.b16 %v348
        %v929 = vunpack.c.h.b16 %v348
        %v930 = vunpack.c.l.b16 %v349
        %v931 = vunpack.c.h.b16 %v349
        %v932 = vunpack.c.l.b16 %v350
        %v933 = vunpack.c.h.b16 %v350
        %v934 = vunpack.c.l.b16 %v351
        %v935 = vunpack.c.h.b16 %v351
        %v936 = vunpack.c.l.b16 %v352
        %v937 = vunpack.c.h.b16 %v352
        %v938 = vunpack.c.l.b16 %v353
        %v939 = vunpack.c.h.b16 %v353
        %v940 = vunpack.c.l.b16 %v354
        %v941 = vunpack.c.h.b16 %v354
        %v942 = vunpack.c.l.b16 %v355
        %v943 = vunpack.c.h.b16 %v355
        %v944 = vunpack.c.l.b16 %v356
        %v945 = vunpack.c.h.b16 %v356
        %v946 = vunpack.c.l.b16 %v357
        %v947 = vunpack.c.h.b16 %v357
        %v948 = vunpack.c.l.b16 %v358
        %v949 = vunpack.c.h.b16 %v358
        %v950 = vunpack.c.l.b16 %v359
        %v951 = vunpack.c.h.b16 %v359
        %v952 = vunpack.c.l.b16 %v360
        %v953 = vunpack.c.h.b16 %v360
        %v954 = vunpack.c.l.b16 %v361
        %v955 = vunpack.c.h.b16 %v361
        %v956 = vunpack.c.l.b16 %v362
        %v957 = vunpack.c.h.b16 %v362
        %v958 = vunpack.c.l.b16 %v363
        %v959 = vunpack.c.h.b16 %v363
        %v960 = vunpack.c.l.b16 %v364
        %v961 = vunpack.c.h.b16 %v364
        %v962 = vunpack.c.l.b16 %v365
        %v963 = vunpack.c.h.b16 %v365
        %v964 = vunpack.c.l.b16 %v366
        %v965 = vunpack.c.h.b16 %v366
        %v966 = vunpack.c.l.b16 %v367
        %v967 = vunpack.c.h.b16 %v367
        %v968 = vpack.c.b16 %v842, %v840
        %v969 = vpack.c.b16 %v843, %v841
        %v970 = vpack.c.b16 %v846, %v844
        %v971 = vpack.c.b16 %v847, %v845
        %v972 = vpack.c.b16 %v850, %v848
        %v973 = vpack.c.b16 %v851, %v849
        %v974 = vpack.c.b16 %v854, %v852
        %v975 = vpack.c.b16 %v855, %v853
        %v976 = vpack.c.b16 %v858, %v856
        %v977 = vpack.c.b16 %v859, %v857
        %v978 = vpack.c.b16 %v862, %v860
        %v979 = vpack.c.b16 %v863, %v861
        %v980 = vpack.c.b16 %v866, %v864
        %v981 = vpack.c.b16 %v867, %v865
        %v982 = vpack.c.b16 %v870, %v868
        %v983 = vpack.c.b16 %v871, %v869
        %v984 = vpack.c.b16 %v874, %v872
        %v985 = vpack.c.b16 %v875, %v873
        %v986 = vpack.c.b16 %v878, %v876
        %v987 = vpack.c.b16 %v879, %v877
        %v988 = vpack.c.b16 %v882, %v880
        %v989 = vpack.c.b16 %v883, %v881
        %v990 = vpack.c.b16 %v886, %v884
        %v991 = vpack.c.b16 %v887, %v885
        %v992 = vpack.c.b16 %v890, %v888
        %v993 = vpack.c.b16 %v891, %v889
        %v994 = vpack.c.b16 %v894, %v892
        %v995 = vpack.c.b16 %v895, %v893
        %v996 = vpack.c.b16 %v898, %v896
        %v997 = vpack.c.b16 %v899, %v897
        %v998 = vpack.c.b16 %v902, %v900
        %v999 = vpack.c.b16 %v903, %v901
        %v1000 = vpack.c.b16 %v906, %v904
        %v1001 = vpack.c.b16 %v907, %v905
        %v1002 = vpack.c.b16 %v910, %v908
        %v1003 = vpack.c.b16 %v911, %v909
        %v1004 = vpack.c.b16 %v914, %v912
        %v1005 = vpack.c.b16 %v915, %v913
        %v1006 = vpack.c.b16 %v918, %v916
        %v1007 = vpack.c.b16 %v919, %v917
        %v1008 = vpack.c.b16 %v922, %v920
        %v1009 = vpack.c.b16 %v923, %v921
        %v1010 = vpack.c.b16 %v926, %v924
        %v1011 = vpack.c.b16 %v927, %v925
        %v1012 = vpack.c.b16 %v930, %v928
        %v1013 = vpack.c.b16 %v931, %v929
        %v1014 = vpack.c.b16 %v934, %v932
        %v1015 = vpack.c.b16 %v935, %v933
        %v1016 = vpack.c.b16 %v938, %v936
        %v1017 = vpack.c.b16 %v939, %v937
        %v1018 = vpack.c.b16 %v942, %v940
        %v1019 = vpack.c.b16 %v943, %v941
        %v1020 = vpack.c.b16 %v946, %v944
        %v1021 = vpack.c.b16 %v947, %v945
        %v1022 = vpack.c.b16 %v950, %v948
        %v1023 = vpack.c.b16 %v951, %v949
        %v1024 = vpack.c.b16 %v954, %v952
        %v1025 = vpack.c.b16 %v955, %v953
        %v1026 = vpack.c.b16 %v958, %v956
        %v1027 = vpack.c.b16 %v959, %v957
        %v1028 = vpack.c.b16 %v962, %v960
        %v1029 = vpack.c.b16 %v963, %v961
        %v1030 = vpack.c.b16 %v966, %v964
        %v1031 = vpack.c.b16 %v967, %v965
        %vm1064 = vcmask 523264
        %v1066 = vsel %vm1064, %v969, 0
        %v1069 = vsel %vm1064, %v971, 0
        %v1072 = vsel %vm1064, %v973, 0
        %v1075 = vsel %vm1064, %v975, 0
        %v1078 = vsel %vm1064, %v977, 0
        %v1081 = vsel %vm1064, %v979, 0
        %v1084 = vsel %vm1064, %v981, 0
        %v1087 = vsel %vm1064, %v983, 0
        %v1090 = vsel %vm1064, %v985, 0
        %v1093 = vsel %vm1064, %v987, 0
        %v1096 = vsel %vm1064, %v989, 0
        %v1099 = vsel %vm1064, %v991, 0
        %v1102 = vsel %vm1064, %v993, 0
        %v1105 = vsel %vm1064, %v995, 0
        %v1108 = vsel %vm1064, %v997, 0
        %v1111 = vsel %vm1064, %v999, 0
        %v1114 = vsel %vm1064, %v1001, 0
        %v1117 = vsel %vm1064, %v1003, 0
        %v1120 = vsel %vm1064, %v1005, 0
        %v1123 = vsel %vm1064, %v1007, 0
        %v1126 = vsel %vm1064, %v1009, 0
        %v1129 = vsel %vm1064, %v1011, 0
        %v1132 = vsel %vm1064, %v1013, 0
        %v1135 = vsel %vm1064, %v1015, 0
        %v1138 = vsel %vm1064, %v1017, 0
        %v1141 = vsel %vm1064, %v1019, 0
        %v1144 = vsel %vm1064, %v1021, 0
        %v1147 = vsel %vm1064, %v1023, 0
        %v1150 = vsel %vm1064, %v1025, 0
        %v1153 = vsel %vm1064, %v1027, 0
        %v1156 = vsel %vm1064, %v1029, 0
        %v1159 = vsel %vm1064, %v1031, 0
        %1161 = vmatprep.subr.mxu0 0.0
        %1162 = vmatpush1.msra.mxu0 %v368
        %1163 = vmatprep.subr.mxu0 0.0
        %1164 = vmatpush1.msra.mxu0 %v369
        %1165 = vmatprep.subr.mxu0 0.0
        %1166 = vmatpush1.msra.mxu0 %v370
        %1167 = vmatprep.subr.mxu0 0.0
        %1168 = vmatpush1.msra.mxu0 %v371
        %1169 = vmatprep.subr.mxu0 0.0
        %1170 = vmatpush1.msra.mxu0 %v372
        %1171 = vmatprep.subr.mxu0 0.0
        %1172 = vmatpush1.msra.mxu0 %v373
        %1173 = vmatprep.subr.mxu0 0.0
        %1174 = vmatpush1.msra.mxu0 %v374
        %1175 = vmatprep.subr.mxu0 0.0
        %1176 = vmatpush1.msra.mxu0 %v375
        %1177 = vmatprep.subr.mxu0 0.0
        %1178 = vmatpush1.msra.mxu0 %v376
        %1179 = vmatprep.subr.mxu0 0.0
        %1180 = vmatpush1.msra.mxu0 %v377
        %1181 = vmatprep.subr.mxu0 0.0
        %1182 = vmatpush1.msra.mxu0 %v378
        %1183 = vmatprep.subr.mxu0 0.0
        %1184 = vmatpush1.msra.mxu0 %v379
        %1185 = vmatprep.subr.mxu0 0.0
        %1186 = vmatpush1.msra.mxu0 %v380
        %1187 = vmatprep.subr.mxu0 0.0
        %1188 = vmatpush1.msra.mxu0 %v381
        %1189 = vmatprep.subr.mxu0 0.0
        %1190 = vmatpush1.msra.mxu0 %v382
        %1191 = vmatprep.subr.mxu0 0.0
        %1192 = vmatpush1.msra.mxu0 %v383
        %1193 = vmatprep.subr.mxu0 0.0
        %1194 = vmatpush1.msra.mxu0 %v384
        %1195 = vmatprep.subr.mxu0 0.0
        %1196 = vmatpush1.msra.mxu0 %v385
        %1197 = vmatprep.subr.mxu0 0.0
        %1198 = vmatpush1.msra.mxu0 %v386
        %1199 = vmatprep.subr.mxu0 0.0
        %1200 = vmatpush1.msra.mxu0 %v387
        %1201 = vmatprep.subr.mxu0 0.0
        %1202 = vmatpush1.msra.mxu0 %v388
        %1203 = vmatprep.subr.mxu0 0.0
        %1204 = vmatpush1.msra.mxu0 %v389
        %1205 = vmatprep.subr.mxu0 0.0
        %1206 = vmatpush1.msra.mxu0 %v390
        %1207 = vmatprep.subr.mxu0 0.0
        %1208 = vmatpush1.msra.mxu0 %v391
        %1209 = vmatprep.subr.mxu0 0.0
        %1210 = vmatpush1.msra.mxu0 0.0
        %1211 = vmatprep.subr.mxu0 0.0
        %1212 = vmatpush1.msra.mxu0 0.0
        %1213 = vmatprep.subr.mxu0 0.0
        %1214 = vmatpush1.msra.mxu0 0.0
        %1215 = vmatprep.subr.mxu0 0.0
        %1216 = vmatpush1.msra.mxu0 0.0
        %1217 = vmatprep.subr.mxu0 0.0
        %1218 = vmatpush1.msra.mxu0 0.0
        %1219 = vmatprep.subr.mxu0 0.0
        %1220 = vmatpush1.msra.mxu0 0.0
        %1221 = vmatprep.subr.mxu0 0.0
        %1222 = vmatpush1.msra.mxu0 0.0
        %1223 = vmatprep.subr.mxu0 0.0
        %1224 = vmatpush1.msra.mxu0 0.0
        %1225 = vmatprep.mubr.bf16.mxu0 %v1066
        %1226 = vmatmul.mubr.bf16.gmra.mrb[0].mxu0 %v968
        %v1227 = vpop.f32.mrb[0].mxu0
        %v1228 = vadd.f32 %v459, %v1227
        %v1229 = vpop.f32.mrb[0].mxu0
        %v1230 = vpop.f32.mrb[0].mxu0
        %v1231 = vadd.f32 %v464, %v1230
        %v1232 = vpop.f32.mrb[0].mxu0
        %1233 = vmatprep.mubr.bf16.mxu0 %v1069
        %1234 = vmatmul.mubr.bf16.gmra.mrb[0].mxu0 %v970
        %v1235 = vpop.f32.mrb[0].mxu0
        %v1236 = vadd.f32 %v469, %v1235
        %v1237 = vpop.f32.mrb[0].mxu0
        %v1238 = vpop.f32.mrb[0].mxu0
        %v1239 = vadd.f32 %v474, %v1238
        %v1240 = vpop.f32.mrb[0].mxu0
        %1241 = vmatprep.mubr.bf16.mxu0 %v1072
        %1242 = vmatmul.mubr.bf16.gmra.mrb[0].mxu0 %v972
        %v1243 = vpop.f32.mrb[0].mxu0
        %v1244 = vadd.f32 %v479, %v1243
        %v1245 = vpop.f32.mrb[0].mxu0
        %v1246 = vpop.f32.mrb[0].mxu0
        %v1247 = vadd.f32 %v484, %v1246
        %v1248 = vpop.f32.mrb[0].mxu0
        %1249 = vmatprep.mubr.bf16.mxu0 %v1075
        %1250 = vmatmul.mubr.bf16.gmra.mrb[0].mxu0 %v974
        %v1251 = vpop.f32.mrb[0].mxu0
        %v1252 = vadd.f32 %v489, %v1251
        %v1253 = vpop.f32.mrb[0].mxu0
        %v1254 = vpop.f32.mrb[0].mxu0
        %v1255 = vadd.f32 %v494, %v1254
        %v1256 = vpop.f32.mrb[0].mxu0
        %1257 = vmatprep.mubr.bf16.mxu0 %v1078
        %1258 = vmatmul.mubr.bf16.gmra.mrb[0].mxu0 %v976
        %v1259 = vpop.f32.mrb[0].mxu0
        %v1260 = vadd.f32 %v499, %v1259
        %v1261 = vpop.f32.mrb[0].mxu0
        %v1262 = vpop.f32.mrb[0].mxu0
        %v1263 = vadd.f32 %v504, %v1262
        %v1264 = vpop.f32.mrb[0].mxu0
        %1265 = vmatprep.mubr.bf16.mxu0 %v1081
        %1266 = vmatmul.mubr.bf16.gmra.mrb[0].mxu0 %v978
        %v1267 = vpop.f32.mrb[0].mxu0
        %v1268 = vadd.f32 %v509, %v1267
        %v1269 = vpop.f32.mrb[0].mxu0
        %v1270 = vpop.f32.mrb[0].mxu0
        %v1271 = vadd.f32 %v514, %v1270
        %v1272 = vpop.f32.mrb[0].mxu0
        %1273 = vmatprep.mubr.bf16.mxu0 %v1084
        %1274 = vmatmul.mubr.bf16.gmra.mrb[0].mxu0 %v980
        %v1275 = vpop.f32.mrb[0].mxu0
        %v1276 = vadd.f32 %v519, %v1275
        %v1277 = vpop.f32.mrb[0].mxu0
        %v1278 = vpop.f32.mrb[0].mxu0
        %v1279 = vadd.f32 %v524, %v1278
        %v1280 = vpop.f32.mrb[0].mxu0
        %1281 = vmatprep.mubr.bf16.mxu0 %v1087
        %1282 = vmatmul.mubr.bf16.gmra.mrb[0].mxu0 %v982
        %v1283 = vpop.f32.mrb[0].mxu0
        %v1284 = vadd.f32 %v529, %v1283
        %v1285 = vpop.f32.mrb[0].mxu0
        %v1286 = vpop.f32.mrb[0].mxu0
        %v1287 = vadd.f32 %v534, %v1286
        %v1288 = vpop.f32.mrb[0].mxu0
        %1289 = vmatprep.mubr.bf16.mxu0 %v1090
        %1290 = vmatmul.mubr.bf16.gmra.mrb[0].mxu0 %v984
        %v1291 = vpop.f32.mrb[0].mxu0
        %v1292 = vadd.f32 %v539, %v1291
        %v1293 = vpop.f32.mrb[0].mxu0
        %v1294 = vpop.f32.mrb[0].mxu0
        %v1295 = vadd.f32 %v544, %v1294
        %v1296 = vpop.f32.mrb[0].mxu0
        %1297 = vmatprep.mubr.bf16.mxu0 %v1093
        %1298 = vmatmul.mubr.bf16.gmra.mrb[0].mxu0 %v986
        %v1299 = vpop.f32.mrb[0].mxu0
        %v1300 = vadd.f32 %v549, %v1299
        %v1301 = vpop.f32.mrb[0].mxu0
        %v1302 = vpop.f32.mrb[0].mxu0
        %v1303 = vadd.f32 %v554, %v1302
        %v1304 = vpop.f32.mrb[0].mxu0
        %1305 = vmatprep.mubr.bf16.mxu0 %v1096
        %1306 = vmatmul.mubr.bf16.gmra.mrb[0].mxu0 %v988
        %v1307 = vpop.f32.mrb[0].mxu0
        %v1308 = vadd.f32 %v559, %v1307
        %v1309 = vpop.f32.mrb[0].mxu0
        %v1310 = vpop.f32.mrb[0].mxu0
        %v1311 = vadd.f32 %v564, %v1310
        %v1312 = vpop.f32.mrb[0].mxu0
        %1313 = vmatprep.mubr.bf16.mxu0 %v1099
        %1314 = vmatmul.mubr.bf16.gmra.mrb[0].mxu0 %v990
        %v1315 = vpop.f32.mrb[0].mxu0
        %v1316 = vadd.f32 %v569, %v1315
        %v1317 = vpop.f32.mrb[0].mxu0
        %v1318 = vpop.f32.mrb[0].mxu0
        %v1319 = vadd.f32 %v574, %v1318
        %v1320 = vpop.f32.mrb[0].mxu0
        %1321 = vmatprep.mubr.bf16.mxu0 %v1102
        %1322 = vmatmul.mubr.bf16.gmra.mrb[0].mxu0 %v992
        %v1323 = vpop.f32.mrb[0].mxu0
        %v1324 = vadd.f32 %v579, %v1323
        %v1325 = vpop.f32.mrb[0].mxu0
        %v1326 = vpop.f32.mrb[0].mxu0
        %v1327 = vadd.f32 %v584, %v1326
        %v1328 = vpop.f32.mrb[0].mxu0
        %1329 = vmatprep.mubr.bf16.mxu0 %v1105
        %1330 = vmatmul.mubr.bf16.gmra.mrb[0].mxu0 %v994
        %v1331 = vpop.f32.mrb[0].mxu0
        %v1332 = vadd.f32 %v589, %v1331
        %v1333 = vpop.f32.mrb[0].mxu0
        %v1334 = vpop.f32.mrb[0].mxu0
        %v1335 = vadd.f32 %v594, %v1334
        %v1336 = vpop.f32.mrb[0].mxu0
        %1337 = vmatprep.mubr.bf16.mxu0 %v1108
        %1338 = vmatmul.mubr.bf16.gmra.mrb[0].mxu0 %v996
        %v1339 = vpop.f32.mrb[0].mxu0
        %v1340 = vadd.f32 %v599, %v1339
        %v1341 = vpop.f32.mrb[0].mxu0
        %v1342 = vpop.f32.mrb[0].mxu0
        %v1343 = vadd.f32 %v604, %v1342
        %v1344 = vpop.f32.mrb[0].mxu0
        %1345 = vmatprep.mubr.bf16.mxu0 %v1111
        %1346 = vmatmul.mubr.bf16.gmra.mrb[0].mxu0 %v998
        %v1347 = vpop.f32.mrb[0].mxu0
        %v1348 = vadd.f32 %v609, %v1347
        %v1349 = vpop.f32.mrb[0].mxu0
        %v1350 = vpop.f32.mrb[0].mxu0
        %v1351 = vadd.f32 %v614, %v1350
        %v1352 = vpop.f32.mrb[0].mxu0
        %1353 = vmatprep.mubr.bf16.mxu0 %v1114
        %1354 = vmatmul.mubr.bf16.gmra.mrb[0].mxu0 %v1000
        %v1355 = vpop.f32.mrb[0].mxu0
        %v1356 = vadd.f32 %v619, %v1355
        %v1357 = vpop.f32.mrb[0].mxu0
        %v1358 = vpop.f32.mrb[0].mxu0
        %v1359 = vadd.f32 %v624, %v1358
        %v1360 = vpop.f32.mrb[0].mxu0
        %1361 = vmatprep.mubr.bf16.mxu0 %v1117
        %1362 = vmatmul.mubr.bf16.gmra.mrb[0].mxu0 %v1002
        %v1363 = vpop.f32.mrb[0].mxu0
        %v1364 = vadd.f32 %v629, %v1363
        %v1365 = vpop.f32.mrb[0].mxu0
        %v1366 = vpop.f32.mrb[0].mxu0
        %v1367 = vadd.f32 %v634, %v1366
        %v1368 = vpop.f32.mrb[0].mxu0
        %1369 = vmatprep.mubr.bf16.mxu0 %v1120
        %1370 = vmatmul.mubr.bf16.gmra.mrb[0].mxu0 %v1004
        %v1371 = vpop.f32.mrb[0].mxu0
        %v1372 = vadd.f32 %v639, %v1371
        %v1373 = vpop.f32.mrb[0].mxu0
        %v1374 = vpop.f32.mrb[0].mxu0
        %v1375 = vadd.f32 %v644, %v1374
        %v1376 = vpop.f32.mrb[0].mxu0
        %1377 = vmatprep.mubr.bf16.mxu0 %v1123
        %1378 = vmatmul.mubr.bf16.gmra.mrb[0].mxu0 %v1006
        %v1379 = vpop.f32.mrb[0].mxu0
        %v1380 = vadd.f32 %v649, %v1379
        %v1381 = vpop.f32.mrb[0].mxu0
        %v1382 = vpop.f32.mrb[0].mxu0
        %v1383 = vadd.f32 %v654, %v1382
        %v1384 = vpop.f32.mrb[0].mxu0
        %1385 = vmatprep.mubr.bf16.mxu0 %v1126
        %1386 = vmatmul.mubr.bf16.gmra.mrb[0].mxu0 %v1008
        %v1387 = vpop.f32.mrb[0].mxu0
        %v1388 = vadd.f32 %v659, %v1387
        %v1389 = vpop.f32.mrb[0].mxu0
        %v1390 = vpop.f32.mrb[0].mxu0
        %v1391 = vadd.f32 %v664, %v1390
        %v1392 = vpop.f32.mrb[0].mxu0
        %1393 = vmatprep.mubr.bf16.mxu0 %v1129
        %1394 = vmatmul.mubr.bf16.gmra.mrb[0].mxu0 %v1010
        %v1395 = vpop.f32.mrb[0].mxu0
        %v1396 = vadd.f32 %v669, %v1395
        %v1397 = vpop.f32.mrb[0].mxu0
        %v1398 = vpop.f32.mrb[0].mxu0
        %v1399 = vadd.f32 %v674, %v1398
        %v1400 = vpop.f32.mrb[0].mxu0
        %1401 = vmatprep.mubr.bf16.mxu0 %v1132
        %1402 = vmatmul.mubr.bf16.gmra.mrb[0].mxu0 %v1012
        %v1403 = vpop.f32.mrb[0].mxu0
        %v1404 = vadd.f32 %v679, %v1403
        %v1405 = vpop.f32.mrb[0].mxu0
        %v1406 = vpop.f32.mrb[0].mxu0
        %v1407 = vadd.f32 %v684, %v1406
        %v1408 = vpop.f32.mrb[0].mxu0
        %1409 = vmatprep.mubr.bf16.mxu0 %v1135
        %1410 = vmatmul.mubr.bf16.gmra.mrb[0].mxu0 %v1014
        %v1411 = vpop.f32.mrb[0].mxu0
        %v1412 = vadd.f32 %v689, %v1411
        %v1413 = vpop.f32.mrb[0].mxu0
        %v1414 = vpop.f32.mrb[0].mxu0
        %v1415 = vadd.f32 %v694, %v1414
        %v1416 = vpop.f32.mrb[0].mxu0
        %1417 = vmatprep.mubr.bf16.mxu0 %v1138
        %1418 = vmatmul.mubr.bf16.gmra.mrb[0].mxu0 %v1016
        %v1419 = vpop.f32.mrb[0].mxu0
        %v1420 = vadd.f32 %v699, %v1419
        %v1421 = vpop.f32.mrb[0].mxu0
        %v1422 = vpop.f32.mrb[0].mxu0
        %v1423 = vadd.f32 %v704, %v1422
        %v1424 = vpop.f32.mrb[0].mxu0
        %1425 = vmatprep.mubr.bf16.mxu0 %v1141
        %1426 = vmatmul.mubr.bf16.gmra.mrb[0].mxu0 %v1018
        %v1427 = vpop.f32.mrb[0].mxu0
        %v1428 = vadd.f32 %v709, %v1427
        %v1429 = vpop.f32.mrb[0].mxu0
        %v1430 = vpop.f32.mrb[0].mxu0
        %v1431 = vadd.f32 %v714, %v1430
        %v1432 = vpop.f32.mrb[0].mxu0
        %1433 = vmatprep.mubr.bf16.mxu0 %v1144
        %1434 = vmatmul.mubr.bf16.gmra.mrb[0].mxu0 %v1020
        %v1435 = vpop.f32.mrb[0].mxu0
        %v1436 = vadd.f32 %v719, %v1435
        %v1437 = vpop.f32.mrb[0].mxu0
        %v1438 = vpop.f32.mrb[0].mxu0
        %v1439 = vadd.f32 %v724, %v1438
        %v1440 = vpop.f32.mrb[0].mxu0
        %1441 = vmatprep.mubr.bf16.mxu0 %v1147
        %1442 = vmatmul.mubr.bf16.gmra.mrb[0].mxu0 %v1022
        %v1443 = vpop.f32.mrb[0].mxu0
        %v1444 = vadd.f32 %v729, %v1443
        %v1445 = vpop.f32.mrb[0].mxu0
        %v1446 = vpop.f32.mrb[0].mxu0
        %v1447 = vadd.f32 %v734, %v1446
        %v1448 = vpop.f32.mrb[0].mxu0
        %1449 = vmatprep.mubr.bf16.mxu0 %v1150
        %1450 = vmatmul.mubr.bf16.gmra.mrb[0].mxu0 %v1024
        %v1451 = vpop.f32.mrb[0].mxu0
        %v1452 = vadd.f32 %v739, %v1451
        %v1453 = vpop.f32.mrb[0].mxu0
        %v1454 = vpop.f32.mrb[0].mxu0
        %v1455 = vadd.f32 %v744, %v1454
        %v1456 = vpop.f32.mrb[0].mxu0
        %1457 = vmatprep.mubr.bf16.mxu0 %v1153
        %1458 = vmatmul.mubr.bf16.gmra.mrb[0].mxu0 %v1026
        %v1459 = vpop.f32.mrb[0].mxu0
        %v1460 = vadd.f32 %v749, %v1459
        %v1461 = vpop.f32.mrb[0].mxu0
        %v1462 = vpop.f32.mrb[0].mxu0
        %v1463 = vadd.f32 %v754, %v1462
        %v1464 = vpop.f32.mrb[0].mxu0
        %1465 = vmatprep.mubr.bf16.mxu0 %v1156
        %1466 = vmatmul.mubr.bf16.gmra.mrb[0].mxu0 %v1028
        %v1467 = vpop.f32.mrb[0].mxu0
        %v1468 = vadd.f32 %v759, %v1467
        %v1469 = vpop.f32.mrb[0].mxu0
        %v1470 = vpop.f32.mrb[0].mxu0
        %v1471 = vadd.f32 %v764, %v1470
        %v1472 = vpop.f32.mrb[0].mxu0
        %1473 = vmatprep.mubr.bf16.mxu0 %v1159
        %1474 = vmatmul.mubr.bf16.gmra.mrb[0].mxu0 %v1030
        %v1475 = vpop.f32.mrb[0].mxu0
        %v1476 = vadd.f32 %v769, %v1475
        %v1477 = vpop.f32.mrb[0].mxu0
        %v1478 = vpop.f32.mrb[0].mxu0
        %v1479 = vadd.f32 %v774, %v1478
        %v1480 = vpop.f32.mrb[0].mxu0
        %1481 = vdwg.mxu0
        %v1482 = vmax.f32 %v1228, 0.0
        %v1483 = vmax.f32 %v1231, 0.0
        %v1484 = vmax.f32 %v1236, 0.0
        %v1485 = vmax.f32 %v1239, 0.0
        %v1486 = vmax.f32 %v1244, 0.0
        %v1487 = vmax.f32 %v1247, 0.0
        %v1488 = vmax.f32 %v1252, 0.0
        %v1489 = vmax.f32 %v1255, 0.0
        %v1490 = vmax.f32 %v1260, 0.0
        %v1491 = vmax.f32 %v1263, 0.0
        %v1492 = vmax.f32 %v1268, 0.0
        %v1493 = vmax.f32 %v1271, 0.0
        %v1494 = vmax.f32 %v1276, 0.0
        %v1495 = vmax.f32 %v1279, 0.0
        %v1496 = vmax.f32 %v1284, 0.0
        %v1497 = vmax.f32 %v1287, 0.0
        %v1498 = vmax.f32 %v1292, 0.0
        %v1499 = vmax.f32 %v1295, 0.0
        %v1500 = vmax.f32 %v1300, 0.0
        %v1501 = vmax.f32 %v1303, 0.0
        %v1502 = vmax.f32 %v1308, 0.0
        %v1503 = vmax.f32 %v1311, 0.0
        %v1504 = vmax.f32 %v1316, 0.0
        %v1505 = vmax.f32 %v1319, 0.0
        %v1506 = vmax.f32 %v1324, 0.0
        %v1507 = vmax.f32 %v1327, 0.0
        %v1508 = vmax.f32 %v1332, 0.0
        %v1509 = vmax.f32 %v1335, 0.0
        %v1510 = vmax.f32 %v1340, 0.0
        %v1511 = vmax.f32 %v1343, 0.0
        %v1512 = vmax.f32 %v1348, 0.0
        %v1513 = vmax.f32 %v1351, 0.0
        %v1514 = vmax.f32 %v1356, 0.0
        %v1515 = vmax.f32 %v1359, 0.0
        %v1516 = vmax.f32 %v1364, 0.0
        %v1517 = vmax.f32 %v1367, 0.0
        %v1518 = vmax.f32 %v1372, 0.0
        %v1519 = vmax.f32 %v1375, 0.0
        %v1520 = vmax.f32 %v1380, 0.0
        %v1521 = vmax.f32 %v1383, 0.0
        %v1522 = vmax.f32 %v1388, 0.0
        %v1523 = vmax.f32 %v1391, 0.0
        %v1524 = vmax.f32 %v1396, 0.0
        %v1525 = vmax.f32 %v1399, 0.0
        %v1526 = vmax.f32 %v1404, 0.0
        %v1527 = vmax.f32 %v1407, 0.0
        %v1528 = vmax.f32 %v1412, 0.0
        %v1529 = vmax.f32 %v1415, 0.0
        %v1530 = vmax.f32 %v1420, 0.0
        %v1531 = vmax.f32 %v1423, 0.0
        %v1532 = vmax.f32 %v1428, 0.0
        %v1533 = vmax.f32 %v1431, 0.0
        %v1534 = vmax.f32 %v1436, 0.0
        %v1535 = vmax.f32 %v1439, 0.0
        %v1536 = vmax.f32 %v1444, 0.0
        %v1537 = vmax.f32 %v1447, 0.0
        %v1538 = vmax.f32 %v1452, 0.0
        %v1539 = vmax.f32 %v1455, 0.0
        %v1540 = vmax.f32 %v1460, 0.0
        %v1541 = vmax.f32 %v1463, 0.0
        %v1542 = vmax.f32 %v1468, 0.0
        %v1543 = vmax.f32 %v1471, 0.0
        %v1544 = vmax.f32 %v1476, 0.0
        %v1545 = vmax.f32 %v1479, 0.0
        %v1546 = vld [vmem:[%s3] sm:$0xff]
        %v1547 = vld [vmem:[%s3 + $0x8] sm:$0xff]
        %v1548 = vld [vmem:[%s3 + $0x10] sm:$0xff]
        %v1549 = vld [vmem:[%s3 + $0x18] sm:$0xff]
        %v1550 = vld [vmem:[%s3 + $0x20] sm:$0xff]
        %v1551 = vld [vmem:[%s3 + $0x28] sm:$0xff]
        %v1552 = vld [vmem:[%s3 + $0x30] sm:$0xff]
        %v1553 = vld [vmem:[%s3 + $0x38] sm:$0xff]
        %v1554 = vld [vmem:[%s3 + $0x40] sm:$0xff]
        %v1555 = vld [vmem:[%s3 + $0x48] sm:$0xff]
        %v1556 = vld [vmem:[%s3 + $0x50] sm:$0xff]
        %v1557 = vld [vmem:[%s3 + $0x58] sm:$0xff]
        %v1558 = vld [vmem:[%s3 + $0x60] sm:$0xff]
        %v1559 = vld [vmem:[%s3 + $0x68] sm:$0xff]
        %v1560 = vld [vmem:[%s3 + $0x70] sm:$0xff]
        %v1561 = vld [vmem:[%s3 + $0x78] sm:$0xff]
        %v1562 = vld [vmem:[%s3 + $0x80] sm:$0xff]
        %v1563 = vld [vmem:[%s3 + $0x88] sm:$0xff]
        %v1564 = vld [vmem:[%s3 + $0x90] sm:$0xff]
        %v1565 = vld [vmem:[%s3 + $0x98] sm:$0xff]
        %v1566 = vld [vmem:[%s3 + $0xa0] sm:$0xff]
        %v1567 = vld [vmem:[%s3 + $0xa8] sm:$0xff]
        %v1568 = vld [vmem:[%s3 + $0xb0] sm:$0xff]
        %v1569 = vld [vmem:[%s3 + $0xb8] sm:$0xff]
        %v1570 = vld [vmem:[%s3 + $0xc0] sm:$0xff]
        %v1571 = vld [vmem:[%s3 + $0xc8] sm:$0xff]
        %v1572 = vld [vmem:[%s3 + $0xd0] sm:$0xff]
        %v1573 = vld [vmem:[%s3 + $0xd8] sm:$0xff]
        %v1574 = vld [vmem:[%s3 + $0xe0] sm:$0xff]
        %v1575 = vld [vmem:[%s3 + $0xe8] sm:$0xff]
        %v1576 = vld [vmem:[%s3 + $0xf0] sm:$0xff]
        %v1577 = vld [vmem:[%s3 + $0xf8] sm:$0xff]
        %v1578 = vld [vmem:[%s3 + $0x100] sm:$0xff]
        %v1579 = vld [vmem:[%s3 + $0x108] sm:$0xff]
        %v1580 = vld [vmem:[%s3 + $0x110] sm:$0xff]
        %v1581 = vld [vmem:[%s3 + $0x118] sm:$0xff]
        %v1582 = vld [vmem:[%s3 + $0x120] sm:$0xff]
        %v1583 = vld [vmem:[%s3 + $0x128] sm:$0xff]
        %v1584 = vld [vmem:[%s3 + $0x130] sm:$0xff]
        %v1585 = vld [vmem:[%s3 + $0x138] sm:$0xff]
        %v1586 = vld [vmem:[%s3 + $0x140] sm:$0xff]
        %v1587 = vld [vmem:[%s3 + $0x148] sm:$0xff]
        %v1588 = vld [vmem:[%s3 + $0x150] sm:$0xff]
        %v1589 = vld [vmem:[%s3 + $0x158] sm:$0xff]
        %v1590 = vld [vmem:[%s3 + $0x160] sm:$0xff]
        %v1591 = vld [vmem:[%s3 + $0x168] sm:$0xff]
        %v1592 = vld [vmem:[%s3 + $0x170] sm:$0xff]
        %v1593 = vld [vmem:[%s3 + $0x178] sm:$0xff]
        %v1594 = vld [vmem:[%s3 + $0x180] sm:$0xff]
        %v1595 = vld [vmem:[%s3 + $0x188] sm:$0xff]
        %v1596 = vld [vmem:[%s3 + $0x190] sm:$0xff]
        %v1597 = vld [vmem:[%s3 + $0x198] sm:$0xff]
        %v1598 = vld [vmem:[%s3 + $0x1a0] sm:$0xff]
        %v1599 = vld [vmem:[%s3 + $0x1a8] sm:$0xff]
        %v1600 = vld [vmem:[%s3 + $0x1b0] sm:$0xff]
        %v1601 = vld [vmem:[%s3 + $0x1b8] sm:$0xff]
        %v1602 = vld [vmem:[%s3 + $0x1c0] sm:$0xff]
        %v1603 = vld [vmem:[%s3 + $0x1c8] sm:$0xff]
        %v1604 = vld [vmem:[%s3 + $0x1d0] sm:$0xff]
        %v1605 = vld [vmem:[%s3 + $0x1d8] sm:$0xff]
        %v1606 = vld [vmem:[%s3 + $0x1e0] sm:$0xff]
        %v1607 = vld [vmem:[%s3 + $0x1e8] sm:$0xff]
        %v1608 = vld [vmem:[%s3 + $0x1f0] sm:$0xff]
        %v1609 = vld [vmem:[%s3 + $0x1f8] sm:$0xff]
        %v1610 = vld [vmem:[%s3 + $0x200] sm:$0xff]
        %v1611 = vld [vmem:[%s3 + $0x208] sm:$0xff]
        %v1612 = vld [vmem:[%s3 + $0x210] sm:$0xff]
        %v1613 = vld [vmem:[%s3 + $0x218] sm:$0xff]
        %v1614 = vld [vmem:[%s3 + $0x220] sm:$0xff]
        %v1615 = vld [vmem:[%s3 + $0x228] sm:$0xff]
        %v1616 = vld [vmem:[%s3 + $0x230] sm:$0xff]
        %v1617 = vld [vmem:[%s3 + $0x238] sm:$0xff]
        %v1618 = vld [vmem:[%s3 + $0x240] sm:$0xff]
        %v1619 = vld [vmem:[%s3 + $0x248] sm:$0xff]
        %v1620 = vld [vmem:[%s3 + $0x250] sm:$0xff]
        %v1621 = vld [vmem:[%s3 + $0x258] sm:$0xff]
        %v1622 = vld [vmem:[%s3 + $0x260] sm:$0xff]
        %v1623 = vld [vmem:[%s3 + $0x268] sm:$0xff]
        %v1624 = vld [vmem:[%s3 + $0x270] sm:$0xff]
        %v1625 = vld [vmem:[%s3 + $0x278] sm:$0xff]
        %v1626 = vld [vmem:[%s3 + $0x280] sm:$0xff]
        %v1627 = vld [vmem:[%s3 + $0x288] sm:$0xff]
        %v1628 = vld [vmem:[%s3 + $0x290] sm:$0xff]
        %v1629 = vld [vmem:[%s3 + $0x298] sm:$0xff]
        %v1630 = vld [vmem:[%s3 + $0x2a0] sm:$0xff]
        %v1631 = vld [vmem:[%s3 + $0x2a8] sm:$0xff]
        %v1632 = vld [vmem:[%s3 + $0x2b0] sm:$0xff]
        %v1633 = vld [vmem:[%s3 + $0x2b8] sm:$0xff]
        %v1634 = vld [vmem:[%s3 + $0x2c0] sm:$0xff]
        %v1635 = vld [vmem:[%s3 + $0x2c8] sm:$0xff]
        %v1636 = vld [vmem:[%s3 + $0x2d0] sm:$0xff]
        %v1637 = vld [vmem:[%s3 + $0x2d8] sm:$0xff]
        %v1638 = vld [vmem:[%s3 + $0x2e0] sm:$0xff]
        %v1639 = vld [vmem:[%s3 + $0x2e8] sm:$0xff]
        %v1640 = vld [vmem:[%s3 + $0x2f0] sm:$0xff]
        %v1641 = vld [vmem:[%s3 + $0x2f8] sm:$0xff]
        %v1642 = vld [vmem:[%s3 + $0x300] sm:$0xff]
        %v1643 = vld [vmem:[%s3 + $0x308] sm:$0xff]
        %v1644 = vld [vmem:[%s3 + $0x310] sm:$0xff]
        %v1645 = vld [vmem:[%s3 + $0x318] sm:$0xff]
        %v1646 = vld [vmem:[%s3 + $0x320] sm:$0xff]
        %v1647 = vld [vmem:[%s3 + $0x328] sm:$0xff]
        %v1648 = vld [vmem:[%s3 + $0x330] sm:$0xff]
        %v1649 = vld [vmem:[%s3 + $0x338] sm:$0xff]
        %v1650 = vld [vmem:[%s3 + $0x340] sm:$0xff]
        %v1651 = vld [vmem:[%s3 + $0x348] sm:$0xff]
        %v1652 = vld [vmem:[%s3 + $0x350] sm:$0xff]
        %v1653 = vld [vmem:[%s3 + $0x358] sm:$0xff]
        %v1654 = vld [vmem:[%s3 + $0x360] sm:$0xff]
        %v1655 = vld [vmem:[%s3 + $0x368] sm:$0xff]
        %v1656 = vld [vmem:[%s3 + $0x370] sm:$0xff]
        %v1657 = vld [vmem:[%s3 + $0x378] sm:$0xff]
        %v1658 = vld [vmem:[%s3 + $0x380] sm:$0xff]
        %v1659 = vld [vmem:[%s3 + $0x388] sm:$0xff]
        %v1660 = vld [vmem:[%s3 + $0x390] sm:$0xff]
        %v1661 = vld [vmem:[%s3 + $0x398] sm:$0xff]
        %v1662 = vld [vmem:[%s3 + $0x3a0] sm:$0xff]
        %v1663 = vld [vmem:[%s3 + $0x3a8] sm:$0xff]
        %v1664 = vld [vmem:[%s3 + $0x3b0] sm:$0xff]
        %v1665 = vld [vmem:[%s3 + $0x3b8] sm:$0xff]
        %v1666 = vld [vmem:[%s3 + $0x3c0] sm:$0xff]
        %v1667 = vld [vmem:[%s3 + $0x3c8] sm:$0xff]
        %v1668 = vld [vmem:[%s3 + $0x3d0] sm:$0xff]
        %v1669 = vld [vmem:[%s3 + $0x3d8] sm:$0xff]
        %v1670 = vld [vmem:[%s3 + $0x3e0] sm:$0xff]
        %v1671 = vld [vmem:[%s3 + $0x3e8] sm:$0xff]
        %v1672 = vld [vmem:[%s3 + $0x3f0] sm:$0xff]
        %v1673 = vld [vmem:[%s3 + $0x3f8] sm:$0xff]
        %v1674 = vpack.c.bf16 %v1483, %v1482
        %v1675 = vpack.c.bf16 %v1485, %v1484
        %v1676 = vpack.c.bf16 %v1487, %v1486
        %v1677 = vpack.c.bf16 %v1489, %v1488
        %v1678 = vpack.c.bf16 %v1491, %v1490
        %v1679 = vpack.c.bf16 %v1493, %v1492
        %v1680 = vpack.c.bf16 %v1495, %v1494
        %v1681 = vpack.c.bf16 %v1497, %v1496
        %v1682 = vpack.c.bf16 %v1499, %v1498
        %v1683 = vpack.c.bf16 %v1501, %v1500
        %v1684 = vpack.c.bf16 %v1503, %v1502
        %v1685 = vpack.c.bf16 %v1505, %v1504
        %v1686 = vpack.c.bf16 %v1507, %v1506
        %v1687 = vpack.c.bf16 %v1509, %v1508
        %v1688 = vpack.c.bf16 %v1511, %v1510
        %v1689 = vpack.c.bf16 %v1513, %v1512
        %v1690 = vpack.c.bf16 %v1515, %v1514
        %v1691 = vpack.c.bf16 %v1517, %v1516
        %v1692 = vpack.c.bf16 %v1519, %v1518
        %v1693 = vpack.c.bf16 %v1521, %v1520
        %v1694 = vpack.c.bf16 %v1523, %v1522
        %v1695 = vpack.c.bf16 %v1525, %v1524
        %v1696 = vpack.c.bf16 %v1527, %v1526
        %v1697 = vpack.c.bf16 %v1529, %v1528
        %v1698 = vpack.c.bf16 %v1531, %v1530
        %v1699 = vpack.c.bf16 %v1533, %v1532
        %v1700 = vpack.c.bf16 %v1535, %v1534
        %v1701 = vpack.c.bf16 %v1537, %v1536
        %v1702 = vpack.c.bf16 %v1539, %v1538
        %v1703 = vpack.c.bf16 %v1541, %v1540
        %v1704 = vpack.c.bf16 %v1543, %v1542
        %v1705 = vpack.c.bf16 %v1545, %v1544
        %v1706 = vld [vmem:[%s4] sm:$0xff]
        %v1707 = vld [vmem:[%s4 + $0x8] sm:$0xff]
        %v1708 = vld [vmem:[%s4 + $0x10] sm:$0xff]
        %v1709 = vld [vmem:[%s4 + $0x18] sm:$0xff]
        %v1710 = vld [vmem:[%s4 + $0x20] sm:$0xff]
        %v1711 = vld [vmem:[%s4 + $0x28] sm:$0xff]
        %v1712 = vld [vmem:[%s4 + $0x30] sm:$0xff]
        %v1713 = vld [vmem:[%s4 + $0x38] sm:$0xff]
        %v1714 = vld [vmem:[%s4 + $0x40] sm:$0xff]
        %v1715 = vld [vmem:[%s4 + $0x48] sm:$0xff]
        %v1716 = vld [vmem:[%s4 + $0x50] sm:$0xff]
        %v1717 = vld [vmem:[%s4 + $0x58] sm:$0xff]
        %v1718 = vld [vmem:[%s4 + $0x60] sm:$0xff]
        %v1719 = vld [vmem:[%s4 + $0x68] sm:$0xff]
        %v1720 = vld [vmem:[%s4 + $0x70] sm:$0xff]
        %v1721 = vld [vmem:[%s4 + $0x78] sm:$0xff]
        %v1722 = vld [vmem:[%s4 + $0x80] sm:$0xff]
        %v1723 = vld [vmem:[%s4 + $0x88] sm:$0xff]
        %v1724 = vld [vmem:[%s4 + $0x90] sm:$0xff]
        %v1725 = vld [vmem:[%s4 + $0x98] sm:$0xff]
        %v1726 = vld [vmem:[%s4 + $0xa0] sm:$0xff]
        %v1727 = vld [vmem:[%s4 + $0xa8] sm:$0xff]
        %v1728 = vld [vmem:[%s4 + $0xb0] sm:$0xff]
        %v1729 = vld [vmem:[%s4 + $0xb8] sm:$0xff]
        %v1730 = vld [vmem:[%s4 + $0xc0] sm:$0xff]
        %v1731 = vld [vmem:[%s4 + $0xc8] sm:$0xff]
        %v1732 = vld [vmem:[%s4 + $0xd0] sm:$0xff]
        %v1733 = vld [vmem:[%s4 + $0xd8] sm:$0xff]
        %v1734 = vld [vmem:[%s4 + $0xe0] sm:$0xff]
        %v1735 = vld [vmem:[%s4 + $0xe8] sm:$0xff]
        %v1736 = vld [vmem:[%s4 + $0xf0] sm:$0xff]
        %v1737 = vld [vmem:[%s4 + $0xf8] sm:$0xff]
        %v1738 = vld [vmem:[%s4 + $0x100] sm:$0xff]
        %v1739 = vld [vmem:[%s4 + $0x108] sm:$0xff]
        %v1740 = vld [vmem:[%s4 + $0x110] sm:$0xff]
        %v1741 = vld [vmem:[%s4 + $0x118] sm:$0xff]
        %v1742 = vld [vmem:[%s4 + $0x120] sm:$0xff]
        %v1743 = vld [vmem:[%s4 + $0x128] sm:$0xff]
        %v1744 = vld [vmem:[%s4 + $0x130] sm:$0xff]
        %v1745 = vld [vmem:[%s4 + $0x138] sm:$0xff]
        %v1746 = vld [vmem:[%s4 + $0x140] sm:$0xff]
        %v1747 = vld [vmem:[%s4 + $0x148] sm:$0xff]
        %v1748 = vld [vmem:[%s4 + $0x150] sm:$0xff]
        %v1749 = vld [vmem:[%s4 + $0x158] sm:$0xff]
        %v1750 = vld [vmem:[%s4 + $0x160] sm:$0xff]
        %v1751 = vld [vmem:[%s4 + $0x168] sm:$0xff]
        %v1752 = vld [vmem:[%s4 + $0x170] sm:$0xff]
        %v1753 = vld [vmem:[%s4 + $0x178] sm:$0xff]
        %v1754 = vld [vmem:[%s4 + $0x180] sm:$0xff]
        %v1755 = vld [vmem:[%s4 + $0x188] sm:$0xff]
        %v1756 = vld [vmem:[%s4 + $0x190] sm:$0xff]
        %v1757 = vld [vmem:[%s4 + $0x198] sm:$0xff]
        %v1758 = vld [vmem:[%s4 + $0x1a0] sm:$0xff]
        %v1759 = vld [vmem:[%s4 + $0x1a8] sm:$0xff]
        %v1760 = vld [vmem:[%s4 + $0x1b0] sm:$0xff]
        %v1761 = vld [vmem:[%s4 + $0x1b8] sm:$0xff]
        %v1762 = vld [vmem:[%s4 + $0x1c0] sm:$0xff]
        %v1763 = vld [vmem:[%s4 + $0x1c8] sm:$0xff]
        %v1764 = vld [vmem:[%s4 + $0x1d0] sm:$0xff]
        %v1765 = vld [vmem:[%s4 + $0x1d8] sm:$0xff]
        %v1766 = vld [vmem:[%s4 + $0x1e0] sm:$0xff]
        %v1767 = vld [vmem:[%s4 + $0x1e8] sm:$0xff]
        %v1768 = vld [vmem:[%s4 + $0x1f0] sm:$0xff]
        %v1769 = vld [vmem:[%s4 + $0x1f8] sm:$0xff]
        %1771 = vset.pattern.permute.xlu0 0
        %1772 = vperm.xlu0 %1771, %v1706
        %v1773 = vpop.permute.xlu0 %1772
        %1776 = vset.pattern.permute.xlu0 0
        %1777 = vperm.xlu0 %1776, %v1707
        %v1778 = vpop.permute.xlu0 %1777
        %1781 = vset.pattern.permute.xlu0 0
        %1782 = vperm.xlu0 %1781, %v1708
        %v1783 = vpop.permute.xlu0 %1782
        %1786 = vset.pattern.permute.xlu0 0
        %1787 = vperm.xlu0 %1786, %v1709
        %v1788 = vpop.permute.xlu0 %1787
        %1791 = vset.pattern.permute.xlu0 0
        %1792 = vperm.xlu0 %1791, %v1710
        %v1793 = vpop.permute.xlu0 %1792
        %1796 = vset.pattern.permute.xlu0 0
        %1797 = vperm.xlu0 %1796, %v1711
        %v1798 = vpop.permute.xlu0 %1797
        %1801 = vset.pattern.permute.xlu0 0
        %1802 = vperm.xlu0 %1801, %v1712
        %v1803 = vpop.permute.xlu0 %1802
        %1806 = vset.pattern.permute.xlu0 0
        %1807 = vperm.xlu0 %1806, %v1713
        %v1808 = vpop.permute.xlu0 %1807
        %1811 = vset.pattern.permute.xlu0 0
        %1812 = vperm.xlu0 %1811, %v1714
        %v1813 = vpop.permute.xlu0 %1812
        %1816 = vset.pattern.permute.xlu0 0
        %1817 = vperm.xlu0 %1816, %v1715
        %v1818 = vpop.permute.xlu0 %1817
        %1821 = vset.pattern.permute.xlu0 0
        %1822 = vperm.xlu0 %1821, %v1716
        %v1823 = vpop.permute.xlu0 %1822
        %1826 = vset.pattern.permute.xlu0 0
        %1827 = vperm.xlu0 %1826, %v1717
        %v1828 = vpop.permute.xlu0 %1827
        %1831 = vset.pattern.permute.xlu0 0
        %1832 = vperm.xlu0 %1831, %v1718
        %v1833 = vpop.permute.xlu0 %1832
        %1836 = vset.pattern.permute.xlu0 0
        %1837 = vperm.xlu0 %1836, %v1719
        %v1838 = vpop.permute.xlu0 %1837
        %1841 = vset.pattern.permute.xlu0 0
        %1842 = vperm.xlu0 %1841, %v1720
        %v1843 = vpop.permute.xlu0 %1842
        %1846 = vset.pattern.permute.xlu0 0
        %1847 = vperm.xlu0 %1846, %v1721
        %v1848 = vpop.permute.xlu0 %1847
        %1851 = vset.pattern.permute.xlu0 0
        %1852 = vperm.xlu0 %1851, %v1722
        %v1853 = vpop.permute.xlu0 %1852
        %1856 = vset.pattern.permute.xlu0 0
        %1857 = vperm.xlu0 %1856, %v1723
        %v1858 = vpop.permute.xlu0 %1857
        %1861 = vset.pattern.permute.xlu0 0
        %1862 = vperm.xlu0 %1861, %v1724
        %v1863 = vpop.permute.xlu0 %1862
        %1866 = vset.pattern.permute.xlu0 0
        %1867 = vperm.xlu0 %1866, %v1725
        %v1868 = vpop.permute.xlu0 %1867
        %1871 = vset.pattern.permute.xlu0 0
        %1872 = vperm.xlu0 %1871, %v1726
        %v1873 = vpop.permute.xlu0 %1872
        %1876 = vset.pattern.permute.xlu0 0
        %1877 = vperm.xlu0 %1876, %v1727
        %v1878 = vpop.permute.xlu0 %1877
        %1881 = vset.pattern.permute.xlu0 0
        %1882 = vperm.xlu0 %1881, %v1728
        %v1883 = vpop.permute.xlu0 %1882
        %1886 = vset.pattern.permute.xlu0 0
        %1887 = vperm.xlu0 %1886, %v1729
        %v1888 = vpop.permute.xlu0 %1887
        %1891 = vset.pattern.permute.xlu0 0
        %1892 = vperm.xlu0 %1891, %v1730
        %v1893 = vpop.permute.xlu0 %1892
        %1896 = vset.pattern.permute.xlu0 0
        %1897 = vperm.xlu0 %1896, %v1731
        %v1898 = vpop.permute.xlu0 %1897
        %1901 = vset.pattern.permute.xlu0 0
        %1902 = vperm.xlu0 %1901, %v1732
        %v1903 = vpop.permute.xlu0 %1902
        %1906 = vset.pattern.permute.xlu0 0
        %1907 = vperm.xlu0 %1906, %v1733
        %v1908 = vpop.permute.xlu0 %1907
        %1911 = vset.pattern.permute.xlu0 0
        %1912 = vperm.xlu0 %1911, %v1734
        %v1913 = vpop.permute.xlu0 %1912
        %1916 = vset.pattern.permute.xlu0 0
        %1917 = vperm.xlu0 %1916, %v1735
        %v1918 = vpop.permute.xlu0 %1917
        %1921 = vset.pattern.permute.xlu0 0
        %1922 = vperm.xlu0 %1921, %v1736
        %v1923 = vpop.permute.xlu0 %1922
        %1926 = vset.pattern.permute.xlu0 0
        %1927 = vperm.xlu0 %1926, %v1737
        %v1928 = vpop.permute.xlu0 %1927
        %1931 = vset.pattern.permute.xlu0 0
        %1932 = vperm.xlu0 %1931, %v1738
        %v1933 = vpop.permute.xlu0 %1932
        %1936 = vset.pattern.permute.xlu0 0
        %1937 = vperm.xlu0 %1936, %v1739
        %v1938 = vpop.permute.xlu0 %1937
        %1941 = vset.pattern.permute.xlu0 0
        %1942 = vperm.xlu0 %1941, %v1740
        %v1943 = vpop.permute.xlu0 %1942
        %1946 = vset.pattern.permute.xlu0 0
        %1947 = vperm.xlu0 %1946, %v1741
        %v1948 = vpop.permute.xlu0 %1947
        %1951 = vset.pattern.permute.xlu0 0
        %1952 = vperm.xlu0 %1951, %v1742
        %v1953 = vpop.permute.xlu0 %1952
        %1956 = vset.pattern.permute.xlu0 0
        %1957 = vperm.xlu0 %1956, %v1743
        %v1958 = vpop.permute.xlu0 %1957
        %1961 = vset.pattern.permute.xlu0 0
        %1962 = vperm.xlu0 %1961, %v1744
        %v1963 = vpop.permute.xlu0 %1962
        %1966 = vset.pattern.permute.xlu0 0
        %1967 = vperm.xlu0 %1966, %v1745
        %v1968 = vpop.permute.xlu0 %1967
        %1971 = vset.pattern.permute.xlu0 0
        %1972 = vperm.xlu0 %1971, %v1746
        %v1973 = vpop.permute.xlu0 %1972
        %1976 = vset.pattern.permute.xlu0 0
        %1977 = vperm.xlu0 %1976, %v1747
        %v1978 = vpop.permute.xlu0 %1977
        %1981 = vset.pattern.permute.xlu0 0
        %1982 = vperm.xlu0 %1981, %v1748
        %v1983 = vpop.permute.xlu0 %1982
        %1986 = vset.pattern.permute.xlu0 0
        %1987 = vperm.xlu0 %1986, %v1749
        %v1988 = vpop.permute.xlu0 %1987
        %1991 = vset.pattern.permute.xlu0 0
        %1992 = vperm.xlu0 %1991, %v1750
        %v1993 = vpop.permute.xlu0 %1992
        %1996 = vset.pattern.permute.xlu0 0
        %1997 = vperm.xlu0 %1996, %v1751
        %v1998 = vpop.permute.xlu0 %1997
        %2001 = vset.pattern.permute.xlu0 0
        %2002 = vperm.xlu0 %2001, %v1752
        %v2003 = vpop.permute.xlu0 %2002
        %2006 = vset.pattern.permute.xlu0 0
        %2007 = vperm.xlu0 %2006, %v1753
        %v2008 = vpop.permute.xlu0 %2007
        %2011 = vset.pattern.permute.xlu0 0
        %2012 = vperm.xlu0 %2011, %v1754
        %v2013 = vpop.permute.xlu0 %2012
        %2016 = vset.pattern.permute.xlu0 0
        %2017 = vperm.xlu0 %2016, %v1755
        %v2018 = vpop.permute.xlu0 %2017
        %2021 = vset.pattern.permute.xlu0 0
        %2022 = vperm.xlu0 %2021, %v1756
        %v2023 = vpop.permute.xlu0 %2022
        %2026 = vset.pattern.permute.xlu0 0
        %2027 = vperm.xlu0 %2026, %v1757
        %v2028 = vpop.permute.xlu0 %2027
        %2031 = vset.pattern.permute.xlu0 0
        %2032 = vperm.xlu0 %2031, %v1758
        %v2033 = vpop.permute.xlu0 %2032
        %2036 = vset.pattern.permute.xlu0 0
        %2037 = vperm.xlu0 %2036, %v1759
        %v2038 = vpop.permute.xlu0 %2037
        %2041 = vset.pattern.permute.xlu0 0
        %2042 = vperm.xlu0 %2041, %v1760
        %v2043 = vpop.permute.xlu0 %2042
        %2046 = vset.pattern.permute.xlu0 0
        %2047 = vperm.xlu0 %2046, %v1761
        %v2048 = vpop.permute.xlu0 %2047
        %2051 = vset.pattern.permute.xlu0 0
        %2052 = vperm.xlu0 %2051, %v1762
        %v2053 = vpop.permute.xlu0 %2052
        %2056 = vset.pattern.permute.xlu0 0
        %2057 = vperm.xlu0 %2056, %v1763
        %v2058 = vpop.permute.xlu0 %2057
        %2061 = vset.pattern.permute.xlu0 0
        %2062 = vperm.xlu0 %2061, %v1764
        %v2063 = vpop.permute.xlu0 %2062
        %2066 = vset.pattern.permute.xlu0 0
        %2067 = vperm.xlu0 %2066, %v1765
        %v2068 = vpop.permute.xlu0 %2067
        %2071 = vset.pattern.permute.xlu0 0
        %2072 = vperm.xlu0 %2071, %v1766
        %v2073 = vpop.permute.xlu0 %2072
        %2076 = vset.pattern.permute.xlu0 0
        %2077 = vperm.xlu0 %2076, %v1767
        %v2078 = vpop.permute.xlu0 %2077
        %2081 = vset.pattern.permute.xlu0 0
        %2082 = vperm.xlu0 %2081, %v1768
        %v2083 = vpop.permute.xlu0 %2082
        %2086 = vset.pattern.permute.xlu0 0
        %2087 = vperm.xlu0 %2086, %v1769
        %v2088 = vpop.permute.xlu0 %2087
        %v2218 = vunpack.c.l.b16 %v1546
        %v2219 = vunpack.c.h.b16 %v1546
        %v2220 = vunpack.c.l.b16 %v1547
        %v2221 = vunpack.c.h.b16 %v1547
        %v2222 = vunpack.c.l.b16 %v1548
        %v2223 = vunpack.c.h.b16 %v1548
        %v2224 = vunpack.c.l.b16 %v1549
        %v2225 = vunpack.c.h.b16 %v1549
        %v2226 = vunpack.c.l.b16 %v1550
        %v2227 = vunpack.c.h.b16 %v1550
        %v2228 = vunpack.c.l.b16 %v1551
        %v2229 = vunpack.c.h.b16 %v1551
        %v2230 = vunpack.c.l.b16 %v1552
        %v2231 = vunpack.c.h.b16 %v1552
        %v2232 = vunpack.c.l.b16 %v1553
        %v2233 = vunpack.c.h.b16 %v1553
        %v2234 = vunpack.c.l.b16 %v1554
        %v2235 = vunpack.c.h.b16 %v1554
        %v2236 = vunpack.c.l.b16 %v1555
        %v2237 = vunpack.c.h.b16 %v1555
        %v2238 = vunpack.c.l.b16 %v1556
        %v2239 = vunpack.c.h.b16 %v1556
        %v2240 = vunpack.c.l.b16 %v1557
        %v2241 = vunpack.c.h.b16 %v1557
        %v2242 = vunpack.c.l.b16 %v1558
        %v2243 = vunpack.c.h.b16 %v1558
        %v2244 = vunpack.c.l.b16 %v1559
        %v2245 = vunpack.c.h.b16 %v1559
        %v2246 = vunpack.c.l.b16 %v1560
        %v2247 = vunpack.c.h.b16 %v1560
        %v2248 = vunpack.c.l.b16 %v1561
        %v2249 = vunpack.c.h.b16 %v1561
        %v2250 = vunpack.c.l.b16 %v1562
        %v2251 = vunpack.c.h.b16 %v1562
        %v2252 = vunpack.c.l.b16 %v1563
        %v2253 = vunpack.c.h.b16 %v1563
        %v2254 = vunpack.c.l.b16 %v1564
        %v2255 = vunpack.c.h.b16 %v1564
        %v2256 = vunpack.c.l.b16 %v1565
        %v2257 = vunpack.c.h.b16 %v1565
        %v2258 = vunpack.c.l.b16 %v1566
        %v2259 = vunpack.c.h.b16 %v1566
        %v2260 = vunpack.c.l.b16 %v1567
        %v2261 = vunpack.c.h.b16 %v1567
        %v2262 = vunpack.c.l.b16 %v1568
        %v2263 = vunpack.c.h.b16 %v1568
        %v2264 = vunpack.c.l.b16 %v1569
        %v2265 = vunpack.c.h.b16 %v1569
        %v2266 = vunpack.c.l.b16 %v1570
        %v2267 = vunpack.c.h.b16 %v1570
        %v2268 = vunpack.c.l.b16 %v1571
        %v2269 = vunpack.c.h.b16 %v1571
        %v2270 = vunpack.c.l.b16 %v1572
        %v2271 = vunpack.c.h.b16 %v1572
        %v2272 = vunpack.c.l.b16 %v1573
        %v2273 = vunpack.c.h.b16 %v1573
        %v2274 = vunpack.c.l.b16 %v1574
        %v2275 = vunpack.c.h.b16 %v1574
        %v2276 = vunpack.c.l.b16 %v1575
        %v2277 = vunpack.c.h.b16 %v1575
        %v2278 = vunpack.c.l.b16 %v1576
        %v2279 = vunpack.c.h.b16 %v1576
        %v2280 = vunpack.c.l.b16 %v1577
        %v2281 = vunpack.c.h.b16 %v1577
        %v2282 = vunpack.c.l.b16 %v1578
        %v2283 = vunpack.c.h.b16 %v1578
        %v2284 = vunpack.c.l.b16 %v1579
        %v2285 = vunpack.c.h.b16 %v1579
        %v2286 = vunpack.c.l.b16 %v1580
        %v2287 = vunpack.c.h.b16 %v1580
        %v2288 = vunpack.c.l.b16 %v1581
        %v2289 = vunpack.c.h.b16 %v1581
        %v2290 = vunpack.c.l.b16 %v1582
        %v2291 = vunpack.c.h.b16 %v1582
        %v2292 = vunpack.c.l.b16 %v1583
        %v2293 = vunpack.c.h.b16 %v1583
        %v2294 = vunpack.c.l.b16 %v1584
        %v2295 = vunpack.c.h.b16 %v1584
        %v2296 = vunpack.c.l.b16 %v1585
        %v2297 = vunpack.c.h.b16 %v1585
        %v2298 = vunpack.c.l.b16 %v1586
        %v2299 = vunpack.c.h.b16 %v1586
        %v2300 = vunpack.c.l.b16 %v1587
        %v2301 = vunpack.c.h.b16 %v1587
        %v2302 = vunpack.c.l.b16 %v1588
        %v2303 = vunpack.c.h.b16 %v1588
        %v2304 = vunpack.c.l.b16 %v1589
        %v2305 = vunpack.c.h.b16 %v1589
        %v2306 = vunpack.c.l.b16 %v1590
        %v2307 = vunpack.c.h.b16 %v1590
        %v2308 = vunpack.c.l.b16 %v1591
        %v2309 = vunpack.c.h.b16 %v1591
        %v2310 = vunpack.c.l.b16 %v1592
        %v2311 = vunpack.c.h.b16 %v1592
        %v2312 = vunpack.c.l.b16 %v1593
        %v2313 = vunpack.c.h.b16 %v1593
        %v2314 = vunpack.c.l.b16 %v1594
        %v2315 = vunpack.c.h.b16 %v1594
        %v2316 = vunpack.c.l.b16 %v1595
        %v2317 = vunpack.c.h.b16 %v1595
        %v2318 = vunpack.c.l.b16 %v1596
        %v2319 = vunpack.c.h.b16 %v1596
        %v2320 = vunpack.c.l.b16 %v1597
        %v2321 = vunpack.c.h.b16 %v1597
        %v2322 = vunpack.c.l.b16 %v1598
        %v2323 = vunpack.c.h.b16 %v1598
        %v2324 = vunpack.c.l.b16 %v1599
        %v2325 = vunpack.c.h.b16 %v1599
        %v2326 = vunpack.c.l.b16 %v1600
        %v2327 = vunpack.c.h.b16 %v1600
        %v2328 = vunpack.c.l.b16 %v1601
        %v2329 = vunpack.c.h.b16 %v1601
        %v2330 = vunpack.c.l.b16 %v1602
        %v2331 = vunpack.c.h.b16 %v1602
        %v2332 = vunpack.c.l.b16 %v1603
        %v2333 = vunpack.c.h.b16 %v1603
        %v2334 = vunpack.c.l.b16 %v1604
        %v2335 = vunpack.c.h.b16 %v1604
        %v2336 = vunpack.c.l.b16 %v1605
        %v2337 = vunpack.c.h.b16 %v1605
        %v2338 = vunpack.c.l.b16 %v1606
        %v2339 = vunpack.c.h.b16 %v1606
        %v2340 = vunpack.c.l.b16 %v1607
        %v2341 = vunpack.c.h.b16 %v1607
        %v2342 = vunpack.c.l.b16 %v1608
        %v2343 = vunpack.c.h.b16 %v1608
        %v2344 = vunpack.c.l.b16 %v1609
        %v2345 = vunpack.c.h.b16 %v1609
        %v2346 = vunpack.c.l.b16 %v1610
        %v2347 = vunpack.c.h.b16 %v1610
        %v2348 = vunpack.c.l.b16 %v1611
        %v2349 = vunpack.c.h.b16 %v1611
        %v2350 = vunpack.c.l.b16 %v1612
        %v2351 = vunpack.c.h.b16 %v1612
        %v2352 = vunpack.c.l.b16 %v1613
        %v2353 = vunpack.c.h.b16 %v1613
        %v2354 = vunpack.c.l.b16 %v1614
        %v2355 = vunpack.c.h.b16 %v1614
        %v2356 = vunpack.c.l.b16 %v1615
        %v2357 = vunpack.c.h.b16 %v1615
        %v2358 = vunpack.c.l.b16 %v1616
        %v2359 = vunpack.c.h.b16 %v1616
        %v2360 = vunpack.c.l.b16 %v1617
        %v2361 = vunpack.c.h.b16 %v1617
        %v2362 = vunpack.c.l.b16 %v1618
        %v2363 = vunpack.c.h.b16 %v1618
        %v2364 = vunpack.c.l.b16 %v1619
        %v2365 = vunpack.c.h.b16 %v1619
        %v2366 = vunpack.c.l.b16 %v1620
        %v2367 = vunpack.c.h.b16 %v1620
        %v2368 = vunpack.c.l.b16 %v1621
        %v2369 = vunpack.c.h.b16 %v1621
        %v2370 = vunpack.c.l.b16 %v1622
        %v2371 = vunpack.c.h.b16 %v1622
        %v2372 = vunpack.c.l.b16 %v1623
        %v2373 = vunpack.c.h.b16 %v1623
        %v2374 = vunpack.c.l.b16 %v1624
        %v2375 = vunpack.c.h.b16 %v1624
        %v2376 = vunpack.c.l.b16 %v1625
        %v2377 = vunpack.c.h.b16 %v1625
        %v2378 = vunpack.c.l.b16 %v1626
        %v2379 = vunpack.c.h.b16 %v1626
        %v2380 = vunpack.c.l.b16 %v1627
        %v2381 = vunpack.c.h.b16 %v1627
        %v2382 = vunpack.c.l.b16 %v1628
        %v2383 = vunpack.c.h.b16 %v1628
        %v2384 = vunpack.c.l.b16 %v1629
        %v2385 = vunpack.c.h.b16 %v1629
        %v2386 = vunpack.c.l.b16 %v1630
        %v2387 = vunpack.c.h.b16 %v1630
        %v2388 = vunpack.c.l.b16 %v1631
        %v2389 = vunpack.c.h.b16 %v1631
        %v2390 = vunpack.c.l.b16 %v1632
        %v2391 = vunpack.c.h.b16 %v1632
        %v2392 = vunpack.c.l.b16 %v1633
        %v2393 = vunpack.c.h.b16 %v1633
        %v2394 = vunpack.c.l.b16 %v1634
        %v2395 = vunpack.c.h.b16 %v1634
        %v2396 = vunpack.c.l.b16 %v1635
        %v2397 = vunpack.c.h.b16 %v1635
        %v2398 = vunpack.c.l.b16 %v1636
        %v2399 = vunpack.c.h.b16 %v1636
        %v2400 = vunpack.c.l.b16 %v1637
        %v2401 = vunpack.c.h.b16 %v1637
        %v2402 = vunpack.c.l.b16 %v1638
        %v2403 = vunpack.c.h.b16 %v1638
        %v2404 = vunpack.c.l.b16 %v1639
        %v2405 = vunpack.c.h.b16 %v1639
        %v2406 = vunpack.c.l.b16 %v1640
        %v2407 = vunpack.c.h.b16 %v1640
        %v2408 = vunpack.c.l.b16 %v1641
        %v2409 = vunpack.c.h.b16 %v1641
        %v2410 = vunpack.c.l.b16 %v1642
        %v2411 = vunpack.c.h.b16 %v1642
        %v2412 = vunpack.c.l.b16 %v1643
        %v2413 = vunpack.c.h.b16 %v1643
        %v2414 = vunpack.c.l.b16 %v1644
        %v2415 = vunpack.c.h.b16 %v1644
        %v2416 = vunpack.c.l.b16 %v1645
        %v2417 = vunpack.c.h.b16 %v1645
        %v2418 = vunpack.c.l.b16 %v1646
        %v2419 = vunpack.c.h.b16 %v1646
        %v2420 = vunpack.c.l.b16 %v1647
        %v2421 = vunpack.c.h.b16 %v1647
        %v2422 = vunpack.c.l.b16 %v1648
        %v2423 = vunpack.c.h.b16 %v1648
        %v2424 = vunpack.c.l.b16 %v1649
        %v2425 = vunpack.c.h.b16 %v1649
        %v2426 = vunpack.c.l.b16 %v1650
        %v2427 = vunpack.c.h.b16 %v1650
        %v2428 = vunpack.c.l.b16 %v1651
        %v2429 = vunpack.c.h.b16 %v1651
        %v2430 = vunpack.c.l.b16 %v1652
        %v2431 = vunpack.c.h.b16 %v1652
        %v2432 = vunpack.c.l.b16 %v1653
        %v2433 = vunpack.c.h.b16 %v1653
        %v2434 = vunpack.c.l.b16 %v1654
        %v2435 = vunpack.c.h.b16 %v1654
        %v2436 = vunpack.c.l.b16 %v1655
        %v2437 = vunpack.c.h.b16 %v1655
        %v2438 = vunpack.c.l.b16 %v1656
        %v2439 = vunpack.c.h.b16 %v1656
        %v2440 = vunpack.c.l.b16 %v1657
        %v2441 = vunpack.c.h.b16 %v1657
        %v2442 = vunpack.c.l.b16 %v1658
        %v2443 = vunpack.c.h.b16 %v1658
        %v2444 = vunpack.c.l.b16 %v1659
        %v2445 = vunpack.c.h.b16 %v1659
        %v2446 = vunpack.c.l.b16 %v1660
        %v2447 = vunpack.c.h.b16 %v1660
        %v2448 = vunpack.c.l.b16 %v1661
        %v2449 = vunpack.c.h.b16 %v1661
        %v2450 = vunpack.c.l.b16 %v1662
        %v2451 = vunpack.c.h.b16 %v1662
        %v2452 = vunpack.c.l.b16 %v1663
        %v2453 = vunpack.c.h.b16 %v1663
        %v2454 = vunpack.c.l.b16 %v1664
        %v2455 = vunpack.c.h.b16 %v1664
        %v2456 = vunpack.c.l.b16 %v1665
        %v2457 = vunpack.c.h.b16 %v1665
        %v2458 = vunpack.c.l.b16 %v1666
        %v2459 = vunpack.c.h.b16 %v1666
        %v2460 = vunpack.c.l.b16 %v1667
        %v2461 = vunpack.c.h.b16 %v1667
        %v2462 = vunpack.c.l.b16 %v1668
        %v2463 = vunpack.c.h.b16 %v1668
        %v2464 = vunpack.c.l.b16 %v1669
        %v2465 = vunpack.c.h.b16 %v1669
        %v2466 = vunpack.c.l.b16 %v1670
        %v2467 = vunpack.c.h.b16 %v1670
        %v2468 = vunpack.c.l.b16 %v1671
        %v2469 = vunpack.c.h.b16 %v1671
        %v2470 = vunpack.c.l.b16 %v1672
        %v2471 = vunpack.c.h.b16 %v1672
        %v2472 = vunpack.c.l.b16 %v1673
        %v2473 = vunpack.c.h.b16 %v1673
        %v2474 = vpack.c.b16 %v2222, %v2218
        %v2475 = vpack.c.b16 %v2223, %v2219
        %v2476 = vpack.c.b16 %v2224, %v2220
        %v2477 = vpack.c.b16 %v2225, %v2221
        %v2478 = vpack.c.b16 %v2230, %v2226
        %v2479 = vpack.c.b16 %v2231, %v2227
        %v2480 = vpack.c.b16 %v2232, %v2228
        %v2481 = vpack.c.b16 %v2233, %v2229
        %v2482 = vpack.c.b16 %v2238, %v2234
        %v2483 = vpack.c.b16 %v2239, %v2235
        %v2484 = vpack.c.b16 %v2240, %v2236
        %v2485 = vpack.c.b16 %v2241, %v2237
        %v2486 = vpack.c.b16 %v2246, %v2242
        %v2487 = vpack.c.b16 %v2247, %v2243
        %v2488 = vpack.c.b16 %v2248, %v2244
        %v2489 = vpack.c.b16 %v2249, %v2245
        %v2490 = vpack.c.b16 %v2254, %v2250
        %v2491 = vpack.c.b16 %v2255, %v2251
        %v2492 = vpack.c.b16 %v2256, %v2252
        %v2493 = vpack.c.b16 %v2257, %v2253
        %v2494 = vpack.c.b16 %v2262, %v2258
        %v2495 = vpack.c.b16 %v2263, %v2259
        %v2496 = vpack.c.b16 %v2264, %v2260
        %v2497 = vpack.c.b16 %v2265, %v2261
        %v2498 = vpack.c.b16 %v2270, %v2266
        %v2499 = vpack.c.b16 %v2271, %v2267
        %v2500 = vpack.c.b16 %v2272, %v2268
        %v2501 = vpack.c.b16 %v2273, %v2269
        %v2502 = vpack.c.b16 %v2278, %v2274
        %v2503 = vpack.c.b16 %v2279, %v2275
        %v2504 = vpack.c.b16 %v2280, %v2276
        %v2505 = vpack.c.b16 %v2281, %v2277
        %v2506 = vpack.c.b16 %v2286, %v2282
        %v2507 = vpack.c.b16 %v2287, %v2283
        %v2508 = vpack.c.b16 %v2288, %v2284
        %v2509 = vpack.c.b16 %v2289, %v2285
        %v2510 = vpack.c.b16 %v2294, %v2290
        %v2511 = vpack.c.b16 %v2295, %v2291
        %v2512 = vpack.c.b16 %v2296, %v2292
        %v2513 = vpack.c.b16 %v2297, %v2293
        %v2514 = vpack.c.b16 %v2302, %v2298
        %v2515 = vpack.c.b16 %v2303, %v2299
        %v2516 = vpack.c.b16 %v2304, %v2300
        %v2517 = vpack.c.b16 %v2305, %v2301
        %v2518 = vpack.c.b16 %v2310, %v2306
        %v2519 = vpack.c.b16 %v2311, %v2307
        %v2520 = vpack.c.b16 %v2312, %v2308
        %v2521 = vpack.c.b16 %v2313, %v2309
        %v2522 = vpack.c.b16 %v2318, %v2314
        %v2523 = vpack.c.b16 %v2319, %v2315
        %v2524 = vpack.c.b16 %v2320, %v2316
        %v2525 = vpack.c.b16 %v2321, %v2317
        %v2526 = vpack.c.b16 %v2326, %v2322
        %v2527 = vpack.c.b16 %v2327, %v2323
        %v2528 = vpack.c.b16 %v2328, %v2324
        %v2529 = vpack.c.b16 %v2329, %v2325
        %v2530 = vpack.c.b16 %v2334, %v2330
        %v2531 = vpack.c.b16 %v2335, %v2331
        %v2532 = vpack.c.b16 %v2336, %v2332
        %v2533 = vpack.c.b16 %v2337, %v2333
        %v2534 = vpack.c.b16 %v2342, %v2338
        %v2535 = vpack.c.b16 %v2343, %v2339
        %v2536 = vpack.c.b16 %v2344, %v2340
        %v2537 = vpack.c.b16 %v2345, %v2341
        %v2538 = vpack.c.b16 %v2350, %v2346
        %v2539 = vpack.c.b16 %v2351, %v2347
        %v2540 = vpack.c.b16 %v2352, %v2348
        %v2541 = vpack.c.b16 %v2353, %v2349
        %v2542 = vpack.c.b16 %v2358, %v2354
        %v2543 = vpack.c.b16 %v2359, %v2355
        %v2544 = vpack.c.b16 %v2360, %v2356
        %v2545 = vpack.c.b16 %v2361, %v2357
        %v2546 = vpack.c.b16 %v2366, %v2362
        %v2547 = vpack.c.b16 %v2367, %v2363
        %v2548 = vpack.c.b16 %v2368, %v2364
        %v2549 = vpack.c.b16 %v2369, %v2365
        %v2550 = vpack.c.b16 %v2374, %v2370
        %v2551 = vpack.c.b16 %v2375, %v2371
        %v2552 = vpack.c.b16 %v2376, %v2372
        %v2553 = vpack.c.b16 %v2377, %v2373
        %v2554 = vpack.c.b16 %v2382, %v2378
        %v2555 = vpack.c.b16 %v2383, %v2379
        %v2556 = vpack.c.b16 %v2384, %v2380
        %v2557 = vpack.c.b16 %v2385, %v2381
        %v2558 = vpack.c.b16 %v2390, %v2386
        %v2559 = vpack.c.b16 %v2391, %v2387
        %v2560 = vpack.c.b16 %v2392, %v2388
        %v2561 = vpack.c.b16 %v2393, %v2389
        %v2562 = vpack.c.b16 %v2398, %v2394
        %v2563 = vpack.c.b16 %v2399, %v2395
        %v2564 = vpack.c.b16 %v2400, %v2396
        %v2565 = vpack.c.b16 %v2401, %v2397
        %v2566 = vpack.c.b16 %v2406, %v2402
        %v2567 = vpack.c.b16 %v2407, %v2403
        %v2568 = vpack.c.b16 %v2408, %v2404
        %v2569 = vpack.c.b16 %v2409, %v2405
        %v2570 = vpack.c.b16 %v2414, %v2410
        %v2571 = vpack.c.b16 %v2415, %v2411
        %v2572 = vpack.c.b16 %v2416, %v2412
        %v2573 = vpack.c.b16 %v2417, %v2413
        %v2574 = vpack.c.b16 %v2422, %v2418
        %v2575 = vpack.c.b16 %v2423, %v2419
        %v2576 = vpack.c.b16 %v2424, %v2420
        %v2577 = vpack.c.b16 %v2425, %v2421
        %v2578 = vpack.c.b16 %v2430, %v2426
        %v2579 = vpack.c.b16 %v2431, %v2427
        %v2580 = vpack.c.b16 %v2432, %v2428
        %v2581 = vpack.c.b16 %v2433, %v2429
        %v2582 = vpack.c.b16 %v2438, %v2434
        %v2583 = vpack.c.b16 %v2439, %v2435
        %v2584 = vpack.c.b16 %v2440, %v2436
        %v2585 = vpack.c.b16 %v2441, %v2437
        %v2586 = vpack.c.b16 %v2446, %v2442
        %v2587 = vpack.c.b16 %v2447, %v2443
        %v2588 = vpack.c.b16 %v2448, %v2444
        %v2589 = vpack.c.b16 %v2449, %v2445
        %v2590 = vpack.c.b16 %v2454, %v2450
        %v2591 = vpack.c.b16 %v2455, %v2451
        %v2592 = vpack.c.b16 %v2456, %v2452
        %v2593 = vpack.c.b16 %v2457, %v2453
        %v2594 = vpack.c.b16 %v2462, %v2458
        %v2595 = vpack.c.b16 %v2463, %v2459
        %v2596 = vpack.c.b16 %v2464, %v2460
        %v2597 = vpack.c.b16 %v2465, %v2461
        %v2598 = vpack.c.b16 %v2470, %v2466
        %v2599 = vpack.c.b16 %v2471, %v2467
        %v2600 = vpack.c.b16 %v2472, %v2468
        %v2601 = vpack.c.b16 %v2473, %v2469
        %2730 = vmatprep.subr.bf16.mxu0 0
        %2731 = vmatpush1.bf16.msra.mxu0 %v1674
        %2732 = vmatprep.subr.bf16.mxu0 0
        %2733 = vmatpush1.bf16.msra.mxu0 %v1675
        %2734 = vmatprep.subr.bf16.mxu0 0
        %2735 = vmatpush1.bf16.msra.mxu0 %v1676
        %2736 = vmatprep.subr.bf16.mxu0 0
        %2737 = vmatpush1.bf16.msra.mxu0 %v1677
        %2738 = vmatprep.subr.bf16.mxu0 0
        %2739 = vmatpush1.bf16.msra.mxu0 %v1678
        %2740 = vmatprep.subr.bf16.mxu0 0
        %2741 = vmatpush1.bf16.msra.mxu0 %v1679
        %2742 = vmatprep.subr.bf16.mxu0 0
        %2743 = vmatpush1.bf16.msra.mxu0 %v1680
        %2744 = vmatprep.subr.bf16.mxu0 0
        %2745 = vmatpush1.bf16.msra.mxu0 %v1681
        %2746 = vmatprep.subr.bf16.mxu0 0
        %2747 = vmatpush1.bf16.msra.mxu0 %v1682
        %2748 = vmatprep.subr.bf16.mxu0 0
        %2749 = vmatpush1.bf16.msra.mxu0 %v1683
        %2750 = vmatprep.subr.bf16.mxu0 0
        %2751 = vmatpush1.bf16.msra.mxu0 %v1684
        %2752 = vmatprep.subr.bf16.mxu0 0
        %2753 = vmatpush1.bf16.msra.mxu0 %v1685
        %2754 = vmatprep.subr.bf16.mxu0 0
        %2755 = vmatpush1.bf16.msra.mxu0 %v1686
        %2756 = vmatprep.subr.bf16.mxu0 0
        %2757 = vmatpush1.bf16.msra.mxu0 %v1687
        %2758 = vmatprep.subr.bf16.mxu0 0
        %2759 = vmatpush1.bf16.msra.mxu0 %v1688
        %2760 = vmatprep.subr.bf16.mxu0 0
        %2761 = vmatpush1.bf16.msra.mxu0 %v1689
        %2762 = vmatprep.mubr.bf16.mxu0 %v2475
        %2763 = vmatmul.mubr.bf16.gmra.mrb[0].mxu0 %v2474
        %v2764 = vpop.f32.mrb[0].mxu0
        %v2765 = vadd.f32 %v1773, %v2764
        %v2766 = vpop.f32.mrb[0].mxu0
        %v2767 = vpop.f32.mrb[0].mxu0
        %v2768 = vadd.f32 %v1778, %v2767
        %v2769 = vpop.f32.mrb[0].mxu0
        %2770 = vmatprep.mubr.bf16.mxu0 %v2479
        %2771 = vmatmul.mubr.bf16.gmra.mrb[0].mxu0 %v2478
        %v2772 = vpop.f32.mrb[0].mxu0
        %v2773 = vadd.f32 %v1783, %v2772
        %v2774 = vpop.f32.mrb[0].mxu0
        %v2775 = vpop.f32.mrb[0].mxu0
        %v2776 = vadd.f32 %v1788, %v2775
        %v2777 = vpop.f32.mrb[0].mxu0
        %2778 = vmatprep.mubr.bf16.mxu0 %v2483
        %2779 = vmatmul.mubr.bf16.gmra.mrb[0].mxu0 %v2482
        %v2780 = vpop.f32.mrb[0].mxu0
        %v2781 = vadd.f32 %v1793, %v2780
        %v2782 = vpop.f32.mrb[0].mxu0
        %v2783 = vpop.f32.mrb[0].mxu0
        %v2784 = vadd.f32 %v1798, %v2783
        %v2785 = vpop.f32.mrb[0].mxu0
        %2786 = vmatprep.mubr.bf16.mxu0 %v2487
        %2787 = vmatmul.mubr.bf16.gmra.mrb[0].mxu0 %v2486
        %v2788 = vpop.f32.mrb[0].mxu0
        %v2789 = vadd.f32 %v1803, %v2788
        %v2790 = vpop.f32.mrb[0].mxu0
        %v2791 = vpop.f32.mrb[0].mxu0
        %v2792 = vadd.f32 %v1808, %v2791
        %v2793 = vpop.f32.mrb[0].mxu0
        %2794 = vmatprep.mubr.bf16.mxu0 %v2491
        %2795 = vmatmul.mubr.bf16.gmra.mrb[0].mxu0 %v2490
        %v2796 = vpop.f32.mrb[0].mxu0
        %v2797 = vadd.f32 %v1813, %v2796
        %v2798 = vpop.f32.mrb[0].mxu0
        %v2799 = vpop.f32.mrb[0].mxu0
        %v2800 = vadd.f32 %v1818, %v2799
        %v2801 = vpop.f32.mrb[0].mxu0
        %2802 = vmatprep.mubr.bf16.mxu0 %v2495
        %2803 = vmatmul.mubr.bf16.gmra.mrb[0].mxu0 %v2494
        %v2804 = vpop.f32.mrb[0].mxu0
        %v2805 = vadd.f32 %v1823, %v2804
        %v2806 = vpop.f32.mrb[0].mxu0
        %v2807 = vpop.f32.mrb[0].mxu0
        %v2808 = vadd.f32 %v1828, %v2807
        %v2809 = vpop.f32.mrb[0].mxu0
        %2810 = vmatprep.mubr.bf16.mxu0 %v2499
        %2811 = vmatmul.mubr.bf16.gmra.mrb[0].mxu0 %v2498
        %v2812 = vpop.f32.mrb[0].mxu0
        %v2813 = vadd.f32 %v1833, %v2812
        %v2814 = vpop.f32.mrb[0].mxu0
        %v2815 = vpop.f32.mrb[0].mxu0
        %v2816 = vadd.f32 %v1838, %v2815
        %v2817 = vpop.f32.mrb[0].mxu0
        %2818 = vmatprep.mubr.bf16.mxu0 %v2503
        %2819 = vmatmul.mubr.bf16.gmra.mrb[0].mxu0 %v2502
        %v2820 = vpop.f32.mrb[0].mxu0
        %v2821 = vadd.f32 %v1843, %v2820
        %v2822 = vpop.f32.mrb[0].mxu0
        %v2823 = vpop.f32.mrb[0].mxu0
        %v2824 = vadd.f32 %v1848, %v2823
        %v2825 = vpop.f32.mrb[0].mxu0
        %2826 = vmatprep.mubr.bf16.mxu0 %v2507
        %2827 = vmatmul.mubr.bf16.gmra.mrb[0].mxu0 %v2506
        %v2828 = vpop.f32.mrb[0].mxu0
        %v2829 = vadd.f32 %v1853, %v2828
        %v2830 = vpop.f32.mrb[0].mxu0
        %v2831 = vpop.f32.mrb[0].mxu0
        %v2832 = vadd.f32 %v1858, %v2831
        %v2833 = vpop.f32.mrb[0].mxu0
        %2834 = vmatprep.mubr.bf16.mxu0 %v2511
        %2835 = vmatmul.mubr.bf16.gmra.mrb[0].mxu0 %v2510
        %v2836 = vpop.f32.mrb[0].mxu0
        %v2837 = vadd.f32 %v1863, %v2836
        %v2838 = vpop.f32.mrb[0].mxu0
        %v2839 = vpop.f32.mrb[0].mxu0
        %v2840 = vadd.f32 %v1868, %v2839
        %v2841 = vpop.f32.mrb[0].mxu0
        %2842 = vmatprep.mubr.bf16.mxu0 %v2515
        %2843 = vmatmul.mubr.bf16.gmra.mrb[0].mxu0 %v2514
        %v2844 = vpop.f32.mrb[0].mxu0
        %v2845 = vadd.f32 %v1873, %v2844
        %v2846 = vpop.f32.mrb[0].mxu0
        %v2847 = vpop.f32.mrb[0].mxu0
        %v2848 = vadd.f32 %v1878, %v2847
        %v2849 = vpop.f32.mrb[0].mxu0
        %2850 = vmatprep.mubr.bf16.mxu0 %v2519
        %2851 = vmatmul.mubr.bf16.gmra.mrb[0].mxu0 %v2518
        %v2852 = vpop.f32.mrb[0].mxu0
        %v2853 = vadd.f32 %v1883, %v2852
        %v2854 = vpop.f32.mrb[0].mxu0
        %v2855 = vpop.f32.mrb[0].mxu0
        %v2856 = vadd.f32 %v1888, %v2855
        %v2857 = vpop.f32.mrb[0].mxu0
        %2858 = vmatprep.mubr.bf16.mxu0 %v2523
        %2859 = vmatmul.mubr.bf16.gmra.mrb[0].mxu0 %v2522
        %v2860 = vpop.f32.mrb[0].mxu0
        %v2861 = vadd.f32 %v1893, %v2860
        %v2862 = vpop.f32.mrb[0].mxu0
        %v2863 = vpop.f32.mrb[0].mxu0
        %v2864 = vadd.f32 %v1898, %v2863
        %v2865 = vpop.f32.mrb[0].mxu0
        %2866 = vmatprep.mubr.bf16.mxu0 %v2527
        %2867 = vmatmul.mubr.bf16.gmra.mrb[0].mxu0 %v2526
        %v2868 = vpop.f32.mrb[0].mxu0
        %v2869 = vadd.f32 %v1903, %v2868
        %v2870 = vpop.f32.mrb[0].mxu0
        %v2871 = vpop.f32.mrb[0].mxu0
        %v2872 = vadd.f32 %v1908, %v2871
        %v2873 = vpop.f32.mrb[0].mxu0
        %2874 = vmatprep.mubr.bf16.mxu0 %v2531
        %2875 = vmatmul.mubr.bf16.gmra.mrb[0].mxu0 %v2530
        %v2876 = vpop.f32.mrb[0].mxu0
        %v2877 = vadd.f32 %v1913, %v2876
        %v2878 = vpop.f32.mrb[0].mxu0
        %v2879 = vpop.f32.mrb[0].mxu0
        %v2880 = vadd.f32 %v1918, %v2879
        %v2881 = vpop.f32.mrb[0].mxu0
        %2882 = vmatprep.mubr.bf16.mxu0 %v2535
        %2883 = vmatmul.mubr.bf16.gmra.mrb[0].mxu0 %v2534
        %v2884 = vpop.f32.mrb[0].mxu0
        %v2885 = vadd.f32 %v1923, %v2884
        %v2886 = vpop.f32.mrb[0].mxu0
        %v2887 = vpop.f32.mrb[0].mxu0
        %v2888 = vadd.f32 %v1928, %v2887
        %v2889 = vpop.f32.mrb[0].mxu0
        %2890 = vmatprep.mubr.bf16.mxu0 %v2539
        %2891 = vmatmul.mubr.bf16.gmra.mrb[0].mxu0 %v2538
        %v2892 = vpop.f32.mrb[0].mxu0
        %v2893 = vadd.f32 %v1933, %v2892
        %v2894 = vpop.f32.mrb[0].mxu0
        %v2895 = vpop.f32.mrb[0].mxu0
        %v2896 = vadd.f32 %v1938, %v2895
        %v2897 = vpop.f32.mrb[0].mxu0
        %2898 = vmatprep.mubr.bf16.mxu0 %v2543
        %2899 = vmatmul.mubr.bf16.gmra.mrb[0].mxu0 %v2542
        %v2900 = vpop.f32.mrb[0].mxu0
        %v2901 = vadd.f32 %v1943, %v2900
        %v2902 = vpop.f32.mrb[0].mxu0
        %v2903 = vpop.f32.mrb[0].mxu0
        %v2904 = vadd.f32 %v1948, %v2903
        %v2905 = vpop.f32.mrb[0].mxu0
        %2906 = vmatprep.mubr.bf16.mxu0 %v2547
        %2907 = vmatmul.mubr.bf16.gmra.mrb[0].mxu0 %v2546
        %v2908 = vpop.f32.mrb[0].mxu0
        %v2909 = vadd.f32 %v1953, %v2908
        %v2910 = vpop.f32.mrb[0].mxu0
        %v2911 = vpop.f32.mrb[0].mxu0
        %v2912 = vadd.f32 %v1958, %v2911
        %v2913 = vpop.f32.mrb[0].mxu0
        %2914 = vmatprep.mubr.bf16.mxu0 %v2551
        %2915 = vmatmul.mubr.bf16.gmra.mrb[0].mxu0 %v2550
        %v2916 = vpop.f32.mrb[0].mxu0
        %v2917 = vadd.f32 %v1963, %v2916
        %v2918 = vpop.f32.mrb[0].mxu0
        %v2919 = vpop.f32.mrb[0].mxu0
        %v2920 = vadd.f32 %v1968, %v2919
        %v2921 = vpop.f32.mrb[0].mxu0
        %2922 = vmatprep.mubr.bf16.mxu0 %v2555
        %2923 = vmatmul.mubr.bf16.gmra.mrb[0].mxu0 %v2554
        %v2924 = vpop.f32.mrb[0].mxu0
        %v2925 = vadd.f32 %v1973, %v2924
        %v2926 = vpop.f32.mrb[0].mxu0
        %v2927 = vpop.f32.mrb[0].mxu0
        %v2928 = vadd.f32 %v1978, %v2927
        %v2929 = vpop.f32.mrb[0].mxu0
        %2930 = vmatprep.mubr.bf16.mxu0 %v2559
        %2931 = vmatmul.mubr.bf16.gmra.mrb[0].mxu0 %v2558
        %v2932 = vpop.f32.mrb[0].mxu0
        %v2933 = vadd.f32 %v1983, %v2932
        %v2934 = vpop.f32.mrb[0].mxu0
        %v2935 = vpop.f32.mrb[0].mxu0
        %v2936 = vadd.f32 %v1988, %v2935
        %v2937 = vpop.f32.mrb[0].mxu0
        %2938 = vmatprep.mubr.bf16.mxu0 %v2563
        %2939 = vmatmul.mubr.bf16.gmra.mrb[0].mxu0 %v2562
        %v2940 = vpop.f32.mrb[0].mxu0
        %v2941 = vadd.f32 %v1993, %v2940
        %v2942 = vpop.f32.mrb[0].mxu0
        %v2943 = vpop.f32.mrb[0].mxu0
        %v2944 = vadd.f32 %v1998, %v2943
        %v2945 = vpop.f32.mrb[0].mxu0
        %2946 = vmatprep.mubr.bf16.mxu0 %v2567
        %2947 = vmatmul.mubr.bf16.gmra.mrb[0].mxu0 %v2566
        %v2948 = vpop.f32.mrb[0].mxu0
        %v2949 = vadd.f32 %v2003, %v2948
        %v2950 = vpop.f32.mrb[0].mxu0
        %v2951 = vpop.f32.mrb[0].mxu0
        %v2952 = vadd.f32 %v2008, %v2951
        %v2953 = vpop.f32.mrb[0].mxu0
        %2954 = vmatprep.mubr.bf16.mxu0 %v2571
        %2955 = vmatmul.mubr.bf16.gmra.mrb[0].mxu0 %v2570
        %v2956 = vpop.f32.mrb[0].mxu0
        %v2957 = vadd.f32 %v2013, %v2956
        %v2958 = vpop.f32.mrb[0].mxu0
        %v2959 = vpop.f32.mrb[0].mxu0
        %v2960 = vadd.f32 %v2018, %v2959
        %v2961 = vpop.f32.mrb[0].mxu0
        %2962 = vmatprep.mubr.bf16.mxu0 %v2575
        %2963 = vmatmul.mubr.bf16.gmra.mrb[0].mxu0 %v2574
        %v2964 = vpop.f32.mrb[0].mxu0
        %v2965 = vadd.f32 %v2023, %v2964
        %v2966 = vpop.f32.mrb[0].mxu0
        %v2967 = vpop.f32.mrb[0].mxu0
        %v2968 = vadd.f32 %v2028, %v2967
        %v2969 = vpop.f32.mrb[0].mxu0
        %2970 = vmatprep.mubr.bf16.mxu0 %v2579
        %2971 = vmatmul.mubr.bf16.gmra.mrb[0].mxu0 %v2578
        %v2972 = vpop.f32.mrb[0].mxu0
        %v2973 = vadd.f32 %v2033, %v2972
        %v2974 = vpop.f32.mrb[0].mxu0
        %v2975 = vpop.f32.mrb[0].mxu0
        %v2976 = vadd.f32 %v2038, %v2975
        %v2977 = vpop.f32.mrb[0].mxu0
        %2978 = vmatprep.mubr.bf16.mxu0 %v2583
        %2979 = vmatmul.mubr.bf16.gmra.mrb[0].mxu0 %v2582
        %v2980 = vpop.f32.mrb[0].mxu0
        %v2981 = vadd.f32 %v2043, %v2980
        %v2982 = vpop.f32.mrb[0].mxu0
        %v2983 = vpop.f32.mrb[0].mxu0
        %v2984 = vadd.f32 %v2048, %v2983
        %v2985 = vpop.f32.mrb[0].mxu0
        %2986 = vmatprep.mubr.bf16.mxu0 %v2587
        %2987 = vmatmul.mubr.bf16.gmra.mrb[0].mxu0 %v2586
        %v2988 = vpop.f32.mrb[0].mxu0
        %v2989 = vadd.f32 %v2053, %v2988
        %v2990 = vpop.f32.mrb[0].mxu0
        %v2991 = vpop.f32.mrb[0].mxu0
        %v2992 = vadd.f32 %v2058, %v2991
        %v2993 = vpop.f32.mrb[0].mxu0
        %2994 = vmatprep.mubr.bf16.mxu0 %v2591
        %2995 = vmatmul.mubr.bf16.gmra.mrb[0].mxu0 %v2590
        %v2996 = vpop.f32.mrb[0].mxu0
        %v2997 = vadd.f32 %v2063, %v2996
        %v2998 = vpop.f32.mrb[0].mxu0
        %v2999 = vpop.f32.mrb[0].mxu0
        %v3000 = vadd.f32 %v2068, %v2999
        %v3001 = vpop.f32.mrb[0].mxu0
        %3002 = vmatprep.mubr.bf16.mxu0 %v2595
        %3003 = vmatmul.mubr.bf16.gmra.mrb[0].mxu0 %v2594
        %v3004 = vpop.f32.mrb[0].mxu0
        %v3005 = vadd.f32 %v2073, %v3004
        %v3006 = vpop.f32.mrb[0].mxu0
        %v3007 = vpop.f32.mrb[0].mxu0
        %v3008 = vadd.f32 %v2078, %v3007
        %v3009 = vpop.f32.mrb[0].mxu0
        %3010 = vmatprep.mubr.bf16.mxu0 %v2599
        %3011 = vmatmul.mubr.bf16.gmra.mrb[0].mxu0 %v2598
        %v3012 = vpop.f32.mrb[0].mxu0
        %v3013 = vadd.f32 %v2083, %v3012
        %v3014 = vpop.f32.mrb[0].mxu0
        %v3015 = vpop.f32.mrb[0].mxu0
        %v3016 = vadd.f32 %v2088, %v3015
        %v3017 = vpop.f32.mrb[0].mxu0
        %3018 = vdwg.mxu0
        %3019 = vmatprep.subr.bf16.mxu0 0
        %3020 = vmatpush1.bf16.msra.mxu0 %v1690
        %3021 = vmatprep.subr.bf16.mxu0 0
        %3022 = vmatpush1.bf16.msra.mxu0 %v1691
        %3023 = vmatprep.subr.bf16.mxu0 0
        %3024 = vmatpush1.bf16.msra.mxu0 %v1692
        %3025 = vmatprep.subr.bf16.mxu0 0
        %3026 = vmatpush1.bf16.msra.mxu0 %v1693
        %3027 = vmatprep.subr.bf16.mxu0 0
        %3028 = vmatpush1.bf16.msra.mxu0 %v1694
        %3029 = vmatprep.subr.bf16.mxu0 0
        %3030 = vmatpush1.bf16.msra.mxu0 %v1695
        %3031 = vmatprep.subr.bf16.mxu0 0
        %3032 = vmatpush1.bf16.msra.mxu0 %v1696
        %3033 = vmatprep.subr.bf16.mxu0 0
        %3034 = vmatpush1.bf16.msra.mxu0 %v1697
        %3035 = vmatprep.subr.bf16.mxu0 0
        %3036 = vmatpush1.bf16.msra.mxu0 %v1698
        %3037 = vmatprep.subr.bf16.mxu0 0
        %3038 = vmatpush1.bf16.msra.mxu0 %v1699
        %3039 = vmatprep.subr.bf16.mxu0 0
        %3040 = vmatpush1.bf16.msra.mxu0 %v1700
        %3041 = vmatprep.subr.bf16.mxu0 0
        %3042 = vmatpush1.bf16.msra.mxu0 %v1701
        %3043 = vmatprep.subr.bf16.mxu0 0
        %3044 = vmatpush1.bf16.msra.mxu0 %v1702
        %3045 = vmatprep.subr.bf16.mxu0 0
        %3046 = vmatpush1.bf16.msra.mxu0 %v1703
        %3047 = vmatprep.subr.bf16.mxu0 0
        %3048 = vmatpush1.bf16.msra.mxu0 %v1704
        %3049 = vmatprep.subr.bf16.mxu0 0
        %3050 = vmatpush1.bf16.msra.mxu0 %v1705
        %3051 = vmatprep.mubr.bf16.mxu0 %v2477
        %3052 = vmatmul.mubr.bf16.gmra.mrb[0].mxu0 %v2476
        %v3053 = vpop.f32.mrb[0].mxu0
        %v3054 = vadd.f32 %v2765, %v3053
        %v3055 = vpop.f32.mrb[0].mxu0
        %v3056 = vpop.f32.mrb[0].mxu0
        %v3057 = vadd.f32 %v2768, %v3056
        %v3058 = vpop.f32.mrb[0].mxu0
        %3059 = vmatprep.mubr.bf16.mxu0 %v2481
        %3060 = vmatmul.mubr.bf16.gmra.mrb[0].mxu0 %v2480
        %v3061 = vpop.f32.mrb[0].mxu0
        %v3062 = vadd.f32 %v2773, %v3061
        %v3063 = vpop.f32.mrb[0].mxu0
        %v3064 = vpop.f32.mrb[0].mxu0
        %v3065 = vadd.f32 %v2776, %v3064
        %v3066 = vpop.f32.mrb[0].mxu0
        %3067 = vmatprep.mubr.bf16.mxu0 %v2485
        %3068 = vmatmul.mubr.bf16.gmra.mrb[0].mxu0 %v2484
        %v3069 = vpop.f32.mrb[0].mxu0
        %v3070 = vadd.f32 %v2781, %v3069
        %v3071 = vpop.f32.mrb[0].mxu0
        %v3072 = vpop.f32.mrb[0].mxu0
        %v3073 = vadd.f32 %v2784, %v3072
        %v3074 = vpop.f32.mrb[0].mxu0
        %3075 = vmatprep.mubr.bf16.mxu0 %v2489
        %3076 = vmatmul.mubr.bf16.gmra.mrb[0].mxu0 %v2488
        %v3077 = vpop.f32.mrb[0].mxu0
        %v3078 = vadd.f32 %v2789, %v3077
        %v3079 = vpop.f32.mrb[0].mxu0
        %v3080 = vpop.f32.mrb[0].mxu0
        %v3081 = vadd.f32 %v2792, %v3080
        %v3082 = vpop.f32.mrb[0].mxu0
        %3083 = vmatprep.mubr.bf16.mxu0 %v2493
        %3084 = vmatmul.mubr.bf16.gmra.mrb[0].mxu0 %v2492
        %v3085 = vpop.f32.mrb[0].mxu0
        %v3086 = vadd.f32 %v2797, %v3085
        %v3087 = vpop.f32.mrb[0].mxu0
        %v3088 = vpop.f32.mrb[0].mxu0
        %v3089 = vadd.f32 %v2800, %v3088
        %v3090 = vpop.f32.mrb[0].mxu0
        %3091 = vmatprep.mubr.bf16.mxu0 %v2497
        %3092 = vmatmul.mubr.bf16.gmra.mrb[0].mxu0 %v2496
        %v3093 = vpop.f32.mrb[0].mxu0
        %v3094 = vadd.f32 %v2805, %v3093
        %v3095 = vpop.f32.mrb[0].mxu0
        %v3096 = vpop.f32.mrb[0].mxu0
        %v3097 = vadd.f32 %v2808, %v3096
        %v3098 = vpop.f32.mrb[0].mxu0
        %3099 = vmatprep.mubr.bf16.mxu0 %v2501
        %3100 = vmatmul.mubr.bf16.gmra.mrb[0].mxu0 %v2500
        %v3101 = vpop.f32.mrb[0].mxu0
        %v3102 = vadd.f32 %v2813, %v3101
        %v3103 = vpop.f32.mrb[0].mxu0
        %v3104 = vpop.f32.mrb[0].mxu0
        %v3105 = vadd.f32 %v2816, %v3104
        %v3106 = vpop.f32.mrb[0].mxu0
        %3107 = vmatprep.mubr.bf16.mxu0 %v2505
        %3108 = vmatmul.mubr.bf16.gmra.mrb[0].mxu0 %v2504
        %v3109 = vpop.f32.mrb[0].mxu0
        %v3110 = vadd.f32 %v2821, %v3109
        %v3111 = vpop.f32.mrb[0].mxu0
        %v3112 = vpop.f32.mrb[0].mxu0
        %v3113 = vadd.f32 %v2824, %v3112
        %v3114 = vpop.f32.mrb[0].mxu0
        %3115 = vmatprep.mubr.bf16.mxu0 %v2509
        %3116 = vmatmul.mubr.bf16.gmra.mrb[0].mxu0 %v2508
        %v3117 = vpop.f32.mrb[0].mxu0
        %v3118 = vadd.f32 %v2829, %v3117
        %v3119 = vpop.f32.mrb[0].mxu0
        %v3120 = vpop.f32.mrb[0].mxu0
        %v3121 = vadd.f32 %v2832, %v3120
        %v3122 = vpop.f32.mrb[0].mxu0
        %3123 = vmatprep.mubr.bf16.mxu0 %v2513
        %3124 = vmatmul.mubr.bf16.gmra.mrb[0].mxu0 %v2512
        %v3125 = vpop.f32.mrb[0].mxu0
        %v3126 = vadd.f32 %v2837, %v3125
        %v3127 = vpop.f32.mrb[0].mxu0
        %v3128 = vpop.f32.mrb[0].mxu0
        %v3129 = vadd.f32 %v2840, %v3128
        %v3130 = vpop.f32.mrb[0].mxu0
        %3131 = vmatprep.mubr.bf16.mxu0 %v2517
        %3132 = vmatmul.mubr.bf16.gmra.mrb[0].mxu0 %v2516
        %v3133 = vpop.f32.mrb[0].mxu0
        %v3134 = vadd.f32 %v2845, %v3133
        %v3135 = vpop.f32.mrb[0].mxu0
        %v3136 = vpop.f32.mrb[0].mxu0
        %v3137 = vadd.f32 %v2848, %v3136
        %v3138 = vpop.f32.mrb[0].mxu0
        %3139 = vmatprep.mubr.bf16.mxu0 %v2521
        %3140 = vmatmul.mubr.bf16.gmra.mrb[0].mxu0 %v2520
        %v3141 = vpop.f32.mrb[0].mxu0
        %v3142 = vadd.f32 %v2853, %v3141
        %v3143 = vpop.f32.mrb[0].mxu0
        %v3144 = vpop.f32.mrb[0].mxu0
        %v3145 = vadd.f32 %v2856, %v3144
        %v3146 = vpop.f32.mrb[0].mxu0
        %3147 = vmatprep.mubr.bf16.mxu0 %v2525
        %3148 = vmatmul.mubr.bf16.gmra.mrb[0].mxu0 %v2524
        %v3149 = vpop.f32.mrb[0].mxu0
        %v3150 = vadd.f32 %v2861, %v3149
        %v3151 = vpop.f32.mrb[0].mxu0
        %v3152 = vpop.f32.mrb[0].mxu0
        %v3153 = vadd.f32 %v2864, %v3152
        %v3154 = vpop.f32.mrb[0].mxu0
        %3155 = vmatprep.mubr.bf16.mxu0 %v2529
        %3156 = vmatmul.mubr.bf16.gmra.mrb[0].mxu0 %v2528
        %v3157 = vpop.f32.mrb[0].mxu0
        %v3158 = vadd.f32 %v2869, %v3157
        %v3159 = vpop.f32.mrb[0].mxu0
        %v3160 = vpop.f32.mrb[0].mxu0
        %v3161 = vadd.f32 %v2872, %v3160
        %v3162 = vpop.f32.mrb[0].mxu0
        %3163 = vmatprep.mubr.bf16.mxu0 %v2533
        %3164 = vmatmul.mubr.bf16.gmra.mrb[0].mxu0 %v2532
        %v3165 = vpop.f32.mrb[0].mxu0
        %v3166 = vadd.f32 %v2877, %v3165
        %v3167 = vpop.f32.mrb[0].mxu0
        %v3168 = vpop.f32.mrb[0].mxu0
        %v3169 = vadd.f32 %v2880, %v3168
        %v3170 = vpop.f32.mrb[0].mxu0
        %3171 = vmatprep.mubr.bf16.mxu0 %v2537
        %3172 = vmatmul.mubr.bf16.gmra.mrb[0].mxu0 %v2536
        %v3173 = vpop.f32.mrb[0].mxu0
        %v3174 = vadd.f32 %v2885, %v3173
        %v3175 = vpop.f32.mrb[0].mxu0
        %v3176 = vpop.f32.mrb[0].mxu0
        %v3177 = vadd.f32 %v2888, %v3176
        %v3178 = vpop.f32.mrb[0].mxu0
        %3179 = vmatprep.mubr.bf16.mxu0 %v2541
        %3180 = vmatmul.mubr.bf16.gmra.mrb[0].mxu0 %v2540
        %v3181 = vpop.f32.mrb[0].mxu0
        %v3182 = vadd.f32 %v2893, %v3181
        %v3183 = vpop.f32.mrb[0].mxu0
        %v3184 = vpop.f32.mrb[0].mxu0
        %v3185 = vadd.f32 %v2896, %v3184
        %v3186 = vpop.f32.mrb[0].mxu0
        %3187 = vmatprep.mubr.bf16.mxu0 %v2545
        %3188 = vmatmul.mubr.bf16.gmra.mrb[0].mxu0 %v2544
        %v3189 = vpop.f32.mrb[0].mxu0
        %v3190 = vadd.f32 %v2901, %v3189
        %v3191 = vpop.f32.mrb[0].mxu0
        %v3192 = vpop.f32.mrb[0].mxu0
        %v3193 = vadd.f32 %v2904, %v3192
        %v3194 = vpop.f32.mrb[0].mxu0
        %3195 = vmatprep.mubr.bf16.mxu0 %v2549
        %3196 = vmatmul.mubr.bf16.gmra.mrb[0].mxu0 %v2548
        %v3197 = vpop.f32.mrb[0].mxu0
        %v3198 = vadd.f32 %v2909, %v3197
        %v3199 = vpop.f32.mrb[0].mxu0
        %v3200 = vpop.f32.mrb[0].mxu0
        %v3201 = vadd.f32 %v2912, %v3200
        %v3202 = vpop.f32.mrb[0].mxu0
        %3203 = vmatprep.mubr.bf16.mxu0 %v2553
        %3204 = vmatmul.mubr.bf16.gmra.mrb[0].mxu0 %v2552
        %v3205 = vpop.f32.mrb[0].mxu0
        %v3206 = vadd.f32 %v2917, %v3205
        %v3207 = vpop.f32.mrb[0].mxu0
        %v3208 = vpop.f32.mrb[0].mxu0
        %v3209 = vadd.f32 %v2920, %v3208
        %v3210 = vpop.f32.mrb[0].mxu0
        %3211 = vmatprep.mubr.bf16.mxu0 %v2557
        %3212 = vmatmul.mubr.bf16.gmra.mrb[0].mxu0 %v2556
        %v3213 = vpop.f32.mrb[0].mxu0
        %v3214 = vadd.f32 %v2925, %v3213
        %v3215 = vpop.f32.mrb[0].mxu0
        %v3216 = vpop.f32.mrb[0].mxu0
        %v3217 = vadd.f32 %v2928, %v3216
        %v3218 = vpop.f32.mrb[0].mxu0
        %3219 = vmatprep.mubr.bf16.mxu0 %v2561
        %3220 = vmatmul.mubr.bf16.gmra.mrb[0].mxu0 %v2560
        %v3221 = vpop.f32.mrb[0].mxu0
        %v3222 = vadd.f32 %v2933, %v3221
        %v3223 = vpop.f32.mrb[0].mxu0
        %v3224 = vpop.f32.mrb[0].mxu0
        %v3225 = vadd.f32 %v2936, %v3224
        %v3226 = vpop.f32.mrb[0].mxu0
        %3227 = vmatprep.mubr.bf16.mxu0 %v2565
        %3228 = vmatmul.mubr.bf16.gmra.mrb[0].mxu0 %v2564
        %v3229 = vpop.f32.mrb[0].mxu0
        %v3230 = vadd.f32 %v2941, %v3229
        %v3231 = vpop.f32.mrb[0].mxu0
        %v3232 = vpop.f32.mrb[0].mxu0
        %v3233 = vadd.f32 %v2944, %v3232
        %v3234 = vpop.f32.mrb[0].mxu0
        %3235 = vmatprep.mubr.bf16.mxu0 %v2569
        %3236 = vmatmul.mubr.bf16.gmra.mrb[0].mxu0 %v2568
        %v3237 = vpop.f32.mrb[0].mxu0
        %v3238 = vadd.f32 %v2949, %v3237
        %v3239 = vpop.f32.mrb[0].mxu0
        %v3240 = vpop.f32.mrb[0].mxu0
        %v3241 = vadd.f32 %v2952, %v3240
        %v3242 = vpop.f32.mrb[0].mxu0
        %3243 = vmatprep.mubr.bf16.mxu0 %v2573
        %3244 = vmatmul.mubr.bf16.gmra.mrb[0].mxu0 %v2572
        %v3245 = vpop.f32.mrb[0].mxu0
        %v3246 = vadd.f32 %v2957, %v3245
        %v3247 = vpop.f32.mrb[0].mxu0
        %v3248 = vpop.f32.mrb[0].mxu0
        %v3249 = vadd.f32 %v2960, %v3248
        %v3250 = vpop.f32.mrb[0].mxu0
        %3251 = vmatprep.mubr.bf16.mxu0 %v2577
        %3252 = vmatmul.mubr.bf16.gmra.mrb[0].mxu0 %v2576
        %v3253 = vpop.f32.mrb[0].mxu0
        %v3254 = vadd.f32 %v2965, %v3253
        %v3255 = vpop.f32.mrb[0].mxu0
        %v3256 = vpop.f32.mrb[0].mxu0
        %v3257 = vadd.f32 %v2968, %v3256
        %v3258 = vpop.f32.mrb[0].mxu0
        %3259 = vmatprep.mubr.bf16.mxu0 %v2581
        %3260 = vmatmul.mubr.bf16.gmra.mrb[0].mxu0 %v2580
        %v3261 = vpop.f32.mrb[0].mxu0
        %v3262 = vadd.f32 %v2973, %v3261
        %v3263 = vpop.f32.mrb[0].mxu0
        %v3264 = vpop.f32.mrb[0].mxu0
        %v3265 = vadd.f32 %v2976, %v3264
        %v3266 = vpop.f32.mrb[0].mxu0
        %3267 = vmatprep.mubr.bf16.mxu0 %v2585
        %3268 = vmatmul.mubr.bf16.gmra.mrb[0].mxu0 %v2584
        %v3269 = vpop.f32.mrb[0].mxu0
        %v3270 = vadd.f32 %v2981, %v3269
        %v3271 = vpop.f32.mrb[0].mxu0
        %v3272 = vpop.f32.mrb[0].mxu0
        %v3273 = vadd.f32 %v2984, %v3272
        %v3274 = vpop.f32.mrb[0].mxu0
        %3275 = vmatprep.mubr.bf16.mxu0 %v2589
        %3276 = vmatmul.mubr.bf16.gmra.mrb[0].mxu0 %v2588
        %v3277 = vpop.f32.mrb[0].mxu0
        %v3278 = vadd.f32 %v2989, %v3277
        %v3279 = vpop.f32.mrb[0].mxu0
        %v3280 = vpop.f32.mrb[0].mxu0
        %v3281 = vadd.f32 %v2992, %v3280
        %v3282 = vpop.f32.mrb[0].mxu0
        %3283 = vmatprep.mubr.bf16.mxu0 %v2593
        %3284 = vmatmul.mubr.bf16.gmra.mrb[0].mxu0 %v2592
        %v3285 = vpop.f32.mrb[0].mxu0
        %v3286 = vadd.f32 %v2997, %v3285
        %v3287 = vpop.f32.mrb[0].mxu0
        %v3288 = vpop.f32.mrb[0].mxu0
        %v3289 = vadd.f32 %v3000, %v3288
        %v3290 = vpop.f32.mrb[0].mxu0
        %3291 = vmatprep.mubr.bf16.mxu0 %v2597
        %3292 = vmatmul.mubr.bf16.gmra.mrb[0].mxu0 %v2596
        %v3293 = vpop.f32.mrb[0].mxu0
        %v3294 = vadd.f32 %v3005, %v3293
        %v3295 = vpop.f32.mrb[0].mxu0
        %v3296 = vpop.f32.mrb[0].mxu0
        %v3297 = vadd.f32 %v3008, %v3296
        %v3298 = vpop.f32.mrb[0].mxu0
        %3299 = vmatprep.mubr.bf16.mxu0 %v2601
        %3300 = vmatmul.mubr.bf16.gmra.mrb[0].mxu0 %v2600
        %v3301 = vpop.f32.mrb[0].mxu0
        %v3302 = vadd.f32 %v3013, %v3301
        %v3303 = vpop.f32.mrb[0].mxu0
        %v3304 = vpop.f32.mrb[0].mxu0
        %v3305 = vadd.f32 %v3016, %v3304
        %v3306 = vpop.f32.mrb[0].mxu0
        %3307 = vdwg.mxu0
        %v3308 = vmax.f32 %v3054, 0.0
        %v3309 = vmax.f32 %v3057, 0.0
        %v3310 = vmax.f32 %v3062, 0.0
        %v3311 = vmax.f32 %v3065, 0.0
        %v3312 = vmax.f32 %v3070, 0.0
        %v3313 = vmax.f32 %v3073, 0.0
        %v3314 = vmax.f32 %v3078, 0.0
        %v3315 = vmax.f32 %v3081, 0.0
        %v3316 = vmax.f32 %v3086, 0.0
        %v3317 = vmax.f32 %v3089, 0.0
        %v3318 = vmax.f32 %v3094, 0.0
        %v3319 = vmax.f32 %v3097, 0.0
        %v3320 = vmax.f32 %v3102, 0.0
        %v3321 = vmax.f32 %v3105, 0.0
        %v3322 = vmax.f32 %v3110, 0.0
        %v3323 = vmax.f32 %v3113, 0.0
        %v3324 = vmax.f32 %v3118, 0.0
        %v3325 = vmax.f32 %v3121, 0.0
        %v3326 = vmax.f32 %v3126, 0.0
        %v3327 = vmax.f32 %v3129, 0.0
        %v3328 = vmax.f32 %v3134, 0.0
        %v3329 = vmax.f32 %v3137, 0.0
        %v3330 = vmax.f32 %v3142, 0.0
        %v3331 = vmax.f32 %v3145, 0.0
        %v3332 = vmax.f32 %v3150, 0.0
        %v3333 = vmax.f32 %v3153, 0.0
        %v3334 = vmax.f32 %v3158, 0.0
        %v3335 = vmax.f32 %v3161, 0.0
        %v3336 = vmax.f32 %v3166, 0.0
        %v3337 = vmax.f32 %v3169, 0.0
        %v3338 = vmax.f32 %v3174, 0.0
        %v3339 = vmax.f32 %v3177, 0.0
        %v3340 = vmax.f32 %v3182, 0.0
        %v3341 = vmax.f32 %v3185, 0.0
        %v3342 = vmax.f32 %v3190, 0.0
        %v3343 = vmax.f32 %v3193, 0.0
        %v3344 = vmax.f32 %v3198, 0.0
        %v3345 = vmax.f32 %v3201, 0.0
        %v3346 = vmax.f32 %v3206, 0.0
        %v3347 = vmax.f32 %v3209, 0.0
        %v3348 = vmax.f32 %v3214, 0.0
        %v3349 = vmax.f32 %v3217, 0.0
        %v3350 = vmax.f32 %v3222, 0.0
        %v3351 = vmax.f32 %v3225, 0.0
        %v3352 = vmax.f32 %v3230, 0.0
        %v3353 = vmax.f32 %v3233, 0.0
        %v3354 = vmax.f32 %v3238, 0.0
        %v3355 = vmax.f32 %v3241, 0.0
        %v3356 = vmax.f32 %v3246, 0.0
        %v3357 = vmax.f32 %v3249, 0.0
        %v3358 = vmax.f32 %v3254, 0.0
        %v3359 = vmax.f32 %v3257, 0.0
        %v3360 = vmax.f32 %v3262, 0.0
        %v3361 = vmax.f32 %v3265, 0.0
        %v3362 = vmax.f32 %v3270, 0.0
        %v3363 = vmax.f32 %v3273, 0.0
        %v3364 = vmax.f32 %v3278, 0.0
        %v3365 = vmax.f32 %v3281, 0.0
        %v3366 = vmax.f32 %v3286, 0.0
        %v3367 = vmax.f32 %v3289, 0.0
        %v3368 = vmax.f32 %v3294, 0.0
        %v3369 = vmax.f32 %v3297, 0.0
        %v3370 = vmax.f32 %v3302, 0.0
        %v3371 = vmax.f32 %v3305, 0.0
        %v3372 = vld [vmem:[%s5] sm:$0xff]
        %v3373 = vld [vmem:[%s5 + $0x8] sm:$0xff]
        %v3374 = vld [vmem:[%s5 + $0x10] sm:$0xff]
        %v3375 = vld [vmem:[%s5 + $0x18] sm:$0xff]
        %v3376 = vld [vmem:[%s5 + $0x20] sm:$0xff]
        %v3377 = vld [vmem:[%s5 + $0x28] sm:$0xff]
        %v3378 = vld [vmem:[%s5 + $0x30] sm:$0xff]
        %v3379 = vld [vmem:[%s5 + $0x38] sm:$0xff]
        %v3380 = vld [vmem:[%s5 + $0x40] sm:$0xff]
        %v3381 = vld [vmem:[%s5 + $0x48] sm:$0xff]
        %v3382 = vld [vmem:[%s5 + $0x50] sm:$0xff]
        %v3383 = vld [vmem:[%s5 + $0x58] sm:$0xff]
        %v3384 = vld [vmem:[%s5 + $0x60] sm:$0xff]
        %v3385 = vld [vmem:[%s5 + $0x68] sm:$0xff]
        %v3386 = vld [vmem:[%s5 + $0x70] sm:$0xff]
        %v3387 = vld [vmem:[%s5 + $0x78] sm:$0xff]
        %v3388 = vld [vmem:[%s5 + $0x80] sm:$0xff]
        %v3389 = vld [vmem:[%s5 + $0x88] sm:$0xff]
        %v3390 = vld [vmem:[%s5 + $0x90] sm:$0xff]
        %v3391 = vld [vmem:[%s5 + $0x98] sm:$0xff]
        %v3392 = vld [vmem:[%s5 + $0xa0] sm:$0xff]
        %v3393 = vld [vmem:[%s5 + $0xa8] sm:$0xff]
        %v3394 = vld [vmem:[%s5 + $0xb0] sm:$0xff]
        %v3395 = vld [vmem:[%s5 + $0xb8] sm:$0xff]
        %v3396 = vld [vmem:[%s5 + $0xc0] sm:$0xff]
        %v3397 = vld [vmem:[%s5 + $0xc8] sm:$0xff]
        %v3398 = vld [vmem:[%s5 + $0xd0] sm:$0xff]
        %v3399 = vld [vmem:[%s5 + $0xd8] sm:$0xff]
        %v3400 = vld [vmem:[%s5 + $0xe0] sm:$0xff]
        %v3401 = vld [vmem:[%s5 + $0xe8] sm:$0xff]
        %v3402 = vld [vmem:[%s5 + $0xf0] sm:$0xff]
        %v3403 = vld [vmem:[%s5 + $0xf8] sm:$0xff]
        %v3404 = vld [vmem:[%s5 + $0x100] sm:$0xff]
        %v3405 = vld [vmem:[%s5 + $0x108] sm:$0xff]
        %v3406 = vld [vmem:[%s5 + $0x110] sm:$0xff]
        %v3407 = vld [vmem:[%s5 + $0x118] sm:$0xff]
        %v3408 = vld [vmem:[%s5 + $0x120] sm:$0xff]
        %v3409 = vld [vmem:[%s5 + $0x128] sm:$0xff]
        %v3410 = vld [vmem:[%s5 + $0x130] sm:$0xff]
        %v3411 = vld [vmem:[%s5 + $0x138] sm:$0xff]
        %v3412 = vld [vmem:[%s5 + $0x140] sm:$0xff]
        %v3413 = vld [vmem:[%s5 + $0x148] sm:$0xff]
        %v3414 = vld [vmem:[%s5 + $0x150] sm:$0xff]
        %v3415 = vld [vmem:[%s5 + $0x158] sm:$0xff]
        %v3416 = vld [vmem:[%s5 + $0x160] sm:$0xff]
        %v3417 = vld [vmem:[%s5 + $0x168] sm:$0xff]
        %v3418 = vld [vmem:[%s5 + $0x170] sm:$0xff]
        %v3419 = vld [vmem:[%s5 + $0x178] sm:$0xff]
        %v3420 = vld [vmem:[%s5 + $0x180] sm:$0xff]
        %v3421 = vld [vmem:[%s5 + $0x188] sm:$0xff]
        %v3422 = vld [vmem:[%s5 + $0x190] sm:$0xff]
        %v3423 = vld [vmem:[%s5 + $0x198] sm:$0xff]
        %v3424 = vld [vmem:[%s5 + $0x1a0] sm:$0xff]
        %v3425 = vld [vmem:[%s5 + $0x1a8] sm:$0xff]
        %v3426 = vld [vmem:[%s5 + $0x1b0] sm:$0xff]
        %v3427 = vld [vmem:[%s5 + $0x1b8] sm:$0xff]
        %v3428 = vld [vmem:[%s5 + $0x1c0] sm:$0xff]
        %v3429 = vld [vmem:[%s5 + $0x1c8] sm:$0xff]
        %v3430 = vld [vmem:[%s5 + $0x1d0] sm:$0xff]
        %v3431 = vld [vmem:[%s5 + $0x1d8] sm:$0xff]
        %v3432 = vld [vmem:[%s5 + $0x1e0] sm:$0xff]
        %v3433 = vld [vmem:[%s5 + $0x1e8] sm:$0xff]
        %v3434 = vld [vmem:[%s5 + $0x1f0] sm:$0xff]
        %v3435 = vld [vmem:[%s5 + $0x1f8] sm:$0xff]
        %3437 = vset.pattern.permute.xlu0 0
        %3438 = vperm.xlu0 %3437, %v3372
        %v3439 = vpop.permute.xlu0 %3438
        %3442 = vset.pattern.permute.xlu0 0
        %3443 = vperm.xlu0 %3442, %v3373
        %v3444 = vpop.permute.xlu0 %3443
        %3447 = vset.pattern.permute.xlu0 0
        %3448 = vperm.xlu0 %3447, %v3374
        %v3449 = vpop.permute.xlu0 %3448
        %3452 = vset.pattern.permute.xlu0 0
        %3453 = vperm.xlu0 %3452, %v3375
        %v3454 = vpop.permute.xlu0 %3453
        %3457 = vset.pattern.permute.xlu0 0
        %3458 = vperm.xlu0 %3457, %v3376
        %v3459 = vpop.permute.xlu0 %3458
        %3462 = vset.pattern.permute.xlu0 0
        %3463 = vperm.xlu0 %3462, %v3377
        %v3464 = vpop.permute.xlu0 %3463
        %3467 = vset.pattern.permute.xlu0 0
        %3468 = vperm.xlu0 %3467, %v3378
        %v3469 = vpop.permute.xlu0 %3468
        %3472 = vset.pattern.permute.xlu0 0
        %3473 = vperm.xlu0 %3472, %v3379
        %v3474 = vpop.permute.xlu0 %3473
        %3477 = vset.pattern.permute.xlu0 0
        %3478 = vperm.xlu0 %3477, %v3380
        %v3479 = vpop.permute.xlu0 %3478
        %3482 = vset.pattern.permute.xlu0 0
        %3483 = vperm.xlu0 %3482, %v3381
        %v3484 = vpop.permute.xlu0 %3483
        %3487 = vset.pattern.permute.xlu0 0
        %3488 = vperm.xlu0 %3487, %v3382
        %v3489 = vpop.permute.xlu0 %3488
        %3492 = vset.pattern.permute.xlu0 0
        %3493 = vperm.xlu0 %3492, %v3383
        %v3494 = vpop.permute.xlu0 %3493
        %3497 = vset.pattern.permute.xlu0 0
        %3498 = vperm.xlu0 %3497, %v3384
        %v3499 = vpop.permute.xlu0 %3498
        %3502 = vset.pattern.permute.xlu0 0
        %3503 = vperm.xlu0 %3502, %v3385
        %v3504 = vpop.permute.xlu0 %3503
        %3507 = vset.pattern.permute.xlu0 0
        %3508 = vperm.xlu0 %3507, %v3386
        %v3509 = vpop.permute.xlu0 %3508
        %3512 = vset.pattern.permute.xlu0 0
        %3513 = vperm.xlu0 %3512, %v3387
        %v3514 = vpop.permute.xlu0 %3513
        %3517 = vset.pattern.permute.xlu0 0
        %3518 = vperm.xlu0 %3517, %v3388
        %v3519 = vpop.permute.xlu0 %3518
        %3522 = vset.pattern.permute.xlu0 0
        %3523 = vperm.xlu0 %3522, %v3389
        %v3524 = vpop.permute.xlu0 %3523
        %3527 = vset.pattern.permute.xlu0 0
        %3528 = vperm.xlu0 %3527, %v3390
        %v3529 = vpop.permute.xlu0 %3528
        %3532 = vset.pattern.permute.xlu0 0
        %3533 = vperm.xlu0 %3532, %v3391
        %v3534 = vpop.permute.xlu0 %3533
        %3537 = vset.pattern.permute.xlu0 0
        %3538 = vperm.xlu0 %3537, %v3392
        %v3539 = vpop.permute.xlu0 %3538
        %3542 = vset.pattern.permute.xlu0 0
        %3543 = vperm.xlu0 %3542, %v3393
        %v3544 = vpop.permute.xlu0 %3543
        %3547 = vset.pattern.permute.xlu0 0
        %3548 = vperm.xlu0 %3547, %v3394
        %v3549 = vpop.permute.xlu0 %3548
        %3552 = vset.pattern.permute.xlu0 0
        %3553 = vperm.xlu0 %3552, %v3395
        %v3554 = vpop.permute.xlu0 %3553
        %3557 = vset.pattern.permute.xlu0 0
        %3558 = vperm.xlu0 %3557, %v3396
        %v3559 = vpop.permute.xlu0 %3558
        %3562 = vset.pattern.permute.xlu0 0
        %3563 = vperm.xlu0 %3562, %v3397
        %v3564 = vpop.permute.xlu0 %3563
        %3567 = vset.pattern.permute.xlu0 0
        %3568 = vperm.xlu0 %3567, %v3398
        %v3569 = vpop.permute.xlu0 %3568
        %3572 = vset.pattern.permute.xlu0 0
        %3573 = vperm.xlu0 %3572, %v3399
        %v3574 = vpop.permute.xlu0 %3573
        %3577 = vset.pattern.permute.xlu0 0
        %3578 = vperm.xlu0 %3577, %v3400
        %v3579 = vpop.permute.xlu0 %3578
        %3582 = vset.pattern.permute.xlu0 0
        %3583 = vperm.xlu0 %3582, %v3401
        %v3584 = vpop.permute.xlu0 %3583
        %3587 = vset.pattern.permute.xlu0 0
        %3588 = vperm.xlu0 %3587, %v3402
        %v3589 = vpop.permute.xlu0 %3588
        %3592 = vset.pattern.permute.xlu0 0
        %3593 = vperm.xlu0 %3592, %v3403
        %v3594 = vpop.permute.xlu0 %3593
        %3597 = vset.pattern.permute.xlu0 0
        %3598 = vperm.xlu0 %3597, %v3404
        %v3599 = vpop.permute.xlu0 %3598
        %3602 = vset.pattern.permute.xlu0 0
        %3603 = vperm.xlu0 %3602, %v3405
        %v3604 = vpop.permute.xlu0 %3603
        %3607 = vset.pattern.permute.xlu0 0
        %3608 = vperm.xlu0 %3607, %v3406
        %v3609 = vpop.permute.xlu0 %3608
        %3612 = vset.pattern.permute.xlu0 0
        %3613 = vperm.xlu0 %3612, %v3407
        %v3614 = vpop.permute.xlu0 %3613
        %3617 = vset.pattern.permute.xlu0 0
        %3618 = vperm.xlu0 %3617, %v3408
        %v3619 = vpop.permute.xlu0 %3618
        %3622 = vset.pattern.permute.xlu0 0
        %3623 = vperm.xlu0 %3622, %v3409
        %v3624 = vpop.permute.xlu0 %3623
        %3627 = vset.pattern.permute.xlu0 0
        %3628 = vperm.xlu0 %3627, %v3410
        %v3629 = vpop.permute.xlu0 %3628
        %3632 = vset.pattern.permute.xlu0 0
        %3633 = vperm.xlu0 %3632, %v3411
        %v3634 = vpop.permute.xlu0 %3633
        %3637 = vset.pattern.permute.xlu0 0
        %3638 = vperm.xlu0 %3637, %v3412
        %v3639 = vpop.permute.xlu0 %3638
        %3642 = vset.pattern.permute.xlu0 0
        %3643 = vperm.xlu0 %3642, %v3413
        %v3644 = vpop.permute.xlu0 %3643
        %3647 = vset.pattern.permute.xlu0 0
        %3648 = vperm.xlu0 %3647, %v3414
        %v3649 = vpop.permute.xlu0 %3648
        %3652 = vset.pattern.permute.xlu0 0
        %3653 = vperm.xlu0 %3652, %v3415
        %v3654 = vpop.permute.xlu0 %3653
        %3657 = vset.pattern.permute.xlu0 0
        %3658 = vperm.xlu0 %3657, %v3416
        %v3659 = vpop.permute.xlu0 %3658
        %3662 = vset.pattern.permute.xlu0 0
        %3663 = vperm.xlu0 %3662, %v3417
        %v3664 = vpop.permute.xlu0 %3663
        %3667 = vset.pattern.permute.xlu0 0
        %3668 = vperm.xlu0 %3667, %v3418
        %v3669 = vpop.permute.xlu0 %3668
        %3672 = vset.pattern.permute.xlu0 0
        %3673 = vperm.xlu0 %3672, %v3419
        %v3674 = vpop.permute.xlu0 %3673
        %3677 = vset.pattern.permute.xlu0 0
        %3678 = vperm.xlu0 %3677, %v3420
        %v3679 = vpop.permute.xlu0 %3678
        %3682 = vset.pattern.permute.xlu0 0
        %3683 = vperm.xlu0 %3682, %v3421
        %v3684 = vpop.permute.xlu0 %3683
        %3687 = vset.pattern.permute.xlu0 0
        %3688 = vperm.xlu0 %3687, %v3422
        %v3689 = vpop.permute.xlu0 %3688
        %3692 = vset.pattern.permute.xlu0 0
        %3693 = vperm.xlu0 %3692, %v3423
        %v3694 = vpop.permute.xlu0 %3693
        %3697 = vset.pattern.permute.xlu0 0
        %3698 = vperm.xlu0 %3697, %v3424
        %v3699 = vpop.permute.xlu0 %3698
        %3702 = vset.pattern.permute.xlu0 0
        %3703 = vperm.xlu0 %3702, %v3425
        %v3704 = vpop.permute.xlu0 %3703
        %3707 = vset.pattern.permute.xlu0 0
        %3708 = vperm.xlu0 %3707, %v3426
        %v3709 = vpop.permute.xlu0 %3708
        %3712 = vset.pattern.permute.xlu0 0
        %3713 = vperm.xlu0 %3712, %v3427
        %v3714 = vpop.permute.xlu0 %3713
        %3717 = vset.pattern.permute.xlu0 0
        %3718 = vperm.xlu0 %3717, %v3428
        %v3719 = vpop.permute.xlu0 %3718
        %3722 = vset.pattern.permute.xlu0 0
        %3723 = vperm.xlu0 %3722, %v3429
        %v3724 = vpop.permute.xlu0 %3723
        %3727 = vset.pattern.permute.xlu0 0
        %3728 = vperm.xlu0 %3727, %v3430
        %v3729 = vpop.permute.xlu0 %3728
        %3732 = vset.pattern.permute.xlu0 0
        %3733 = vperm.xlu0 %3732, %v3431
        %v3734 = vpop.permute.xlu0 %3733
        %3737 = vset.pattern.permute.xlu0 0
        %3738 = vperm.xlu0 %3737, %v3432
        %v3739 = vpop.permute.xlu0 %3738
        %3742 = vset.pattern.permute.xlu0 0
        %3743 = vperm.xlu0 %3742, %v3433
        %v3744 = vpop.permute.xlu0 %3743
        %3747 = vset.pattern.permute.xlu0 0
        %3748 = vperm.xlu0 %3747, %v3434
        %v3749 = vpop.permute.xlu0 %3748
        %3752 = vset.pattern.permute.xlu0 0
        %3753 = vperm.xlu0 %3752, %v3435
        %v3754 = vpop.permute.xlu0 %3753
        %v3756 = vmul.f32 %v3308, %v3439
        %v3757 = vmul.f32 %v3309, %v3444
        %v3758 = vmul.f32 %v3310, %v3449
        %v3759 = vmul.f32 %v3311, %v3454
        %v3760 = vmul.f32 %v3312, %v3459
        %v3761 = vmul.f32 %v3313, %v3464
        %v3762 = vmul.f32 %v3314, %v3469
        %v3763 = vmul.f32 %v3315, %v3474
        %v3764 = vmul.f32 %v3316, %v3479
        %v3765 = vmul.f32 %v3317, %v3484
        %v3766 = vmul.f32 %v3318, %v3489
        %v3767 = vmul.f32 %v3319, %v3494
        %v3768 = vmul.f32 %v3320, %v3499
        %v3769 = vmul.f32 %v3321, %v3504
        %v3770 = vmul.f32 %v3322, %v3509
        %v3771 = vmul.f32 %v3323, %v3514
        %v3772 = vmul.f32 %v3324, %v3519
        %v3773 = vmul.f32 %v3325, %v3524
        %v3774 = vmul.f32 %v3326, %v3529
        %v3775 = vmul.f32 %v3327, %v3534
        %v3776 = vmul.f32 %v3328, %v3539
        %v3777 = vmul.f32 %v3329, %v3544
        %v3778 = vmul.f32 %v3330, %v3549
        %v3779 = vmul.f32 %v3331, %v3554
        %v3780 = vmul.f32 %v3332, %v3559
        %v3781 = vmul.f32 %v3333, %v3564
        %v3782 = vmul.f32 %v3334, %v3569
        %v3783 = vmul.f32 %v3335, %v3574
        %v3784 = vmul.f32 %v3336, %v3579
        %v3785 = vmul.f32 %v3337, %v3584
        %v3786 = vmul.f32 %v3338, %v3589
        %v3787 = vmul.f32 %v3339, %v3594
        %v3788 = vmul.f32 %v3340, %v3599
        %v3789 = vmul.f32 %v3341, %v3604
        %v3790 = vmul.f32 %v3342, %v3609
        %v3791 = vmul.f32 %v3343, %v3614
        %v3792 = vmul.f32 %v3344, %v3619
        %v3793 = vmul.f32 %v3345, %v3624
        %v3794 = vmul.f32 %v3346, %v3629
        %v3795 = vmul.f32 %v3347, %v3634
        %v3796 = vmul.f32 %v3348, %v3639
        %v3797 = vmul.f32 %v3349, %v3644
        %v3798 = vmul.f32 %v3350, %v3649
        %v3799 = vmul.f32 %v3351, %v3654
        %v3800 = vmul.f32 %v3352, %v3659
        %v3801 = vmul.f32 %v3353, %v3664
        %v3802 = vmul.f32 %v3354, %v3669
        %v3803 = vmul.f32 %v3355, %v3674
        %v3804 = vmul.f32 %v3356, %v3679
        %v3805 = vmul.f32 %v3357, %v3684
        %v3806 = vmul.f32 %v3358, %v3689
        %v3807 = vmul.f32 %v3359, %v3694
        %v3808 = vmul.f32 %v3360, %v3699
        %v3809 = vmul.f32 %v3361, %v3704
        %v3810 = vmul.f32 %v3362, %v3709
        %v3811 = vmul.f32 %v3363, %v3714
        %v3812 = vmul.f32 %v3364, %v3719
        %v3813 = vmul.f32 %v3365, %v3724
        %v3814 = vmul.f32 %v3366, %v3729
        %v3815 = vmul.f32 %v3367, %v3734
        %v3816 = vmul.f32 %v3368, %v3739
        %v3817 = vmul.f32 %v3369, %v3744
        %v3818 = vmul.f32 %v3370, %v3749
        %v3819 = vmul.f32 %v3371, %v3754
        %v3820 = vadd.f32 %v3756, %v3757
        %v3821 = vadd.f32 %v3820, %v3758
        %v3822 = vadd.f32 %v3821, %v3759
        %v3823 = vadd.f32 %v3822, %v3760
        %v3824 = vadd.f32 %v3823, %v3761
        %v3825 = vadd.f32 %v3824, %v3762
        %v3826 = vadd.f32 %v3825, %v3763
        %v3827 = vadd.f32 %v3826, %v3764
        %v3828 = vadd.f32 %v3827, %v3765
        %v3829 = vadd.f32 %v3828, %v3766
        %v3830 = vadd.f32 %v3829, %v3767
        %v3831 = vadd.f32 %v3830, %v3768
        %v3832 = vadd.f32 %v3831, %v3769
        %v3833 = vadd.f32 %v3832, %v3770
        %v3834 = vadd.f32 %v3833, %v3771
        %v3835 = vadd.f32 %v3834, %v3772
        %v3836 = vadd.f32 %v3835, %v3773
        %v3837 = vadd.f32 %v3836, %v3774
        %v3838 = vadd.f32 %v3837, %v3775
        %v3839 = vadd.f32 %v3838, %v3776
        %v3840 = vadd.f32 %v3839, %v3777
        %v3841 = vadd.f32 %v3840, %v3778
        %v3842 = vadd.f32 %v3841, %v3779
        %v3843 = vadd.f32 %v3842, %v3780
        %v3844 = vadd.f32 %v3843, %v3781
        %v3845 = vadd.f32 %v3844, %v3782
        %v3846 = vadd.f32 %v3845, %v3783
        %v3847 = vadd.f32 %v3846, %v3784
        %v3848 = vadd.f32 %v3847, %v3785
        %v3849 = vadd.f32 %v3848, %v3786
        %v3850 = vadd.f32 %v3849, %v3787
        %v3851 = vadd.f32 %v3850, %v3788
        %v3852 = vadd.f32 %v3851, %v3789
        %v3853 = vadd.f32 %v3852, %v3790
        %v3854 = vadd.f32 %v3853, %v3791
        %v3855 = vadd.f32 %v3854, %v3792
        %v3856 = vadd.f32 %v3855, %v3793
        %v3857 = vadd.f32 %v3856, %v3794
        %v3858 = vadd.f32 %v3857, %v3795
        %v3859 = vadd.f32 %v3858, %v3796
        %v3860 = vadd.f32 %v3859, %v3797
        %v3861 = vadd.f32 %v3860, %v3798
        %v3862 = vadd.f32 %v3861, %v3799
        %v3863 = vadd.f32 %v3862, %v3800
        %v3864 = vadd.f32 %v3863, %v3801
        %v3865 = vadd.f32 %v3864, %v3802
        %v3866 = vadd.f32 %v3865, %v3803
        %v3867 = vadd.f32 %v3866, %v3804
        %v3868 = vadd.f32 %v3867, %v3805
        %v3869 = vadd.f32 %v3868, %v3806
        %v3870 = vadd.f32 %v3869, %v3807
        %v3871 = vadd.f32 %v3870, %v3808
        %v3872 = vadd.f32 %v3871, %v3809
        %v3873 = vadd.f32 %v3872, %v3810
        %v3874 = vadd.f32 %v3873, %v3811
        %v3875 = vadd.f32 %v3874, %v3812
        %v3876 = vadd.f32 %v3875, %v3813
        %v3877 = vadd.f32 %v3876, %v3814
        %v3878 = vadd.f32 %v3877, %v3815
        %v3879 = vadd.f32 %v3878, %v3816
        %v3880 = vadd.f32 %v3879, %v3817
        %v3881 = vadd.f32 %v3880, %v3818
        %v3882 = vadd.f32 %v3881, %v3819
        %v3883 = vrot.slane %v3882, 4
        %v3884 = vadd.f32 %v3882, %v3883
        %v3885 = vrot.slane %v3884, 2
        %v3886 = vadd.f32 %v3884, %v3885
        %v3887 = vrot.slane %v3886, 1
        %v3888 = vadd.f32 %v3886, %v3887
        %v3889 = vld [vmem:[#allocation2] sm:$0x1]
        %3891 = vset.pattern.permute.xlu0 0
        %3892 = vperm.xlu0 %3891, %v3889
        %v3893 = vpop.permute.xlu0 %3892
        %v3895 = vlaneseq
        %v3896 = vshrl.u32 %v3895, 7
        %v3897 = vsub.s32 0, %v3896
        %v3898 = vrot.slane %v3893, %v3897
        %v3899 = vadd.f32 %v3888, %v3898
        %3900 = vst [vmem:[%s294] sm:$0x1] %v3899
        %s3901 = sand.u32 %s199, 1
        %s3902 = scalar_lea.sflag [#allocation4], %s3901
        %s3903 = sand.u32 %s199, 1
        %s3904 = scalar_lea.vmem [#allocation3], %s3903
        // Predicated region
        $region49: #{tpu_custom_call.1} parent=47 // pred_check
          %p3905 = pneg %p209
        $region50: #{tpu_custom_call.1} parent=47 // pred_check_branch
          %3907 = sbr.rel (%p3905) target = $region52
        $region51: #{tpu_custom_call.1} parent=47 // pred_region
          %s3909 = ssub.s32 16, 16
          %3910 = vsyncadd %s3902, %s3909
          %s3911 = sadd.s32 %s28, %s27
          %s3912 = smul.addr %s3911, 16
          %s3913 = scalar_lea.hbm %s7, %s3912
          %s3915 = sshll.u32 %s3904, 4
          %s3916 = int_to_ptr.vmem [resolvable:$true] %s3915
          %3918 = dma.vmem_to_hbm [thread:$0]  %s3916, 16, %s3913, %s3902
        $region52: #{tpu_custom_call.1} parent=47 // pred_fallthru
          _
      $region48: #{tpu_custom_call.1} parent=5 // pred_fallthru
        _
      %p3919 = scmp.le.s32.totalorder 2, %s18
      // Predicated region
      $region53: #{tpu_custom_call.1} parent=5 // pred_check
        %p3920 = pneg %p3919
      $region54: #{tpu_custom_call.1} parent=5 // pred_check_branch
        %3922 = sbr.rel (%p3920) target = $region56
      $region55: #{tpu_custom_call.1} parent=5 // pred_region
        %s3923 = ssub.s32 %s18, 2
        // Predicated region
        $region57: #{tpu_custom_call.1} parent=55 // pred_check
          %p3924 = pneg %p215
        $region58: #{tpu_custom_call.1} parent=55 // pred_check_branch
          %3926 = sbr.rel (%p3924) target = $region60
        $region59: #{tpu_custom_call.1} parent=55 // pred_region
          %s3927 = sand.u32 %s200, 1
          %s3928 = scalar_lea.sflag [#allocation4], %s3927
          %s3929 = sand.u32 %s200, 1
          %s3930 = scalar_lea.vmem [#allocation3], %s3929
          %3931 = dma.done %s3928, 16
        $region60: #{tpu_custom_call.1} parent=55 // pred_fallthru
          _
      $region56: #{tpu_custom_call.1} parent=5 // pred_fallthru
        _
    $region6: #{tpu_custom_call.1} parent=1 // loop_footer
      %s22 = sadd.s32 1, %s18
    $region7: #{tpu_custom_call.1} parent=1 // loop_footer_branch
      %17 = sbr.rel target = $region3
    $region8: #{tpu_custom_call.1} parent=1 // loop_exit
      _
    %3932 = vsyncpa [#allocation4], 1
    %s3933 = scalar_lea.sflag [#allocation4], 1
    %3934 = vsyncpa %s3933, 1

</llo_original>
